<compile_context>
chip_gen: v7x
topology: tpu7x:2x2x1
jax: 0.10.0
libtpu: 0.0.40
codegen_flags: <defaults>
</compile_context>

<pallas_src>
import jax
import jax.numpy as jnp
from jax.experimental import pallas as pl
from jax.experimental.pallas import tpu as pltpu

EMBED = 300           # embedding_dim
HIDDEN = 100          # bidirectional LSTM output width (2 * 50)
H = HIDDEN // 2       # hidden per direction
SEQ = 6               # attention_net requires SEQSIZE == 6
NUM_TAGS = 3
GPAD = 128            # per-gate lane padding (fwd 0:50, bwd 50:100, zeros 100:128)
GW = 4 * GPAD         # 512 packed gate lanes


# ---------------------------------------------------------------------------
# Single fused kernel
# ---------------------------------------------------------------------------
def _model1_fused_kernel(x_ref, w_in_ref, b_in_ref, w_rec_ref,
                         wg_ref, gb_ref, attw_ref, attb_ref,
                         linw_ref, linb_ref, out_ref):
    S, TB, E = x_ref.shape                     # (6, TB, 300)

    # ---- fused input projection: both directions, all gates, one matmul ----
    # (S, TB, E) @ (E, 512) -> (S, TB, 512)
    # gate k occupies lanes [k*128, (k+1)*128): fwd 0:50, bwd 50:100, pad 100:128
    gx = jax.lax.dot_general(
        x_ref[...], w_in_ref[...], (((2,), (0,)), ((), ())),
        preferred_element_type=jnp.float32) + b_in_ref[...]

    w_rec = w_rec_ref[...]                     # (128, 512) block-diag fwd/bwd recurrence

    lane512 = jax.lax.broadcasted_iota(jnp.int32, (1, GW), 1)
    gate_mask = jnp.bitwise_and(lane512, GPAD - 1) < H     # True on fwd lanes of each gate
    lane128 = jax.lax.broadcasted_iota(jnp.int32, (1, GPAD), 1)
    half_mask = lane128 < H                                # True on fwd half of the state

    # ---- merged fwd/bwd recurrence: 6 steps, one recurrent dot per step ----
    h = jnp.zeros((TB, GPAD), jnp.float32)     # [h_fwd | h_bwd | 0-pad]
    c = jnp.zeros((TB, GPAD), jnp.float32)
    hs = []
    for s in range(S):
        # fwd gates consume x[s]; bwd gates consume x[S-1-s]
        gx_s = jnp.where(gate_mask, gx[s], gx[S - 1 - s])
        g = gx_s + jnp.dot(h, w_rec, preferred_element_type=jnp.float32)
        i = jax.nn.sigmoid(g[:, 0 * GPAD:1 * GPAD])        # 128-aligned slices
        f = jax.nn.sigmoid(g[:, 1 * GPAD:2 * GPAD])
        gg = jnp.tanh(g[:, 2 * GPAD:3 * GPAD])
        o = jax.nn.sigmoid(g[:, 3 * GPAD:4 * GPAD])
        c = f * c + i * gg                      # pad lanes stay exactly 0
        h = o * jnp.tanh(c)
        hs.append(jnp.maximum(h, 0.0))          # torch.relu(lstm output); pad stays 0

    # lo[b, t, 0:50] = relu(h_fwd(t)); lo[b, t, 50:100] = relu(h_bwd(t))
    # (the bwd state for time t was produced at loop step S-1-t)
    lo = jnp.stack([jnp.where(half_mask, hs[t], hs[S - 1 - t]) for t in range(S)],
                   axis=1)                      # (TB, 6, 128), lanes 100:128 are 0

    # ---- attention head + classifier (same kernel, no HBM round trip) ----
    # G: tanh(h @ (Wg1+Wg2).T + bias); wg is zero-padded to 128 rows.
    g_att = jnp.tanh(
        jax.lax.dot_general(lo, wg_ref[...], (((2,), (0,)), ((), ())),
                            preferred_element_type=jnp.float32) + gb_ref[...])
    # alpha = sigmoid(Linear(6,6)(g))
    alpha = jax.nn.sigmoid(
        jax.lax.dot_general(g_att, attw_ref[...], (((2,), (0,)), ((), ())),
                            preferred_element_type=jnp.float32) + attb_ref[...])
    # l[b, i, d] = sum_s alpha[b, s, i] * lo[b, s, d]
    l = jax.lax.dot_general(alpha, lo, (((1,), (1,)), ((0,), (0,))),
                            preferred_element_type=jnp.float32)     # (TB, 6, 128)
    l = jnp.maximum(l, 0.0)                     # relu(att_out)
    # final Linear(100, 3); linw zero-padded to 128 rows
    logits = jax.lax.dot_general(l, linw_ref[...], (((2,), (0,)), ((), ())),
                                 preferred_element_type=jnp.float32) + linb_ref[...]

    # log_softmax over dim=2
    m = jnp.max(logits, axis=2, keepdims=True)
    z = logits - m
    lse = jnp.log(jnp.sum(jnp.exp(z), axis=2, keepdims=True))
    out_ref[...] = z - lse


# ---------------------------------------------------------------------------
# Wrapper: batch-tiled grid, weights passed whole with constant index maps
# ---------------------------------------------------------------------------
def model1_forward(sequence, pp, *, batch_tile=None):
    S, B, E = sequence.shape
    assert S == SEQ and E == EMBED

    if batch_tile is None:
        TB = B if B <= 128 else 128             # batch tile (multiple of 8 when tiling)
    else:
        TB = min(batch_tile, B)
    grid = (pl.cdiv(B, TB),)

    const2 = lambda i: (0, 0)
    in_specs = [
        pl.BlockSpec((S, TB, E), lambda i: (0, i, 0)),   # sequence (batch-tiled)
        pl.BlockSpec((EMBED, GW), const2),               # packed input-proj weight
        pl.BlockSpec((1, GW), const2),                   # packed gate bias
        pl.BlockSpec((GPAD, GW), const2),                # packed recurrent weight
        pl.BlockSpec((GPAD, SEQ), const2),               # (Wg1+Wg2).T zero-padded
        pl.BlockSpec((1, SEQ), const2),                  # g bias (broadcast)
        pl.BlockSpec((SEQ, SEQ), const2),                # att.weight.T
        pl.BlockSpec((1, SEQ), const2),                  # att.bias
        pl.BlockSpec((GPAD, NUM_TAGS), const2),          # linear.weight.T zero-padded
        pl.BlockSpec((1, NUM_TAGS), const2),             # linear.bias
    ]
    out_spec = pl.BlockSpec((TB, SEQ, NUM_TAGS), lambda i: (i, 0, 0))

    return pl.pallas_call(
        _model1_fused_kernel,
        out_shape=jax.ShapeDtypeStruct((B, SEQ, NUM_TAGS), jnp.float32),
        grid=grid,
        in_specs=in_specs,
        out_specs=out_spec,
        compiler_params=pltpu.CompilerParams(
            dimension_semantics=("parallel",)),
    )(sequence, pp['w_in'], pp['b_in'], pp['w_rec'], pp['wg'], pp['gb'],
      pp['attw'], pp['attb'], pp['linw'], pp['linb'])


# ---------------------------------------------------------------------------
# One-time weight packing (done outside the hot path).
# Gate layout per 128-lane block: [0:50) forward, [50:100) backward, rest zero.
# ---------------------------------------------------------------------------
def pack_params(p):
    def pack_in(wf, wb):                        # (4H, E) x2 -> (E, 512)
        cols = []
        for k in range(4):
            blk = jnp.zeros((EMBED, GPAD), jnp.float32)
            blk = blk.at[:, 0:H].set(wf[k * H:(k + 1) * H, :].T)
            blk = blk.at[:, H:2 * H].set(wb[k * H:(k + 1) * H, :].T)
            cols.append(blk)
        return jnp.concatenate(cols, axis=1)

    def pack_rec(wf, wb):                       # (4H, H) x2 -> (128, 512) block-diag
        cols = []
        for k in range(4):
            blk = jnp.zeros((GPAD, GPAD), jnp.float32)
            blk = blk.at[0:H, 0:H].set(wf[k * H:(k + 1) * H, :].T)
            blk = blk.at[H:2 * H, H:2 * H].set(wb[k * H:(k + 1) * H, :].T)
            cols.append(blk)
        return jnp.concatenate(cols, axis=1)

    def pack_bias(bf, bb):                      # (4H,) x2 -> (1, 512)
        cols = []
        for k in range(4):
            blk = jnp.zeros((GPAD,), jnp.float32)
            blk = blk.at[0:H].set(bf[k * H:(k + 1) * H])
            blk = blk.at[H:2 * H].set(bb[k * H:(k + 1) * H])
            cols.append(blk)
        return jnp.concatenate(cols).reshape(1, GW)

    wg = jnp.zeros((GPAD, SEQ), jnp.float32).at[0:HIDDEN, :].set((p['Wg1'] + p['Wg2']).T)
    linw = jnp.zeros((GPAD, NUM_TAGS), jnp.float32).at[0:HIDDEN, :].set(p['lin_W'].T)
    return {
        'w_in': pack_in(p['wih_f'], p['wih_b']),
        'b_in': pack_bias(p['b_f'], p['b_b']),
        'w_rec': pack_rec(p['whh_f'], p['whh_b']),
        'wg': wg,
        'gb': jnp.tile(p['g_bias'].reshape(1, 1), (1, SEQ)),
        'attw': p['att_W'].T,
        'attb': p['att_b'].reshape(1, SEQ),
        'linw': linw,
        'linb': p['lin_b'].reshape(1, NUM_TAGS),
    }


# ---------------------------------------------------------------------------
# Deterministic parameter init (shapes per the module's __init__).
# G's Wg1/Wg2 are torch.zeros in the reference; we use small nonzero
# deterministic values so the kernel math is actually exercised.
# ---------------------------------------------------------------------------
def init_params(key):
    ks = jax.random.split(key, 12)

    def u(k, shape, bound):
        return jax.random.uniform(k, shape, jnp.float32, -bound, bound)

    s_lstm = 1.0 / (H ** 0.5)
    return {
        'wih_f': u(ks[0], (4 * H, EMBED), s_lstm),
        'whh_f': u(ks[1], (4 * H, H), s_lstm),
        'b_f':   u(ks[2], (4 * H,), s_lstm),     # b_ih + b_hh folded together
        'wih_b': u(ks[3], (4 * H, EMBED), s_lstm),
        'whh_b': u(ks[4], (4 * H, H), s_lstm),
        'b_b':   u(ks[5], (4 * H,), s_lstm),
        'Wg1':   0.05 * jax.random.normal(ks[6], (SEQ, HIDDEN), jnp.float32),
        'Wg2':   0.05 * jax.random.normal(ks[7], (SEQ, HIDDEN), jnp.float32),
        'g_bias': jnp.zeros((1,), jnp.float32),
        'att_W': u(ks[8], (SEQ, SEQ), 1.0 / (SEQ ** 0.5)),
        'att_b': u(ks[9], (SEQ,), 1.0 / (SEQ ** 0.5)),
        'lin_W': u(ks[10], (NUM_TAGS, HIDDEN), 1.0 / (HIDDEN ** 0.5)),
        'lin_b': u(ks[11], (NUM_TAGS,), 1.0 / (HIDDEN ** 0.5)),
    }


# ---------------------------------------------------------------------------
# Pure-JAX reference (mirrors the PyTorch forward) for a correctness check.
# ---------------------------------------------------------------------------
def reference_forward(sequence, p):
    S, B, E = sequence.shape

    def cell(h, c, x, wih, whh, b):
        g = x @ wih.T + h @ whh.T + b
        i = jax.nn.sigmoid(g[:, 0 * H:1 * H])
        f = jax.nn.sigmoid(g[:, 1 * H:2 * H])
        gg = jnp.tanh(g[:, 2 * H:3 * H])
        o = jax.nn.sigmoid(g[:, 3 * H:4 * H])
        c = f * c + i * gg
        h = o * jnp.tanh(c)
        return h, c

    h = c = jnp.zeros((B, H), jnp.float32)
    fwd = []
    for t in range(S):
        h, c = cell(h, c, sequence[t], p['wih_f'], p['whh_f'], p['b_f'])
        fwd.append(h)
    h = c = jnp.zeros((B, H), jnp.float32)
    bwd = [None] * S
    for t in range(S - 1, -1, -1):
        h, c = cell(h, c, sequence[t], p['wih_b'], p['whh_b'], p['b_b'])
        bwd[t] = h
    out = jnp.concatenate([jnp.stack(fwd, 0), jnp.stack(bwd, 0)], axis=-1)  # (S,B,100)
    out = jnp.maximum(out, 0.0)
    lo = jnp.transpose(out, (1, 0, 2))                                      # (B,S,100)

    h2 = lo.reshape(-1, HIDDEN)
    g = jnp.tanh(h2 @ p['Wg1'].T + h2 @ p['Wg2'].T + p['g_bias'])
    g = g.reshape(-1, SEQ, SEQ)
    alpha = jax.nn.sigmoid(jnp.einsum('bsj,kj->bsk', g, p['att_W']) + p['att_b'])
    l = jnp.einsum('bsi,bsd->bid', alpha, lo)
    l = jnp.maximum(l, 0.0)
    logits = jnp.einsum('bid,kd->bik', l, p['lin_W']) + p['lin_b']
    return jax.nn.log_softmax(logits, axis=2)


if __name__ == "__main__":
    key = jax.random.PRNGKey(0)
    kp, kx = jax.random.split(key)
    params = init_params(kp)
    packed = pack_params(params)                 # pre-pack weights once

    BATCH = 2
    sequence = jax.random.normal(kx, (SEQ, BATCH, EMBED), jnp.float32)

    out = model1_forward(sequence, packed)
    out = jax.block_until_ready(out)
    assert out.shape == (BATCH, SEQ, NUM_TAGS), out.shape

    ref = reference_forward(sequence, params)
    err = float(jnp.max(jnp.abs(out - ref)))
    if err > 5e-4:
        raise AssertionError(f"mismatch vs reference: max abs err = {err}")

    print("KERNEL_OK")
</pallas_src>

<mosaic_0001>
module attributes {stable_mosaic.version = 11 : i64} {
  func.func @_model1_fused_kernel(%arg0: i32, %arg1: memref<6x2x300xf32, #tpu.memory_space<vmem>>, %arg2: memref<300x512xf32, #tpu.memory_space<vmem>>, %arg3: memref<1x512xf32, #tpu.memory_space<vmem>>, %arg4: memref<128x512xf32, #tpu.memory_space<vmem>>, %arg5: memref<128x6xf32, #tpu.memory_space<vmem>>, %arg6: memref<1x6xf32, #tpu.memory_space<vmem>>, %arg7: memref<6x6xf32, #tpu.memory_space<vmem>>, %arg8: memref<1x6xf32, #tpu.memory_space<vmem>>, %arg9: memref<128x3xf32, #tpu.memory_space<vmem>>, %arg10: memref<1x3xf32, #tpu.memory_space<vmem>>, %arg11: memref<2x6x3xf32, #tpu.memory_space<vmem>>) attributes {dimension_semantics = [#tpu.dimension_semantics<parallel>], iteration_bounds = array<i64: 1>, scalar_prefetch = 0 : i64, scratch_operands = 0 : i64, tpu.core_type = #tpu.core_type<tc>, window_params = [{transform_indices = @transform_0, window_bounds = array<i64: 6, 2, 300>}, {pipeline_mode = #tpu.pipeline_mode<synchronous>, transform_indices = @transform_1, window_bounds = array<i64: 300, 512>}, {pipeline_mode = #tpu.pipeline_mode<synchronous>, transform_indices = @transform_2, window_bounds = array<i64: 1, 512>}, {pipeline_mode = #tpu.pipeline_mode<synchronous>, transform_indices = @transform_3, window_bounds = array<i64: 128, 512>}, {pipeline_mode = #tpu.pipeline_mode<synchronous>, transform_indices = @transform_4, window_bounds = array<i64: 128, 6>}, {pipeline_mode = #tpu.pipeline_mode<synchronous>, transform_indices = @transform_5, window_bounds = array<i64: 1, 6>}, {pipeline_mode = #tpu.pipeline_mode<synchronous>, transform_indices = @transform_6, window_bounds = array<i64: 6, 6>}, {pipeline_mode = #tpu.pipeline_mode<synchronous>, transform_indices = @transform_7, window_bounds = array<i64: 1, 6>}, {pipeline_mode = #tpu.pipeline_mode<synchronous>, transform_indices = @transform_8, window_bounds = array<i64: 128, 3>}, {pipeline_mode = #tpu.pipeline_mode<synchronous>, transform_indices = @transform_9, window_bounds = array<i64: 1, 3>}, {transform_indices = @transform_10, window_bounds = array<i64: 2, 6, 3>}]} {
    %c0 = arith.constant 0 : index
    %c0_0 = arith.constant 0 : index
    %c0_1 = arith.constant 0 : index
    %0 = vector.load %arg1[%c0, %c0_0, %c0_1] : memref<6x2x300xf32, #tpu.memory_space<vmem>>, vector<6x2x300xf32>
    %c0_2 = arith.constant 0 : index
    %c0_3 = arith.constant 0 : index
    %1 = vector.load %arg2[%c0_2, %c0_3] : memref<300x512xf32, #tpu.memory_space<vmem>>, vector<300x512xf32>
    %cst = arith.constant dense<0.000000e+00> : vector<6x2x512xf32>
    %2 = tpu.matmul %0, %1, %cst {dimension_numbers = #tpu.dot_dimension_numbers<[2], [0], [0, 1], [1], [0, 0, 0, 1, 1, 1], [], []>} : vector<6x2x300xf32>, vector<300x512xf32>, vector<6x2x512xf32> -> vector<6x2x512xf32>
    %c0_4 = arith.constant 0 : index
    %c0_5 = arith.constant 0 : index
    %3 = vector.load %arg3[%c0_4, %c0_5] : memref<1x512xf32, #tpu.memory_space<vmem>>, vector<1x512xf32>
    %4 = vector.shape_cast %3 : vector<1x512xf32> to vector<1x1x512xf32>
    %5 = vector.broadcast %4 : vector<1x1x512xf32> to vector<6x2x512xf32>
    %6 = arith.addf %2, %5 : vector<6x2x512xf32>
    %c0_6 = arith.constant 0 : index
    %c0_7 = arith.constant 0 : index
    %7 = vector.load %arg4[%c0_6, %c0_7] : memref<128x512xf32, #tpu.memory_space<vmem>>, vector<128x512xf32>
    %8 = tpu.iota {dimensions = array<i32: 1>} : vector<1x512xi32>
    %c127_i32 = arith.constant 127 : i32
    %9 = vector.broadcast %c127_i32 : i32 to vector<1x512xi32>
    %10 = arith.andi %8, %9 : vector<1x512xi32>
    %c50_i32 = arith.constant 50 : i32
    %11 = vector.broadcast %c50_i32 : i32 to vector<1x512xi32>
    %12 = arith.cmpi slt, %10, %11 : vector<1x512xi32>
    %13 = tpu.iota {dimensions = array<i32: 1>} : vector<1x128xi32>
    %c50_i32_8 = arith.constant 50 : i32
    %14 = vector.broadcast %c50_i32_8 : i32 to vector<1x128xi32>
    %15 = arith.cmpi slt, %13, %14 : vector<1x128xi32>
    %cst_9 = arith.constant 0.000000e+00 : f32
    %16 = vector.broadcast %cst_9 : f32 to vector<2x128xf32>
    %cst_10 = arith.constant 0.000000e+00 : f32
    %17 = vector.broadcast %cst_10 : f32 to vector<2x128xf32>
    %18 = vector.extract_strided_slice %6 {offsets = [0, 0, 0], sizes = [1, 2, 512], strides = [1, 1, 1]} : vector<6x2x512xf32> to vector<1x2x512xf32>
    %19 = vector.shape_cast %18 : vector<1x2x512xf32> to vector<2x512xf32>
    %20 = vector.extract_strided_slice %6 {offsets = [5, 0, 0], sizes = [1, 2, 512], strides = [1, 1, 1]} : vector<6x2x512xf32> to vector<1x2x512xf32>
    %21 = vector.shape_cast %20 : vector<1x2x512xf32> to vector<2x512xf32>
    %22 = vector.shape_cast %12 : vector<1x512xi1> to vector<1x512xi1>
    %23 = vector.broadcast %22 : vector<1x512xi1> to vector<2x512xi1>
    %24 = arith.select %23, %19, %21 : vector<2x512xi1>, vector<2x512xf32>
    %cst_11 = arith.constant dense<0.000000e+00> : vector<2x512xf32>
    %25 = tpu.matmul %16, %7, %cst_11 {dimension_numbers = #tpu.dot_dimension_numbers<[1], [0], [0], [1], [0, 0, 1, 1], [], []>} : vector<2x128xf32>, vector<128x512xf32>, vector<2x512xf32> -> vector<2x512xf32>
    %26 = arith.addf %24, %25 : vector<2x512xf32>
    %27 = vector.extract_strided_slice %26 {offsets = [0, 0], sizes = [2, 128], strides = [1, 1]} : vector<2x512xf32> to vector<2x128xf32>
    %28 = arith.negf %27 : vector<2x128xf32>
    %29 = math.exp %28 : vector<2x128xf32>
    %cst_12 = arith.constant 1.000000e+00 : f32
    %30 = vector.broadcast %cst_12 : f32 to vector<2x128xf32>
    %31 = arith.addf %30, %29 : vector<2x128xf32>
    %32 = arith.divf %30, %31 : vector<2x128xf32>
    %33 = vector.extract_strided_slice %26 {offsets = [0, 128], sizes = [2, 128], strides = [1, 1]} : vector<2x512xf32> to vector<2x128xf32>
    %34 = arith.negf %33 : vector<2x128xf32>
    %35 = math.exp %34 : vector<2x128xf32>
    %cst_13 = arith.constant 1.000000e+00 : f32
    %36 = vector.broadcast %cst_13 : f32 to vector<2x128xf32>
    %37 = arith.addf %36, %35 : vector<2x128xf32>
    %38 = arith.divf %36, %37 : vector<2x128xf32>
    %39 = vector.extract_strided_slice %26 {offsets = [0, 256], sizes = [2, 128], strides = [1, 1]} : vector<2x512xf32> to vector<2x128xf32>
    %40 = math.tanh %39 : vector<2x128xf32>
    %41 = vector.extract_strided_slice %26 {offsets = [0, 384], sizes = [2, 128], strides = [1, 1]} : vector<2x512xf32> to vector<2x128xf32>
    %42 = arith.negf %41 : vector<2x128xf32>
    %43 = math.exp %42 : vector<2x128xf32>
    %cst_14 = arith.constant 1.000000e+00 : f32
    %44 = vector.broadcast %cst_14 : f32 to vector<2x128xf32>
    %45 = arith.addf %44, %43 : vector<2x128xf32>
    %46 = arith.divf %44, %45 : vector<2x128xf32>
    %47 = arith.mulf %38, %17 : vector<2x128xf32>
    %48 = arith.mulf %32, %40 : vector<2x128xf32>
    %49 = arith.addf %47, %48 : vector<2x128xf32>
    %50 = math.tanh %49 : vector<2x128xf32>
    %51 = arith.mulf %46, %50 : vector<2x128xf32>
    %cst_15 = arith.constant 0.000000e+00 : f32
    %52 = vector.broadcast %cst_15 : f32 to vector<2x128xf32>
    %53 = arith.maximumf %51, %52 : vector<2x128xf32>
    %54 = vector.extract_strided_slice %6 {offsets = [1, 0, 0], sizes = [1, 2, 512], strides = [1, 1, 1]} : vector<6x2x512xf32> to vector<1x2x512xf32>
    %55 = vector.shape_cast %54 : vector<1x2x512xf32> to vector<2x512xf32>
    %56 = vector.extract_strided_slice %6 {offsets = [4, 0, 0], sizes = [1, 2, 512], strides = [1, 1, 1]} : vector<6x2x512xf32> to vector<1x2x512xf32>
    %57 = vector.shape_cast %56 : vector<1x2x512xf32> to vector<2x512xf32>
    %58 = vector.shape_cast %12 : vector<1x512xi1> to vector<1x512xi1>
    %59 = vector.broadcast %58 : vector<1x512xi1> to vector<2x512xi1>
    %60 = arith.select %59, %55, %57 : vector<2x512xi1>, vector<2x512xf32>
    %cst_16 = arith.constant dense<0.000000e+00> : vector<2x512xf32>
    %61 = tpu.matmul %51, %7, %cst_16 {dimension_numbers = #tpu.dot_dimension_numbers<[1], [0], [0], [1], [0, 0, 1, 1], [], []>} : vector<2x128xf32>, vector<128x512xf32>, vector<2x512xf32> -> vector<2x512xf32>
    %62 = arith.addf %60, %61 : vector<2x512xf32>
    %63 = vector.extract_strided_slice %62 {offsets = [0, 0], sizes = [2, 128], strides = [1, 1]} : vector<2x512xf32> to vector<2x128xf32>
    %64 = arith.negf %63 : vector<2x128xf32>
    %65 = math.exp %64 : vector<2x128xf32>
    %cst_17 = arith.constant 1.000000e+00 : f32
    %66 = vector.broadcast %cst_17 : f32 to vector<2x128xf32>
    %67 = arith.addf %66, %65 : vector<2x128xf32>
    %68 = arith.divf %66, %67 : vector<2x128xf32>
    %69 = vector.extract_strided_slice %62 {offsets = [0, 128], sizes = [2, 128], strides = [1, 1]} : vector<2x512xf32> to vector<2x128xf32>
    %70 = arith.negf %69 : vector<2x128xf32>
    %71 = math.exp %70 : vector<2x128xf32>
    %cst_18 = arith.constant 1.000000e+00 : f32
    %72 = vector.broadcast %cst_18 : f32 to vector<2x128xf32>
    %73 = arith.addf %72, %71 : vector<2x128xf32>
    %74 = arith.divf %72, %73 : vector<2x128xf32>
    %75 = vector.extract_strided_slice %62 {offsets = [0, 256], sizes = [2, 128], strides = [1, 1]} : vector<2x512xf32> to vector<2x128xf32>
    %76 = math.tanh %75 : vector<2x128xf32>
    %77 = vector.extract_strided_slice %62 {offsets = [0, 384], sizes = [2, 128], strides = [1, 1]} : vector<2x512xf32> to vector<2x128xf32>
    %78 = arith.negf %77 : vector<2x128xf32>
    %79 = math.exp %78 : vector<2x128xf32>
    %cst_19 = arith.constant 1.000000e+00 : f32
    %80 = vector.broadcast %cst_19 : f32 to vector<2x128xf32>
    %81 = arith.addf %80, %79 : vector<2x128xf32>
    %82 = arith.divf %80, %81 : vector<2x128xf32>
    %83 = arith.mulf %74, %49 : vector<2x128xf32>
    %84 = arith.mulf %68, %76 : vector<2x128xf32>
    %85 = arith.addf %83, %84 : vector<2x128xf32>
    %86 = math.tanh %85 : vector<2x128xf32>
    %87 = arith.mulf %82, %86 : vector<2x128xf32>
    %cst_20 = arith.constant 0.000000e+00 : f32
    %88 = vector.broadcast %cst_20 : f32 to vector<2x128xf32>
    %89 = arith.maximumf %87, %88 : vector<2x128xf32>
    %90 = vector.extract_strided_slice %6 {offsets = [2, 0, 0], sizes = [1, 2, 512], strides = [1, 1, 1]} : vector<6x2x512xf32> to vector<1x2x512xf32>
    %91 = vector.shape_cast %90 : vector<1x2x512xf32> to vector<2x512xf32>
    %92 = vector.extract_strided_slice %6 {offsets = [3, 0, 0], sizes = [1, 2, 512], strides = [1, 1, 1]} : vector<6x2x512xf32> to vector<1x2x512xf32>
    %93 = vector.shape_cast %92 : vector<1x2x512xf32> to vector<2x512xf32>
    %94 = vector.shape_cast %12 : vector<1x512xi1> to vector<1x512xi1>
    %95 = vector.broadcast %94 : vector<1x512xi1> to vector<2x512xi1>
    %96 = arith.select %95, %91, %93 : vector<2x512xi1>, vector<2x512xf32>
    %cst_21 = arith.constant dense<0.000000e+00> : vector<2x512xf32>
    %97 = tpu.matmul %87, %7, %cst_21 {dimension_numbers = #tpu.dot_dimension_numbers<[1], [0], [0], [1], [0, 0, 1, 1], [], []>} : vector<2x128xf32>, vector<128x512xf32>, vector<2x512xf32> -> vector<2x512xf32>
    %98 = arith.addf %96, %97 : vector<2x512xf32>
    %99 = vector.extract_strided_slice %98 {offsets = [0, 0], sizes = [2, 128], strides = [1, 1]} : vector<2x512xf32> to vector<2x128xf32>
    %100 = arith.negf %99 : vector<2x128xf32>
    %101 = math.exp %100 : vector<2x128xf32>
    %cst_22 = arith.constant 1.000000e+00 : f32
    %102 = vector.broadcast %cst_22 : f32 to vector<2x128xf32>
    %103 = arith.addf %102, %101 : vector<2x128xf32>
    %104 = arith.divf %102, %103 : vector<2x128xf32>
    %105 = vector.extract_strided_slice %98 {offsets = [0, 128], sizes = [2, 128], strides = [1, 1]} : vector<2x512xf32> to vector<2x128xf32>
    %106 = arith.negf %105 : vector<2x128xf32>
    %107 = math.exp %106 : vector<2x128xf32>
    %cst_23 = arith.constant 1.000000e+00 : f32
    %108 = vector.broadcast %cst_23 : f32 to vector<2x128xf32>
    %109 = arith.addf %108, %107 : vector<2x128xf32>
    %110 = arith.divf %108, %109 : vector<2x128xf32>
    %111 = vector.extract_strided_slice %98 {offsets = [0, 256], sizes = [2, 128], strides = [1, 1]} : vector<2x512xf32> to vector<2x128xf32>
    %112 = math.tanh %111 : vector<2x128xf32>
    %113 = vector.extract_strided_slice %98 {offsets = [0, 384], sizes = [2, 128], strides = [1, 1]} : vector<2x512xf32> to vector<2x128xf32>
    %114 = arith.negf %113 : vector<2x128xf32>
    %115 = math.exp %114 : vector<2x128xf32>
    %cst_24 = arith.constant 1.000000e+00 : f32
    %116 = vector.broadcast %cst_24 : f32 to vector<2x128xf32>
    %117 = arith.addf %116, %115 : vector<2x128xf32>
    %118 = arith.divf %116, %117 : vector<2x128xf32>
    %119 = arith.mulf %110, %85 : vector<2x128xf32>
    %120 = arith.mulf %104, %112 : vector<2x128xf32>
    %121 = arith.addf %119, %120 : vector<2x128xf32>
    %122 = math.tanh %121 : vector<2x128xf32>
    %123 = arith.mulf %118, %122 : vector<2x128xf32>
    %cst_25 = arith.constant 0.000000e+00 : f32
    %124 = vector.broadcast %cst_25 : f32 to vector<2x128xf32>
    %125 = arith.maximumf %123, %124 : vector<2x128xf32>
    %126 = vector.extract_strided_slice %6 {offsets = [3, 0, 0], sizes = [1, 2, 512], strides = [1, 1, 1]} : vector<6x2x512xf32> to vector<1x2x512xf32>
    %127 = vector.shape_cast %126 : vector<1x2x512xf32> to vector<2x512xf32>
    %128 = vector.extract_strided_slice %6 {offsets = [2, 0, 0], sizes = [1, 2, 512], strides = [1, 1, 1]} : vector<6x2x512xf32> to vector<1x2x512xf32>
    %129 = vector.shape_cast %128 : vector<1x2x512xf32> to vector<2x512xf32>
    %130 = vector.shape_cast %12 : vector<1x512xi1> to vector<1x512xi1>
    %131 = vector.broadcast %130 : vector<1x512xi1> to vector<2x512xi1>
    %132 = arith.select %131, %127, %129 : vector<2x512xi1>, vector<2x512xf32>
    %cst_26 = arith.constant dense<0.000000e+00> : vector<2x512xf32>
    %133 = tpu.matmul %123, %7, %cst_26 {dimension_numbers = #tpu.dot_dimension_numbers<[1], [0], [0], [1], [0, 0, 1, 1], [], []>} : vector<2x128xf32>, vector<128x512xf32>, vector<2x512xf32> -> vector<2x512xf32>
    %134 = arith.addf %132, %133 : vector<2x512xf32>
    %135 = vector.extract_strided_slice %134 {offsets = [0, 0], sizes = [2, 128], strides = [1, 1]} : vector<2x512xf32> to vector<2x128xf32>
    %136 = arith.negf %135 : vector<2x128xf32>
    %137 = math.exp %136 : vector<2x128xf32>
    %cst_27 = arith.constant 1.000000e+00 : f32
    %138 = vector.broadcast %cst_27 : f32 to vector<2x128xf32>
    %139 = arith.addf %138, %137 : vector<2x128xf32>
    %140 = arith.divf %138, %139 : vector<2x128xf32>
    %141 = vector.extract_strided_slice %134 {offsets = [0, 128], sizes = [2, 128], strides = [1, 1]} : vector<2x512xf32> to vector<2x128xf32>
    %142 = arith.negf %141 : vector<2x128xf32>
    %143 = math.exp %142 : vector<2x128xf32>
    %cst_28 = arith.constant 1.000000e+00 : f32
    %144 = vector.broadcast %cst_28 : f32 to vector<2x128xf32>
    %145 = arith.addf %144, %143 : vector<2x128xf32>
    %146 = arith.divf %144, %145 : vector<2x128xf32>
    %147 = vector.extract_strided_slice %134 {offsets = [0, 256], sizes = [2, 128], strides = [1, 1]} : vector<2x512xf32> to vector<2x128xf32>
    %148 = math.tanh %147 : vector<2x128xf32>
    %149 = vector.extract_strided_slice %134 {offsets = [0, 384], sizes = [2, 128], strides = [1, 1]} : vector<2x512xf32> to vector<2x128xf32>
    %150 = arith.negf %149 : vector<2x128xf32>
    %151 = math.exp %150 : vector<2x128xf32>
    %cst_29 = arith.constant 1.000000e+00 : f32
    %152 = vector.broadcast %cst_29 : f32 to vector<2x128xf32>
    %153 = arith.addf %152, %151 : vector<2x128xf32>
    %154 = arith.divf %152, %153 : vector<2x128xf32>
    %155 = arith.mulf %146, %121 : vector<2x128xf32>
    %156 = arith.mulf %140, %148 : vector<2x128xf32>
    %157 = arith.addf %155, %156 : vector<2x128xf32>
    %158 = math.tanh %157 : vector<2x128xf32>
    %159 = arith.mulf %154, %158 : vector<2x128xf32>
    %cst_30 = arith.constant 0.000000e+00 : f32
    %160 = vector.broadcast %cst_30 : f32 to vector<2x128xf32>
    %161 = arith.maximumf %159, %160 : vector<2x128xf32>
    %162 = vector.extract_strided_slice %6 {offsets = [4, 0, 0], sizes = [1, 2, 512], strides = [1, 1, 1]} : vector<6x2x512xf32> to vector<1x2x512xf32>
    %163 = vector.shape_cast %162 : vector<1x2x512xf32> to vector<2x512xf32>
    %164 = vector.extract_strided_slice %6 {offsets = [1, 0, 0], sizes = [1, 2, 512], strides = [1, 1, 1]} : vector<6x2x512xf32> to vector<1x2x512xf32>
    %165 = vector.shape_cast %164 : vector<1x2x512xf32> to vector<2x512xf32>
    %166 = vector.shape_cast %12 : vector<1x512xi1> to vector<1x512xi1>
    %167 = vector.broadcast %166 : vector<1x512xi1> to vector<2x512xi1>
    %168 = arith.select %167, %163, %165 : vector<2x512xi1>, vector<2x512xf32>
    %cst_31 = arith.constant dense<0.000000e+00> : vector<2x512xf32>
    %169 = tpu.matmul %159, %7, %cst_31 {dimension_numbers = #tpu.dot_dimension_numbers<[1], [0], [0], [1], [0, 0, 1, 1], [], []>} : vector<2x128xf32>, vector<128x512xf32>, vector<2x512xf32> -> vector<2x512xf32>
    %170 = arith.addf %168, %169 : vector<2x512xf32>
    %171 = vector.extract_strided_slice %170 {offsets = [0, 0], sizes = [2, 128], strides = [1, 1]} : vector<2x512xf32> to vector<2x128xf32>
    %172 = arith.negf %171 : vector<2x128xf32>
    %173 = math.exp %172 : vector<2x128xf32>
    %cst_32 = arith.constant 1.000000e+00 : f32
    %174 = vector.broadcast %cst_32 : f32 to vector<2x128xf32>
    %175 = arith.addf %174, %173 : vector<2x128xf32>
    %176 = arith.divf %174, %175 : vector<2x128xf32>
    %177 = vector.extract_strided_slice %170 {offsets = [0, 128], sizes = [2, 128], strides = [1, 1]} : vector<2x512xf32> to vector<2x128xf32>
    %178 = arith.negf %177 : vector<2x128xf32>
    %179 = math.exp %178 : vector<2x128xf32>
    %cst_33 = arith.constant 1.000000e+00 : f32
    %180 = vector.broadcast %cst_33 : f32 to vector<2x128xf32>
    %181 = arith.addf %180, %179 : vector<2x128xf32>
    %182 = arith.divf %180, %181 : vector<2x128xf32>
    %183 = vector.extract_strided_slice %170 {offsets = [0, 256], sizes = [2, 128], strides = [1, 1]} : vector<2x512xf32> to vector<2x128xf32>
    %184 = math.tanh %183 : vector<2x128xf32>
    %185 = vector.extract_strided_slice %170 {offsets = [0, 384], sizes = [2, 128], strides = [1, 1]} : vector<2x512xf32> to vector<2x128xf32>
    %186 = arith.negf %185 : vector<2x128xf32>
    %187 = math.exp %186 : vector<2x128xf32>
    %cst_34 = arith.constant 1.000000e+00 : f32
    %188 = vector.broadcast %cst_34 : f32 to vector<2x128xf32>
    %189 = arith.addf %188, %187 : vector<2x128xf32>
    %190 = arith.divf %188, %189 : vector<2x128xf32>
    %191 = arith.mulf %182, %157 : vector<2x128xf32>
    %192 = arith.mulf %176, %184 : vector<2x128xf32>
    %193 = arith.addf %191, %192 : vector<2x128xf32>
    %194 = math.tanh %193 : vector<2x128xf32>
    %195 = arith.mulf %190, %194 : vector<2x128xf32>
    %cst_35 = arith.constant 0.000000e+00 : f32
    %196 = vector.broadcast %cst_35 : f32 to vector<2x128xf32>
    %197 = arith.maximumf %195, %196 : vector<2x128xf32>
    %198 = vector.extract_strided_slice %6 {offsets = [5, 0, 0], sizes = [1, 2, 512], strides = [1, 1, 1]} : vector<6x2x512xf32> to vector<1x2x512xf32>
    %199 = vector.shape_cast %198 : vector<1x2x512xf32> to vector<2x512xf32>
    %200 = vector.extract_strided_slice %6 {offsets = [0, 0, 0], sizes = [1, 2, 512], strides = [1, 1, 1]} : vector<6x2x512xf32> to vector<1x2x512xf32>
    %201 = vector.shape_cast %200 : vector<1x2x512xf32> to vector<2x512xf32>
    %202 = vector.shape_cast %12 : vector<1x512xi1> to vector<1x512xi1>
    %203 = vector.broadcast %202 : vector<1x512xi1> to vector<2x512xi1>
    %204 = arith.select %203, %199, %201 : vector<2x512xi1>, vector<2x512xf32>
    %cst_36 = arith.constant dense<0.000000e+00> : vector<2x512xf32>
    %205 = tpu.matmul %195, %7, %cst_36 {dimension_numbers = #tpu.dot_dimension_numbers<[1], [0], [0], [1], [0, 0, 1, 1], [], []>} : vector<2x128xf32>, vector<128x512xf32>, vector<2x512xf32> -> vector<2x512xf32>
    %206 = arith.addf %204, %205 : vector<2x512xf32>
    %207 = vector.extract_strided_slice %206 {offsets = [0, 0], sizes = [2, 128], strides = [1, 1]} : vector<2x512xf32> to vector<2x128xf32>
    %208 = arith.negf %207 : vector<2x128xf32>
    %209 = math.exp %208 : vector<2x128xf32>
    %cst_37 = arith.constant 1.000000e+00 : f32
    %210 = vector.broadcast %cst_37 : f32 to vector<2x128xf32>
    %211 = arith.addf %210, %209 : vector<2x128xf32>
    %212 = arith.divf %210, %211 : vector<2x128xf32>
    %213 = vector.extract_strided_slice %206 {offsets = [0, 128], sizes = [2, 128], strides = [1, 1]} : vector<2x512xf32> to vector<2x128xf32>
    %214 = arith.negf %213 : vector<2x128xf32>
    %215 = math.exp %214 : vector<2x128xf32>
    %cst_38 = arith.constant 1.000000e+00 : f32
    %216 = vector.broadcast %cst_38 : f32 to vector<2x128xf32>
    %217 = arith.addf %216, %215 : vector<2x128xf32>
    %218 = arith.divf %216, %217 : vector<2x128xf32>
    %219 = vector.extract_strided_slice %206 {offsets = [0, 256], sizes = [2, 128], strides = [1, 1]} : vector<2x512xf32> to vector<2x128xf32>
    %220 = math.tanh %219 : vector<2x128xf32>
    %221 = vector.extract_strided_slice %206 {offsets = [0, 384], sizes = [2, 128], strides = [1, 1]} : vector<2x512xf32> to vector<2x128xf32>
    %222 = arith.negf %221 : vector<2x128xf32>
    %223 = math.exp %222 : vector<2x128xf32>
    %cst_39 = arith.constant 1.000000e+00 : f32
    %224 = vector.broadcast %cst_39 : f32 to vector<2x128xf32>
    %225 = arith.addf %224, %223 : vector<2x128xf32>
    %226 = arith.divf %224, %225 : vector<2x128xf32>
    %227 = arith.mulf %218, %193 : vector<2x128xf32>
    %228 = arith.mulf %212, %220 : vector<2x128xf32>
    %229 = arith.addf %227, %228 : vector<2x128xf32>
    %230 = math.tanh %229 : vector<2x128xf32>
    %231 = arith.mulf %226, %230 : vector<2x128xf32>
    %cst_40 = arith.constant 0.000000e+00 : f32
    %232 = vector.broadcast %cst_40 : f32 to vector<2x128xf32>
    %233 = arith.maximumf %231, %232 : vector<2x128xf32>
    %234 = vector.shape_cast %15 : vector<1x128xi1> to vector<1x128xi1>
    %235 = vector.broadcast %234 : vector<1x128xi1> to vector<2x128xi1>
    %236 = arith.select %235, %53, %233 : vector<2x128xi1>, vector<2x128xf32>
    %237 = vector.shape_cast %15 : vector<1x128xi1> to vector<1x128xi1>
    %238 = vector.broadcast %237 : vector<1x128xi1> to vector<2x128xi1>
    %239 = arith.select %238, %89, %197 : vector<2x128xi1>, vector<2x128xf32>
    %240 = vector.shape_cast %15 : vector<1x128xi1> to vector<1x128xi1>
    %241 = vector.broadcast %240 : vector<1x128xi1> to vector<2x128xi1>
    %242 = arith.select %241, %125, %161 : vector<2x128xi1>, vector<2x128xf32>
    %243 = vector.shape_cast %15 : vector<1x128xi1> to vector<1x128xi1>
    %244 = vector.broadcast %243 : vector<1x128xi1> to vector<2x128xi1>
    %245 = arith.select %244, %161, %125 : vector<2x128xi1>, vector<2x128xf32>
    %246 = vector.shape_cast %15 : vector<1x128xi1> to vector<1x128xi1>
    %247 = vector.broadcast %246 : vector<1x128xi1> to vector<2x128xi1>
    %248 = arith.select %247, %197, %89 : vector<2x128xi1>, vector<2x128xf32>
    %249 = vector.shape_cast %15 : vector<1x128xi1> to vector<1x128xi1>
    %250 = vector.broadcast %249 : vector<1x128xi1> to vector<2x128xi1>
    %251 = arith.select %250, %233, %53 : vector<2x128xi1>, vector<2x128xf32>
    %252 = vector.shape_cast %236 : vector<2x128xf32> to vector<2x1x128xf32>
    %253 = vector.shape_cast %239 : vector<2x128xf32> to vector<2x1x128xf32>
    %254 = vector.shape_cast %242 : vector<2x128xf32> to vector<2x1x128xf32>
    %255 = vector.shape_cast %245 : vector<2x128xf32> to vector<2x1x128xf32>
    %256 = vector.shape_cast %248 : vector<2x128xf32> to vector<2x1x128xf32>
    %257 = vector.shape_cast %251 : vector<2x128xf32> to vector<2x1x128xf32>
    %258 = tpu.concatenate %252, %253, %254, %255, %256, %257 in 1 : vector<2x1x128xf32>, vector<2x1x128xf32>, vector<2x1x128xf32>, vector<2x1x128xf32>, vector<2x1x128xf32>, vector<2x1x128xf32> -> vector<2x6x128xf32>
    %c0_41 = arith.constant 0 : index
    %c0_42 = arith.constant 0 : index
    %259 = vector.load %arg5[%c0_41, %c0_42] : memref<128x6xf32, #tpu.memory_space<vmem>>, vector<128x6xf32>
    %cst_43 = arith.constant dense<0.000000e+00> : vector<2x6x6xf32>
    %260 = tpu.matmul %258, %259, %cst_43 {dimension_numbers = #tpu.dot_dimension_numbers<[2], [0], [0, 1], [1], [0, 0, 0, 1, 1, 1], [], []>} : vector<2x6x128xf32>, vector<128x6xf32>, vector<2x6x6xf32> -> vector<2x6x6xf32>
    %c0_44 = arith.constant 0 : index
    %c0_45 = arith.constant 0 : index
    %261 = vector.load %arg6[%c0_44, %c0_45] : memref<1x6xf32, #tpu.memory_space<vmem>>, vector<1x6xf32>
    %262 = vector.shape_cast %261 : vector<1x6xf32> to vector<1x1x6xf32>
    %263 = vector.broadcast %262 : vector<1x1x6xf32> to vector<2x6x6xf32>
    %264 = arith.addf %260, %263 : vector<2x6x6xf32>
    %265 = math.tanh %264 : vector<2x6x6xf32>
    %c0_46 = arith.constant 0 : index
    %c0_47 = arith.constant 0 : index
    %266 = vector.load %arg7[%c0_46, %c0_47] : memref<6x6xf32, #tpu.memory_space<vmem>>, vector<6x6xf32>
    %cst_48 = arith.constant dense<0.000000e+00> : vector<2x6x6xf32>
    %267 = tpu.matmul %265, %266, %cst_48 {dimension_numbers = #tpu.dot_dimension_numbers<[2], [0], [0, 1], [1], [0, 0, 0, 1, 1, 1], [], []>} : vector<2x6x6xf32>, vector<6x6xf32>, vector<2x6x6xf32> -> vector<2x6x6xf32>
    %c0_49 = arith.constant 0 : index
    %c0_50 = arith.constant 0 : index
    %268 = vector.load %arg8[%c0_49, %c0_50] : memref<1x6xf32, #tpu.memory_space<vmem>>, vector<1x6xf32>
    %269 = vector.shape_cast %268 : vector<1x6xf32> to vector<1x1x6xf32>
    %270 = vector.broadcast %269 : vector<1x1x6xf32> to vector<2x6x6xf32>
    %271 = arith.addf %267, %270 : vector<2x6x6xf32>
    %272 = arith.negf %271 : vector<2x6x6xf32>
    %273 = math.exp %272 : vector<2x6x6xf32>
    %cst_51 = arith.constant 1.000000e+00 : f32
    %274 = vector.broadcast %cst_51 : f32 to vector<2x6x6xf32>
    %275 = arith.addf %274, %273 : vector<2x6x6xf32>
    %276 = arith.divf %274, %275 : vector<2x6x6xf32>
    %cst_52 = arith.constant dense<0.000000e+00> : vector<2x6x128xf32>
    %277 = tpu.matmul %276, %258, %cst_52 {dimension_numbers = #tpu.dot_dimension_numbers<[1], [1], [2], [2], [0, 0, 0, 2, 1, 2], [0], [0]>} : vector<2x6x6xf32>, vector<2x6x128xf32>, vector<2x6x128xf32> -> vector<2x6x128xf32>
    %cst_53 = arith.constant 0.000000e+00 : f32
    %278 = vector.broadcast %cst_53 : f32 to vector<2x6x128xf32>
    %279 = arith.maximumf %277, %278 : vector<2x6x128xf32>
    %c0_54 = arith.constant 0 : index
    %c0_55 = arith.constant 0 : index
    %280 = vector.load %arg9[%c0_54, %c0_55] : memref<128x3xf32, #tpu.memory_space<vmem>>, vector<128x3xf32>
    %cst_56 = arith.constant dense<0.000000e+00> : vector<2x6x3xf32>
    %281 = tpu.matmul %279, %280, %cst_56 {dimension_numbers = #tpu.dot_dimension_numbers<[2], [0], [0, 1], [1], [0, 0, 0, 1, 1, 1], [], []>} : vector<2x6x128xf32>, vector<128x3xf32>, vector<2x6x3xf32> -> vector<2x6x3xf32>
    %c0_57 = arith.constant 0 : index
    %c0_58 = arith.constant 0 : index
    %282 = vector.load %arg10[%c0_57, %c0_58] : memref<1x3xf32, #tpu.memory_space<vmem>>, vector<1x3xf32>
    %283 = vector.shape_cast %282 : vector<1x3xf32> to vector<1x1x3xf32>
    %284 = vector.broadcast %283 : vector<1x1x3xf32> to vector<2x6x3xf32>
    %285 = arith.addf %281, %284 : vector<2x6x3xf32>
    %cst_59 = arith.constant dense<0xFF800000> : vector<2x6xf32>
    %286 = vector.multi_reduction <maximumf>, %285, %cst_59 [2] : vector<2x6x3xf32> to vector<2x6xf32>
    %287 = vector.shape_cast %286 : vector<2x6xf32> to vector<2x6x1xf32>
    %288 = vector.broadcast %287 : vector<2x6x1xf32> to vector<2x6x3xf32>
    %289 = arith.subf %285, %288 : vector<2x6x3xf32>
    %290 = math.exp %289 : vector<2x6x3xf32>
    %cst_60 = arith.constant dense<0.000000e+00> : vector<2x6xf32>
    %291 = vector.multi_reduction <add>, %290, %cst_60 [2] : vector<2x6x3xf32> to vector<2x6xf32>
    %292 = vector.shape_cast %291 : vector<2x6xf32> to vector<2x6x1xf32>
    %293 = math.log %292 : vector<2x6x1xf32>
    %294 = vector.broadcast %293 : vector<2x6x1xf32> to vector<2x6x3xf32>
    %295 = arith.subf %289, %294 : vector<2x6x3xf32>
    %c0_61 = arith.constant 0 : index
    %c0_62 = arith.constant 0 : index
    %c0_63 = arith.constant 0 : index
    %296 = vector.load %arg11[%c0_61, %c0_62, %c0_63] : memref<2x6x3xf32, #tpu.memory_space<vmem>>, vector<2x6x3xf32>
    tpu.vector_store %arg11[%c0_61, %c0_62, %c0_63], %295 {strides = array<i32>} : memref<2x6x3xf32, #tpu.memory_space<vmem>>, vector<2x6x3xf32>,
    return
  }
  func.func @transform_0(%arg0: i32) -> (i32, i32, i32) {
    %c0_i32 = arith.constant 0 : i32
    %c0_i32_0 = arith.constant 0 : i32
    %c0_i32_1 = arith.constant 0 : i32
    return %c0_i32, %arg0, %c0_i32_0 : i32, i32, i32
  }
  func.func @transform_1(%arg0: i32) -> (i32, i32) {
    %c0_i32 = arith.constant 0 : i32
    %c0_i32_0 = arith.constant 0 : i32
    %c0_i32_1 = arith.constant 0 : i32
    return %c0_i32, %c0_i32_0 : i32, i32
  }
  func.func @transform_2(%arg0: i32) -> (i32, i32) {
    %c0_i32 = arith.constant 0 : i32
    %c0_i32_0 = arith.constant 0 : i32
    %c0_i32_1 = arith.constant 0 : i32
    return %c0_i32, %c0_i32_0 : i32, i32
  }
  func.func @transform_3(%arg0: i32) -> (i32, i32) {
    %c0_i32 = arith.constant 0 : i32
    %c0_i32_0 = arith.constant 0 : i32
    %c0_i32_1 = arith.constant 0 : i32
    return %c0_i32, %c0_i32_0 : i32, i32
  }
  func.func @transform_4(%arg0: i32) -> (i32, i32) {
    %c0_i32 = arith.constant 0 : i32
    %c0_i32_0 = arith.constant 0 : i32
    %c0_i32_1 = arith.constant 0 : i32
    return %c0_i32, %c0_i32_0 : i32, i32
  }
  func.func @transform_5(%arg0: i32) -> (i32, i32) {
    %c0_i32 = arith.constant 0 : i32
    %c0_i32_0 = arith.constant 0 : i32
    %c0_i32_1 = arith.constant 0 : i32
    return %c0_i32, %c0_i32_0 : i32, i32
  }
  func.func @transform_6(%arg0: i32) -> (i32, i32) {
    %c0_i32 = arith.constant 0 : i32
    %c0_i32_0 = arith.constant 0 : i32
    %c0_i32_1 = arith.constant 0 : i32
    return %c0_i32, %c0_i32_0 : i32, i32
  }
  func.func @transform_7(%arg0: i32) -> (i32, i32) {
    %c0_i32 = arith.constant 0 : i32
    %c0_i32_0 = arith.constant 0 : i32
    %c0_i32_1 = arith.constant 0 : i32
    return %c0_i32, %c0_i32_0 : i32, i32
  }
  func.func @transform_8(%arg0: i32) -> (i32, i32) {
    %c0_i32 = arith.constant 0 : i32
    %c0_i32_0 = arith.constant 0 : i32
    %c0_i32_1 = arith.constant 0 : i32
    return %c0_i32, %c0_i32_0 : i32, i32
  }
  func.func @transform_9(%arg0: i32) -> (i32, i32) {
    %c0_i32 = arith.constant 0 : i32
    %c0_i32_0 = arith.constant 0 : i32
    %c0_i32_1 = arith.constant 0 : i32
    return %c0_i32, %c0_i32_0 : i32, i32
  }
  func.func @transform_10(%arg0: i32) -> (i32, i32, i32) {
    %c0_i32 = arith.constant 0 : i32
    %c0_i32_0 = arith.constant 0 : i32
    %c0_i32_1 = arith.constant 0 : i32
    return %arg0, %c0_i32, %c0_i32_0 : i32, i32, i32
  }
}

</mosaic_0001>

<llo_original>
// kernel: tpu_custom_call.1
$region0: #{tpu_custom_call.1}
  #allocation0 [shape = 'u32[]', space=smem, size = 0x4, offset = 0x4, fixed_abs, tag = 'smem constant byte address 0x4 - core index']
  #allocation1 [shape = 'u32[144,128]{1,0:T(1,128)}', space=vmem, size = 0x12000, scoped, tag = 'internal scratch']
  %s0 = inlined_call_operand.vmem [shape: f32[6,2,300], index: 0, kind: input, shape index: {}]
  %s1 = inlined_call_operand.hbm [shape: f32[300,512], index: 1, kind: input, shape index: {}]
  %s2 = inlined_call_operand.vmem [shape: f32[1,512], index: 2, kind: input, shape index: {}]
  %s3 = inlined_call_operand.hbm [shape: f32[128,512], index: 3, kind: input, shape index: {}]
  %s4 = inlined_call_operand.vmem [shape: f32[128,6], index: 4, kind: input, shape index: {}]
  %s5 = inlined_call_operand.vmem [shape: f32[1,6], index: 5, kind: input, shape index: {}]
  %s6 = inlined_call_operand.vmem [shape: f32[6,6], index: 6, kind: input, shape index: {}]
  %s7 = inlined_call_operand.vmem [shape: f32[1,6], index: 7, kind: input, shape index: {}]
  %s8 = inlined_call_operand.vmem [shape: f32[128,3], index: 8, kind: input, shape index: {}]
  %s9 = inlined_call_operand.vmem [shape: f32[1,3], index: 9, kind: input, shape index: {}]
  %s10 = inlined_call_operand.vmem [shape: f32[2,6,3], index: 10, kind: output, shape index: {}]
  %s11 = sld [smem:[#allocation0]]
  $region58: #{tpu_custom_call.1} parent=0
    _
  %s13 = ssub.s32 1, %s11
  %s14 = scalar_select 0, %s13, %s11
  $region1: #{tpu_custom_call.1} parent=0
    #allocation2 [shape = 'u8[622592]{0}', space=vmem, size = 0x98000, scoped, tag = 'input window, operand 1, single buffered']
    #allocation3 [shape = 's32[1]{0}', space=sflag, size = 0x4, scoped, tag = 'scoped memory for tpu_custom_call.1']
    #allocation4 [shape = 'u8[262144]{0}', space=vmem, size = 0x40000, scoped, tag = 'input window, operand 3, single buffered']
    #allocation5 [shape = 's32[1]{0}', space=sflag, size = 0x4, scoped, tag = 'scoped memory for tpu_custom_call.1']
    %15 = vsyncpa [#allocation3], 0
    %16 = vsyncpa [#allocation5], 0
    // Predicated region
    $region2: #{tpu_custom_call.1} parent=1 // pred_check
      _
    $region3: #{tpu_custom_call.1} parent=1 // pred_check_branch
      %18 = sbr.rel (0) target = $region5
    $region4: #{tpu_custom_call.1} parent=1 // pred_region
      _
    $region5: #{tpu_custom_call.1} parent=1 // pred_fallthru
      _
    // Predicated region
    $region6: #{tpu_custom_call.1} parent=1 // pred_check
      _
    $region7: #{tpu_custom_call.1} parent=1 // pred_check_branch
      %20 = sbr.rel (0) target = $region9
    $region8: #{tpu_custom_call.1} parent=1 // pred_region
      %s22 = ssub.s32 19456, 19456
      %23 = vsyncadd [#allocation3], %s22
      %s24 = sshll.u32 [#allocation2], 4
      %s25 = int_to_ptr.vmem [resolvable:$true] %s24
      %30 = dma.hbm_to_vmem [thread:$0]  %s1, 19456, %s25, [#allocation3], 512, 512, 32
    $region9: #{tpu_custom_call.1} parent=1 // pred_fallthru
      _
    // Predicated region
    $region10: #{tpu_custom_call.1} parent=1 // pred_check
      _
    $region11: #{tpu_custom_call.1} parent=1 // pred_check_branch
      %32 = sbr.rel (0) target = $region13
    $region12: #{tpu_custom_call.1} parent=1 // pred_region
      _
    $region13: #{tpu_custom_call.1} parent=1 // pred_fallthru
      _
    // Predicated region
    $region14: #{tpu_custom_call.1} parent=1 // pred_check
      _
    $region15: #{tpu_custom_call.1} parent=1 // pred_check_branch
      %34 = sbr.rel (0) target = $region17
    $region16: #{tpu_custom_call.1} parent=1 // pred_region
      %s36 = ssub.s32 8192, 8192
      %37 = vsyncadd [#allocation5], %s36
      %s38 = sshll.u32 [#allocation4], 4
      %s39 = int_to_ptr.vmem [resolvable:$true] %s38
      %44 = dma.hbm_to_vmem [thread:$0]  %s3, 8192, %s39, [#allocation5], 512, 512, 32
    $region17: #{tpu_custom_call.1} parent=1 // pred_fallthru
      _
    // Predicated region
    $region18: #{tpu_custom_call.1} parent=1 // pred_check
      _
    $region19: #{tpu_custom_call.1} parent=1 // pred_check_branch
      %46 = sbr.rel (0) target = $region21
    $region20: #{tpu_custom_call.1} parent=1 // pred_region
      _
    $region21: #{tpu_custom_call.1} parent=1 // pred_fallthru
      _
    // Predicated region
    $region22: #{tpu_custom_call.1} parent=1 // pred_check
      _
    $region23: #{tpu_custom_call.1} parent=1 // pred_check_branch
      %48 = sbr.rel (0) target = $region25
    $region24: #{tpu_custom_call.1} parent=1 // pred_region
      _
    $region25: #{tpu_custom_call.1} parent=1 // pred_fallthru
      _
    // Predicated region
    $region26: #{tpu_custom_call.1} parent=1 // pred_check
      _
    $region27: #{tpu_custom_call.1} parent=1 // pred_check_branch
      %50 = sbr.rel (0) target = $region29
    $region28: #{tpu_custom_call.1} parent=1 // pred_region
      _
    $region29: #{tpu_custom_call.1} parent=1 // pred_fallthru
      _
    // Predicated region
    $region30: #{tpu_custom_call.1} parent=1 // pred_check
      _
    $region31: #{tpu_custom_call.1} parent=1 // pred_check_branch
      %52 = sbr.rel (0) target = $region33
    $region32: #{tpu_custom_call.1} parent=1 // pred_region
      _
    $region33: #{tpu_custom_call.1} parent=1 // pred_fallthru
      _
    // Predicated region
    $region34: #{tpu_custom_call.1} parent=1 // pred_check
      _
    $region35: #{tpu_custom_call.1} parent=1 // pred_check_branch
      %54 = sbr.rel (0) target = $region37
    $region36: #{tpu_custom_call.1} parent=1 // pred_region
      _
    $region37: #{tpu_custom_call.1} parent=1 // pred_fallthru
      _
    // Predicated region
    $region38: #{tpu_custom_call.1} parent=1 // pred_check
      _
    $region39: #{tpu_custom_call.1} parent=1 // pred_check_branch
      %56 = sbr.rel (0) target = $region41
    $region40: #{tpu_custom_call.1} parent=1 // pred_region
      _
    $region41: #{tpu_custom_call.1} parent=1 // pred_fallthru
      _
    // Predicated region
    $region42: #{tpu_custom_call.1} parent=1 // pred_check
      _
    $region43: #{tpu_custom_call.1} parent=1 // pred_check_branch
      %58 = sbr.rel (0) target = $region45
    $region44: #{tpu_custom_call.1} parent=1 // pred_region
      %59 = dma.done [#allocation3], 19456
    $region45: #{tpu_custom_call.1} parent=1 // pred_fallthru
      _
    // Predicated region
    $region46: #{tpu_custom_call.1} parent=1 // pred_check
      _
    $region47: #{tpu_custom_call.1} parent=1 // pred_check_branch
      %61 = sbr.rel (0) target = $region49
    $region48: #{tpu_custom_call.1} parent=1 // pred_region
      %62 = dma.done [#allocation5], 8192
    $region49: #{tpu_custom_call.1} parent=1 // pred_fallthru
      _
    %v63 = vld [vmem:[%s0] sm:$0x3f]
    %v64 = vld [vmem:[%s0 + $0x6] sm:$0x3f]
    %v65 = vld [vmem:[%s0 + $0xc] sm:$0x3f]
    %v66 = vld [vmem:[%s0 + $0x12] sm:$0x3f]
    %v67 = vld [vmem:[%s0 + $0x18] sm:$0x3f]
    %v68 = vld [vmem:[%s0 + $0x1e] sm:$0x3f]
    %v69 = vld [vmem:[#allocation2] sm:$0xff]
    %v70 = vld [vmem:[#allocation2 + $0x8] sm:$0xff]
    %v71 = vld [vmem:[#allocation2 + $0x10] sm:$0xff]
    %v72 = vld [vmem:[#allocation2 + $0x18] sm:$0xff]
    %v73 = vld [vmem:[#allocation2 + $0x20] sm:$0xff]
    %v74 = vld [vmem:[#allocation2 + $0x28] sm:$0xff]
    %v75 = vld [vmem:[#allocation2 + $0x30] sm:$0xff]
    %v76 = vld [vmem:[#allocation2 + $0x38] sm:$0xff]
    %v77 = vld [vmem:[#allocation2 + $0x40] sm:$0xff]
    %v78 = vld [vmem:[#allocation2 + $0x48] sm:$0xff]
    %v79 = vld [vmem:[#allocation2 + $0x50] sm:$0xff]
    %v80 = vld [vmem:[#allocation2 + $0x58] sm:$0xff]
    %v81 = vld [vmem:[#allocation2 + $0x60] sm:$0xff]
    %v82 = vld [vmem:[#allocation2 + $0x68] sm:$0xff]
    %v83 = vld [vmem:[#allocation2 + $0x70] sm:$0xff]
    %v84 = vld [vmem:[#allocation2 + $0x78] sm:$0xff]
    %v85 = vld [vmem:[#allocation2 + $0x80] sm:$0xff]
    %v86 = vld [vmem:[#allocation2 + $0x88] sm:$0xff]
    %v87 = vld [vmem:[#allocation2 + $0x90] sm:$0xff]
    %v88 = vld [vmem:[#allocation2 + $0x98] sm:$0xff]
    %v89 = vld [vmem:[#allocation2 + $0xa0] sm:$0xff]
    %v90 = vld [vmem:[#allocation2 + $0xa8] sm:$0xff]
    %v91 = vld [vmem:[#allocation2 + $0xb0] sm:$0xff]
    %v92 = vld [vmem:[#allocation2 + $0xb8] sm:$0xff]
    %v93 = vld [vmem:[#allocation2 + $0xc0] sm:$0xff]
    %v94 = vld [vmem:[#allocation2 + $0xc8] sm:$0xff]
    %v95 = vld [vmem:[#allocation2 + $0xd0] sm:$0xff]
    %v96 = vld [vmem:[#allocation2 + $0xd8] sm:$0xff]
    %v97 = vld [vmem:[#allocation2 + $0xe0] sm:$0xff]
    %v98 = vld [vmem:[#allocation2 + $0xe8] sm:$0xff]
    %v99 = vld [vmem:[#allocation2 + $0xf0] sm:$0xff]
    %v100 = vld [vmem:[#allocation2 + $0xf8] sm:$0xff]
    %v101 = vld [vmem:[#allocation2 + $0x100] sm:$0xff]
    %v102 = vld [vmem:[#allocation2 + $0x108] sm:$0xff]
    %v103 = vld [vmem:[#allocation2 + $0x110] sm:$0xff]
    %v104 = vld [vmem:[#allocation2 + $0x118] sm:$0xff]
    %v105 = vld [vmem:[#allocation2 + $0x120] sm:$0xff]
    %v106 = vld [vmem:[#allocation2 + $0x128] sm:$0xff]
    %v107 = vld [vmem:[#allocation2 + $0x130] sm:$0xff]
    %v108 = vld [vmem:[#allocation2 + $0x138] sm:$0xff]
    %v109 = vld [vmem:[#allocation2 + $0x140] sm:$0xff]
    %v110 = vld [vmem:[#allocation2 + $0x148] sm:$0xff]
    %v111 = vld [vmem:[#allocation2 + $0x150] sm:$0xff]
    %v112 = vld [vmem:[#allocation2 + $0x158] sm:$0xff]
    %v113 = vld [vmem:[#allocation2 + $0x160] sm:$0xff]
    %v114 = vld [vmem:[#allocation2 + $0x168] sm:$0xff]
    %v115 = vld [vmem:[#allocation2 + $0x170] sm:$0xff]
    %v116 = vld [vmem:[#allocation2 + $0x178] sm:$0xff]
    %v117 = vld [vmem:[#allocation2 + $0x180] sm:$0xff]
    %v118 = vld [vmem:[#allocation2 + $0x188] sm:$0xff]
    %v119 = vld [vmem:[#allocation2 + $0x190] sm:$0xff]
    %v120 = vld [vmem:[#allocation2 + $0x198] sm:$0xff]
    %v121 = vld [vmem:[#allocation2 + $0x1a0] sm:$0xff]
    %v122 = vld [vmem:[#allocation2 + $0x1a8] sm:$0xff]
    %v123 = vld [vmem:[#allocation2 + $0x1b0] sm:$0xff]
    %v124 = vld [vmem:[#allocation2 + $0x1b8] sm:$0xff]
    %v125 = vld [vmem:[#allocation2 + $0x1c0] sm:$0xff]
    %v126 = vld [vmem:[#allocation2 + $0x1c8] sm:$0xff]
    %v127 = vld [vmem:[#allocation2 + $0x1d0] sm:$0xff]
    %v128 = vld [vmem:[#allocation2 + $0x1d8] sm:$0xff]
    %v129 = vld [vmem:[#allocation2 + $0x1e0] sm:$0xff]
    %v130 = vld [vmem:[#allocation2 + $0x1e8] sm:$0xff]
    %v131 = vld [vmem:[#allocation2 + $0x1f0] sm:$0xff]
    %v132 = vld [vmem:[#allocation2 + $0x1f8] sm:$0xff]
    %v133 = vld [vmem:[#allocation2 + $0x200] sm:$0xff]
    %v134 = vld [vmem:[#allocation2 + $0x208] sm:$0xff]
    %v135 = vld [vmem:[#allocation2 + $0x210] sm:$0xff]
    %v136 = vld [vmem:[#allocation2 + $0x218] sm:$0xff]
    %v137 = vld [vmem:[#allocation2 + $0x220] sm:$0xff]
    %v138 = vld [vmem:[#allocation2 + $0x228] sm:$0xff]
    %v139 = vld [vmem:[#allocation2 + $0x230] sm:$0xff]
    %v140 = vld [vmem:[#allocation2 + $0x238] sm:$0xff]
    %v141 = vld [vmem:[#allocation2 + $0x240] sm:$0xff]
    %v142 = vld [vmem:[#allocation2 + $0x248] sm:$0xff]
    %v143 = vld [vmem:[#allocation2 + $0x250] sm:$0xff]
    %v144 = vld [vmem:[#allocation2 + $0x258] sm:$0xff]
    %v145 = vld [vmem:[#allocation2 + $0x260] sm:$0xff]
    %v146 = vld [vmem:[#allocation2 + $0x268] sm:$0xff]
    %v147 = vld [vmem:[#allocation2 + $0x270] sm:$0xff]
    %v148 = vld [vmem:[#allocation2 + $0x278] sm:$0xff]
    %v149 = vld [vmem:[#allocation2 + $0x280] sm:$0xff]
    %v150 = vld [vmem:[#allocation2 + $0x288] sm:$0xff]
    %v151 = vld [vmem:[#allocation2 + $0x290] sm:$0xff]
    %v152 = vld [vmem:[#allocation2 + $0x298] sm:$0xff]
    %v153 = vld [vmem:[#allocation2 + $0x2a0] sm:$0xff]
    %v154 = vld [vmem:[#allocation2 + $0x2a8] sm:$0xff]
    %v155 = vld [vmem:[#allocation2 + $0x2b0] sm:$0xff]
    %v156 = vld [vmem:[#allocation2 + $0x2b8] sm:$0xff]
    %v157 = vld [vmem:[#allocation2 + $0x2c0] sm:$0xff]
    %v158 = vld [vmem:[#allocation2 + $0x2c8] sm:$0xff]
    %v159 = vld [vmem:[#allocation2 + $0x2d0] sm:$0xff]
    %v160 = vld [vmem:[#allocation2 + $0x2d8] sm:$0xff]
    %v161 = vld [vmem:[#allocation2 + $0x2e0] sm:$0xff]
    %v162 = vld [vmem:[#allocation2 + $0x2e8] sm:$0xff]
    %v163 = vld [vmem:[#allocation2 + $0x2f0] sm:$0xff]
    %v164 = vld [vmem:[#allocation2 + $0x2f8] sm:$0xff]
    %v165 = vld [vmem:[#allocation2 + $0x300] sm:$0xff]
    %v166 = vld [vmem:[#allocation2 + $0x308] sm:$0xff]
    %v167 = vld [vmem:[#allocation2 + $0x310] sm:$0xff]
    %v168 = vld [vmem:[#allocation2 + $0x318] sm:$0xff]
    %v169 = vld [vmem:[#allocation2 + $0x320] sm:$0xff]
    %v170 = vld [vmem:[#allocation2 + $0x328] sm:$0xff]
    %v171 = vld [vmem:[#allocation2 + $0x330] sm:$0xff]
    %v172 = vld [vmem:[#allocation2 + $0x338] sm:$0xff]
    %v173 = vld [vmem:[#allocation2 + $0x340] sm:$0xff]
    %v174 = vld [vmem:[#allocation2 + $0x348] sm:$0xff]
    %v175 = vld [vmem:[#allocation2 + $0x350] sm:$0xff]
    %v176 = vld [vmem:[#allocation2 + $0x358] sm:$0xff]
    %v177 = vld [vmem:[#allocation2 + $0x360] sm:$0xff]
    %v178 = vld [vmem:[#allocation2 + $0x368] sm:$0xff]
    %v179 = vld [vmem:[#allocation2 + $0x370] sm:$0xff]
    %v180 = vld [vmem:[#allocation2 + $0x378] sm:$0xff]
    %v181 = vld [vmem:[#allocation2 + $0x380] sm:$0xff]
    %v182 = vld [vmem:[#allocation2 + $0x388] sm:$0xff]
    %v183 = vld [vmem:[#allocation2 + $0x390] sm:$0xff]
    %v184 = vld [vmem:[#allocation2 + $0x398] sm:$0xff]
    %v185 = vld [vmem:[#allocation2 + $0x3a0] sm:$0xff]
    %v186 = vld [vmem:[#allocation2 + $0x3a8] sm:$0xff]
    %v187 = vld [vmem:[#allocation2 + $0x3b0] sm:$0xff]
    %v188 = vld [vmem:[#allocation2 + $0x3b8] sm:$0xff]
    %v189 = vld [vmem:[#allocation2 + $0x3c0] sm:$0xff]
    %v190 = vld [vmem:[#allocation2 + $0x3c8] sm:$0xff]
    %v191 = vld [vmem:[#allocation2 + $0x3d0] sm:$0xff]
    %v192 = vld [vmem:[#allocation2 + $0x3d8] sm:$0xff]
    %v193 = vld [vmem:[#allocation2 + $0x3e0] sm:$0xff]
    %v194 = vld [vmem:[#allocation2 + $0x3e8] sm:$0xff]
    %v195 = vld [vmem:[#allocation2 + $0x3f0] sm:$0xff]
    %v196 = vld [vmem:[#allocation2 + $0x3f8] sm:$0xff]
    %v197 = vld [vmem:[#allocation2 + $0x400] sm:$0xff]
    %v198 = vld [vmem:[#allocation2 + $0x408] sm:$0xff]
    %v199 = vld [vmem:[#allocation2 + $0x410] sm:$0xff]
    %v200 = vld [vmem:[#allocation2 + $0x418] sm:$0xff]
    %v201 = vld [vmem:[#allocation2 + $0x420] sm:$0xff]
    %v202 = vld [vmem:[#allocation2 + $0x428] sm:$0xff]
    %v203 = vld [vmem:[#allocation2 + $0x430] sm:$0xff]
    %v204 = vld [vmem:[#allocation2 + $0x438] sm:$0xff]
    %v205 = vld [vmem:[#allocation2 + $0x440] sm:$0xff]
    %v206 = vld [vmem:[#allocation2 + $0x448] sm:$0xff]
    %v207 = vld [vmem:[#allocation2 + $0x450] sm:$0xff]
    %v208 = vld [vmem:[#allocation2 + $0x458] sm:$0xff]
    %v209 = vld [vmem:[#allocation2 + $0x460] sm:$0xff]
    %v210 = vld [vmem:[#allocation2 + $0x468] sm:$0xff]
    %v211 = vld [vmem:[#allocation2 + $0x470] sm:$0xff]
    %v212 = vld [vmem:[#allocation2 + $0x478] sm:$0xff]
    %v213 = vld [vmem:[#allocation2 + $0x480] sm:$0xff]
    %v214 = vld [vmem:[#allocation2 + $0x488] sm:$0xff]
    %v215 = vld [vmem:[#allocation2 + $0x490] sm:$0xff]
    %v216 = vld [vmem:[#allocation2 + $0x498] sm:$0xff]
    %v217 = vld [vmem:[#allocation2 + $0x4a0] sm:$0xf]
    %v218 = vld [vmem:[#allocation2 + $0x4a8] sm:$0xf]
    %v219 = vld [vmem:[#allocation2 + $0x4b0] sm:$0xf]
    %v220 = vld [vmem:[#allocation2 + $0x4b8] sm:$0xf]
    %v221 = vld [vmem:[%s2] sm:$0xf]
    %v223 = vlaneseq
    %v224 = vshrl.u32 %v223, 7
    %v225 = vsub.s32 0, %v224
    %v226 = vrot.slane %v221, %v225
    %v227 = vlaneseq
    %v228 = vshrl.u32 %v227, 7
    %v229 = vsub.s32 1, %v228
    %v230 = vrot.slane %v221, %v229
    %v231 = vlaneseq
    %v232 = vshrl.u32 %v231, 7
    %v233 = vsub.s32 2, %v232
    %v234 = vrot.slane %v221, %v233
    %v235 = vlaneseq
    %v236 = vshrl.u32 %v235, 7
    %v237 = vsub.s32 3, %v236
    %v238 = vrot.slane %v221, %v237
    %v239 = vcombine.low %v226, %v230
    %v240 = vcombine.low %v234, %v238
    %v242 = vunpack.c.l.s4 1983009808
    %v243 = vunpack.c.0.s8 %v242
    %v244 = vlaneseq
    %v245 = vshrl.u32 %v244, 7
    %v246 = vsub.s32 %v243, %v245
    %v247 = vrot.slane %v239, %v246
    %v249 = vunpack.c.l.s4 1983009808
    %v250 = vunpack.c.0.s8 %v249
    %v251 = vlaneseq
    %v252 = vshrl.u32 %v251, 7
    %v253 = vsub.s32 %v250, %v252
    %v254 = vrot.slane %v240, %v253
    %v255 = vcombine.low %v247, %v254
    %v262 = vcombine.low %v63, %v64
    %v263 = vcombine.high %v63, %v64
    %v264 = vcombine.low %v65, %v66
    %v265 = vcombine.high %v65, %v66
    %v267 = vunpack.c.l.s4 1983009808
    %v268 = vunpack.c.0.s8 %v267
    %v269 = vlaneseq
    %v270 = vshrl.u32 %v269, 7
    %v271 = vsub.s32 %v268, %v270
    %v272 = vrot.slane %v262, %v271
    %v274 = vunpack.c.l.s4 1983009808
    %v275 = vunpack.c.0.s8 %v274
    %v276 = vlaneseq
    %v277 = vshrl.u32 %v276, 7
    %v278 = vsub.s32 %v275, %v277
    %v279 = vrot.slane %v263, %v278
    %v281 = vunpack.c.l.s4 1983009808
    %v282 = vunpack.c.0.s8 %v281
    %v283 = vlaneseq
    %v284 = vshrl.u32 %v283, 7
    %v285 = vsub.s32 %v282, %v284
    %v286 = vrot.slane %v264, %v285
    %v288 = vunpack.c.l.s4 1983009808
    %v289 = vunpack.c.0.s8 %v288
    %v290 = vlaneseq
    %v291 = vshrl.u32 %v290, 7
    %v292 = vsub.s32 %v289, %v291
    %v293 = vrot.slane %v265, %v292
    %v294 = vcombine.low %v272, %v286
    %v295 = vcombine.high %v272, %v286
    %v296 = vcombine.low %v279, %v293
    %v297 = vcombine.low %v67, %v68
    %v298 = vcombine.high %v67, %v68
    %v300 = vunpack.c.l.s4 1983009808
    %v301 = vunpack.c.0.s8 %v300
    %v302 = vlaneseq
    %v303 = vshrl.u32 %v302, 7
    %v304 = vsub.s32 %v301, %v303
    %v305 = vrot.slane %v297, %v304
    %v307 = vunpack.c.l.s4 1983009808
    %v308 = vunpack.c.0.s8 %v307
    %v309 = vlaneseq
    %v310 = vshrl.u32 %v309, 7
    %v311 = vsub.s32 %v308, %v310
    %v312 = vrot.slane %v298, %v311
    %v313 = vcombine.high %v305, %v305
    %v318 = vcombine.low %v255, %v255
    %v319 = vcombine.high %v255, %v255
    %v321 = vunpack.c.l.s4 1983009808
    %v322 = vunpack.c.0.s8 %v321
    %v323 = vlaneseq
    %v324 = vshrl.u32 %v323, 7
    %v325 = vsub.s32 %v322, %v324
    %v326 = vrot.slane %v318, %v325
    %v328 = vunpack.c.l.s4 1983009808
    %v329 = vunpack.c.0.s8 %v328
    %v330 = vlaneseq
    %v331 = vshrl.u32 %v330, 7
    %v332 = vsub.s32 %v329, %v331
    %v333 = vrot.slane %v319, %v332
    %v334 = vcombine.low %v326, %v326
    %v335 = vcombine.high %v326, %v326
    %v336 = vcombine.low %v333, %v333
    %v337 = vcombine.high %v333, %v333
    %vm344 = vcmask 359424
    %v345 = vsel %vm344, %v296, 0
    %v347 = vsel %vm344, %v312, 0
    %vm349 = vcmask 1043456
    %v351 = vsel %vm349, %v217, 0
    %v354 = vsel %vm349, %v218, 0
    %v357 = vsel %vm349, %v219, 0
    %v360 = vsel %vm349, %v220, 0
    %362 = vmatprep.subr.mxu0 %v70
    %363 = vmatpush1.msra.mxu0 %v69
    %364 = vmatprep.subr.mxu0 %v74
    %365 = vmatpush1.msra.mxu0 %v73
    %366 = vmatprep.subr.mxu0 %v78
    %367 = vmatpush1.msra.mxu0 %v77
    %368 = vmatprep.subr.mxu0 %v82
    %369 = vmatpush1.msra.mxu0 %v81
    %370 = vmatprep.subr.mxu0 %v86
    %371 = vmatpush1.msra.mxu0 %v85
    %372 = vmatprep.subr.mxu0 %v90
    %373 = vmatpush1.msra.mxu0 %v89
    %374 = vmatprep.subr.mxu0 %v94
    %375 = vmatpush1.msra.mxu0 %v93
    %376 = vmatprep.subr.mxu0 %v98
    %377 = vmatpush1.msra.mxu0 %v97
    %378 = vmatprep.subr.mxu0 %v102
    %379 = vmatpush1.msra.mxu0 %v101
    %380 = vmatprep.subr.mxu0 %v106
    %381 = vmatpush1.msra.mxu0 %v105
    %382 = vmatprep.subr.mxu0 %v110
    %383 = vmatpush1.msra.mxu0 %v109
    %384 = vmatprep.subr.mxu0 %v114
    %385 = vmatpush1.msra.mxu0 %v113
    %386 = vmatprep.subr.mxu0 %v118
    %387 = vmatpush1.msra.mxu0 %v117
    %388 = vmatprep.subr.mxu0 %v122
    %389 = vmatpush1.msra.mxu0 %v121
    %390 = vmatprep.subr.mxu0 %v126
    %391 = vmatpush1.msra.mxu0 %v125
    %392 = vmatprep.subr.mxu0 %v130
    %393 = vmatpush1.msra.mxu0 %v129
    %394 = vmatprep.subr.mxu0 %v134
    %395 = vmatpush1.msra.mxu0 %v133
    %396 = vmatprep.subr.mxu0 %v138
    %397 = vmatpush1.msra.mxu0 %v137
    %398 = vmatprep.subr.mxu0 %v142
    %399 = vmatpush1.msra.mxu0 %v141
    %400 = vmatprep.subr.mxu0 %v146
    %401 = vmatpush1.msra.mxu0 %v145
    %402 = vmatprep.subr.mxu0 %v150
    %403 = vmatpush1.msra.mxu0 %v149
    %404 = vmatprep.subr.mxu0 %v154
    %405 = vmatpush1.msra.mxu0 %v153
    %406 = vmatprep.subr.mxu0 %v158
    %407 = vmatpush1.msra.mxu0 %v157
    %408 = vmatprep.subr.mxu0 %v162
    %409 = vmatpush1.msra.mxu0 %v161
    %410 = vmatprep.subr.mxu0 %v166
    %411 = vmatpush1.msra.mxu0 %v165
    %412 = vmatprep.subr.mxu0 %v170
    %413 = vmatpush1.msra.mxu0 %v169
    %414 = vmatprep.subr.mxu0 %v174
    %415 = vmatpush1.msra.mxu0 %v173
    %416 = vmatprep.subr.mxu0 %v178
    %417 = vmatpush1.msra.mxu0 %v177
    %418 = vmatprep.subr.mxu0 %v182
    %419 = vmatpush1.msra.mxu0 %v181
    %420 = vmatprep.subr.mxu0 %v186
    %421 = vmatpush1.msra.mxu0 %v185
    %422 = vmatprep.subr.mxu0 %v190
    %423 = vmatpush1.msra.mxu0 %v189
    %424 = vmatprep.subr.mxu0 %v194
    %425 = vmatpush1.msra.mxu0 %v193
    %426 = vmatprep.mubr.f32.mxu0 %v295
    %427 = vmatmul.mubr.f32.gmra.mrb[0].mxu0 %v294
    %v428 = vpop.f32.mrb[0].mxu0
    %v429 = vadd.f32 %v334, %v428
    %v430 = vpop.f32.mrb[0].mxu0
    %v431 = vadd.f32 %v335, %v430
    %432 = vmatprep.mubr.f32.mxu0 %v313
    %433 = vmatmul.mubr.f32.gmra.mrb[0].mxu0 %v305
    %v434 = vpop.f32.mrb[0].mxu0
    %v435 = vadd.f32 %v326, %v434
    %v436 = vpop.f32.mrb[0].mxu0
    %v437 = vadd.f32 %v335, %v436
    %438 = vdwg.mxu0
    %439 = vmatprep.subr.mxu0 %v198
    %440 = vmatpush1.msra.mxu0 %v197
    %441 = vmatprep.subr.mxu0 %v202
    %442 = vmatpush1.msra.mxu0 %v201
    %443 = vmatprep.subr.mxu0 %v206
    %444 = vmatpush1.msra.mxu0 %v205
    %445 = vmatprep.subr.mxu0 %v210
    %446 = vmatpush1.msra.mxu0 %v209
    %447 = vmatprep.subr.mxu0 %v214
    %448 = vmatpush1.msra.mxu0 %v213
    %449 = vmatprep.subr.mxu0 %v354
    %450 = vmatpush1.msra.mxu0 %v351
    %451 = vmatprep.subr.mxu0 0.0
    %452 = vmatpush1.msra.mxu0 0.0
    %453 = vmatprep.subr.mxu0 0.0
    %454 = vmatpush1.msra.mxu0 0.0
    %455 = vmatprep.subr.mxu0 0.0
    %456 = vmatpush1.msra.mxu0 0.0
    %457 = vmatprep.subr.mxu0 0.0
    %458 = vmatpush1.msra.mxu0 0.0
    %459 = vmatprep.subr.mxu0 0.0
    %460 = vmatpush1.msra.mxu0 0.0
    %461 = vmatprep.subr.mxu0 0.0
    %462 = vmatpush1.msra.mxu0 0.0
    %463 = vmatprep.subr.mxu0 0.0
    %464 = vmatpush1.msra.mxu0 0.0
    %465 = vmatprep.subr.mxu0 0.0
    %466 = vmatpush1.msra.mxu0 0.0
    %467 = vmatprep.subr.mxu0 0.0
    %468 = vmatpush1.msra.mxu0 0.0
    %469 = vmatprep.subr.mxu0 0.0
    %470 = vmatpush1.msra.mxu0 0.0
    %471 = vmatprep.subr.mxu0 0.0
    %472 = vmatpush1.msra.mxu0 0.0
    %473 = vmatprep.subr.mxu0 0.0
    %474 = vmatpush1.msra.mxu0 0.0
    %475 = vmatprep.subr.mxu0 0.0
    %476 = vmatpush1.msra.mxu0 0.0
    %477 = vmatprep.subr.mxu0 0.0
    %478 = vmatpush1.msra.mxu0 0.0
    %479 = vmatprep.subr.mxu0 0.0
    %480 = vmatpush1.msra.mxu0 0.0
    %481 = vmatprep.subr.mxu0 0.0
    %482 = vmatpush1.msra.mxu0 0.0
    %483 = vmatprep.subr.mxu0 0.0
    %484 = vmatpush1.msra.mxu0 0.0
    %485 = vmatprep.subr.mxu0 0.0
    %486 = vmatpush1.msra.mxu0 0.0
    %487 = vmatprep.subr.mxu0 0.0
    %488 = vmatpush1.msra.mxu0 0.0
    %489 = vmatprep.subr.mxu0 0.0
    %490 = vmatpush1.msra.mxu0 0.0
    %491 = vmatprep.subr.mxu0 0.0
    %492 = vmatpush1.msra.mxu0 0.0
    %493 = vmatprep.subr.mxu0 0.0
    %494 = vmatpush1.msra.mxu0 0.0
    %495 = vmatprep.subr.mxu0 0.0
    %496 = vmatpush1.msra.mxu0 0.0
    %497 = vmatprep.subr.mxu0 0.0
    %498 = vmatpush1.msra.mxu0 0.0
    %499 = vmatprep.subr.mxu0 0.0
    %500 = vmatpush1.msra.mxu0 0.0
    %501 = vmatprep.subr.mxu0 0.0
    %502 = vmatpush1.msra.mxu0 0.0
    %503 = vmatprep.mubr.f32.mxu0 0.0
    %504 = vmatmul.mubr.f32.gmra.mrb[0].mxu0 %v345
    %v505 = vpop.f32.mrb[0].mxu0
    %v506 = vadd.f32 %v429, %v505
    %v507 = vpop.f32.mrb[0].mxu0
    %v508 = vadd.f32 %v431, %v507
    %509 = vmatprep.mubr.f32.mxu0 0.0
    %510 = vmatmul.mubr.f32.gmra.mrb[0].mxu0 %v347
    %v511 = vpop.f32.mrb[0].mxu0
    %v512 = vadd.f32 %v435, %v511
    %v513 = vpop.f32.mrb[0].mxu0
    %v514 = vadd.f32 %v437, %v513
    %515 = vdwg.mxu0
    %516 = vmatprep.subr.mxu0 %v72
    %517 = vmatpush1.msra.mxu0 %v71
    %518 = vmatprep.subr.mxu0 %v76
    %519 = vmatpush1.msra.mxu0 %v75
    %520 = vmatprep.subr.mxu0 %v80
    %521 = vmatpush1.msra.mxu0 %v79
    %522 = vmatprep.subr.mxu0 %v84
    %523 = vmatpush1.msra.mxu0 %v83
    %524 = vmatprep.subr.mxu0 %v88
    %525 = vmatpush1.msra.mxu0 %v87
    %526 = vmatprep.subr.mxu0 %v92
    %527 = vmatpush1.msra.mxu0 %v91
    %528 = vmatprep.subr.mxu0 %v96
    %529 = vmatpush1.msra.mxu0 %v95
    %530 = vmatprep.subr.mxu0 %v100
    %531 = vmatpush1.msra.mxu0 %v99
    %532 = vmatprep.subr.mxu0 %v104
    %533 = vmatpush1.msra.mxu0 %v103
    %534 = vmatprep.subr.mxu0 %v108
    %535 = vmatpush1.msra.mxu0 %v107
    %536 = vmatprep.subr.mxu0 %v112
    %537 = vmatpush1.msra.mxu0 %v111
    %538 = vmatprep.subr.mxu0 %v116
    %539 = vmatpush1.msra.mxu0 %v115
    %540 = vmatprep.subr.mxu0 %v120
    %541 = vmatpush1.msra.mxu0 %v119
    %542 = vmatprep.subr.mxu0 %v124
    %543 = vmatpush1.msra.mxu0 %v123
    %544 = vmatprep.subr.mxu0 %v128
    %545 = vmatpush1.msra.mxu0 %v127
    %546 = vmatprep.subr.mxu0 %v132
    %547 = vmatpush1.msra.mxu0 %v131
    %548 = vmatprep.subr.mxu0 %v136
    %549 = vmatpush1.msra.mxu0 %v135
    %550 = vmatprep.subr.mxu0 %v140
    %551 = vmatpush1.msra.mxu0 %v139
    %552 = vmatprep.subr.mxu0 %v144
    %553 = vmatpush1.msra.mxu0 %v143
    %554 = vmatprep.subr.mxu0 %v148
    %555 = vmatpush1.msra.mxu0 %v147
    %556 = vmatprep.subr.mxu0 %v152
    %557 = vmatpush1.msra.mxu0 %v151
    %558 = vmatprep.subr.mxu0 %v156
    %559 = vmatpush1.msra.mxu0 %v155
    %560 = vmatprep.subr.mxu0 %v160
    %561 = vmatpush1.msra.mxu0 %v159
    %562 = vmatprep.subr.mxu0 %v164
    %563 = vmatpush1.msra.mxu0 %v163
    %564 = vmatprep.subr.mxu0 %v168
    %565 = vmatpush1.msra.mxu0 %v167
    %566 = vmatprep.subr.mxu0 %v172
    %567 = vmatpush1.msra.mxu0 %v171
    %568 = vmatprep.subr.mxu0 %v176
    %569 = vmatpush1.msra.mxu0 %v175
    %570 = vmatprep.subr.mxu0 %v180
    %571 = vmatpush1.msra.mxu0 %v179
    %572 = vmatprep.subr.mxu0 %v184
    %573 = vmatpush1.msra.mxu0 %v183
    %574 = vmatprep.subr.mxu0 %v188
    %575 = vmatpush1.msra.mxu0 %v187
    %576 = vmatprep.subr.mxu0 %v192
    %577 = vmatpush1.msra.mxu0 %v191
    %578 = vmatprep.subr.mxu0 %v196
    %579 = vmatpush1.msra.mxu0 %v195
    %580 = vmatprep.mubr.f32.mxu0 %v295
    %581 = vmatmul.mubr.f32.gmra.mrb[0].mxu0 %v294
    %v582 = vpop.f32.mrb[0].mxu0
    %v583 = vadd.f32 %v336, %v582
    %v584 = vpop.f32.mrb[0].mxu0
    %v585 = vadd.f32 %v337, %v584
    %586 = vmatprep.mubr.f32.mxu0 %v313
    %587 = vmatmul.mubr.f32.gmra.mrb[0].mxu0 %v305
    %v588 = vpop.f32.mrb[0].mxu0
    %v589 = vadd.f32 %v333, %v588
    %v590 = vpop.f32.mrb[0].mxu0
    %v591 = vadd.f32 %v337, %v590
    %592 = vdwg.mxu0
    %593 = vmatprep.subr.mxu0 %v200
    %594 = vmatpush1.msra.mxu0 %v199
    %595 = vmatprep.subr.mxu0 %v204
    %596 = vmatpush1.msra.mxu0 %v203
    %597 = vmatprep.subr.mxu0 %v208
    %598 = vmatpush1.msra.mxu0 %v207
    %599 = vmatprep.subr.mxu0 %v212
    %600 = vmatpush1.msra.mxu0 %v211
    %601 = vmatprep.subr.mxu0 %v216
    %602 = vmatpush1.msra.mxu0 %v215
    %603 = vmatprep.subr.mxu0 %v360
    %604 = vmatpush1.msra.mxu0 %v357
    %605 = vmatprep.subr.mxu0 0.0
    %606 = vmatpush1.msra.mxu0 0.0
    %607 = vmatprep.subr.mxu0 0.0
    %608 = vmatpush1.msra.mxu0 0.0
    %609 = vmatprep.subr.mxu0 0.0
    %610 = vmatpush1.msra.mxu0 0.0
    %611 = vmatprep.subr.mxu0 0.0
    %612 = vmatpush1.msra.mxu0 0.0
    %613 = vmatprep.subr.mxu0 0.0
    %614 = vmatpush1.msra.mxu0 0.0
    %615 = vmatprep.subr.mxu0 0.0
    %616 = vmatpush1.msra.mxu0 0.0
    %617 = vmatprep.subr.mxu0 0.0
    %618 = vmatpush1.msra.mxu0 0.0
    %619 = vmatprep.subr.mxu0 0.0
    %620 = vmatpush1.msra.mxu0 0.0
    %621 = vmatprep.subr.mxu0 0.0
    %622 = vmatpush1.msra.mxu0 0.0
    %623 = vmatprep.subr.mxu0 0.0
    %624 = vmatpush1.msra.mxu0 0.0
    %625 = vmatprep.subr.mxu0 0.0
    %626 = vmatpush1.msra.mxu0 0.0
    %627 = vmatprep.subr.mxu0 0.0
    %628 = vmatpush1.msra.mxu0 0.0
    %629 = vmatprep.subr.mxu0 0.0
    %630 = vmatpush1.msra.mxu0 0.0
    %631 = vmatprep.subr.mxu0 0.0
    %632 = vmatpush1.msra.mxu0 0.0
    %633 = vmatprep.subr.mxu0 0.0
    %634 = vmatpush1.msra.mxu0 0.0
    %635 = vmatprep.subr.mxu0 0.0
    %636 = vmatpush1.msra.mxu0 0.0
    %637 = vmatprep.subr.mxu0 0.0
    %638 = vmatpush1.msra.mxu0 0.0
    %639 = vmatprep.subr.mxu0 0.0
    %640 = vmatpush1.msra.mxu0 0.0
    %641 = vmatprep.subr.mxu0 0.0
    %642 = vmatpush1.msra.mxu0 0.0
    %643 = vmatprep.subr.mxu0 0.0
    %644 = vmatpush1.msra.mxu0 0.0
    %645 = vmatprep.subr.mxu0 0.0
    %646 = vmatpush1.msra.mxu0 0.0
    %647 = vmatprep.subr.mxu0 0.0
    %648 = vmatpush1.msra.mxu0 0.0
    %649 = vmatprep.subr.mxu0 0.0
    %650 = vmatpush1.msra.mxu0 0.0
    %651 = vmatprep.subr.mxu0 0.0
    %652 = vmatpush1.msra.mxu0 0.0
    %653 = vmatprep.subr.mxu0 0.0
    %654 = vmatpush1.msra.mxu0 0.0
    %655 = vmatprep.subr.mxu0 0.0
    %656 = vmatpush1.msra.mxu0 0.0
    %657 = vmatprep.mubr.f32.mxu0 0.0
    %658 = vmatmul.mubr.f32.gmra.mrb[0].mxu0 %v345
    %v659 = vpop.f32.mrb[0].mxu0
    %v660 = vadd.f32 %v583, %v659
    %v661 = vpop.f32.mrb[0].mxu0
    %v662 = vadd.f32 %v585, %v661
    %663 = vmatprep.mubr.f32.mxu0 0.0
    %664 = vmatmul.mubr.f32.gmra.mrb[0].mxu0 %v347
    %v665 = vpop.f32.mrb[0].mxu0
    %v666 = vadd.f32 %v589, %v665
    %v667 = vpop.f32.mrb[0].mxu0
    %v668 = vadd.f32 %v591, %v667
    %669 = vdwg.mxu0
    %v678 = vcombine.low %v506, %v508
    %v679 = vcombine.high %v506, %v508
    %v680 = vcombine.low %v660, %v662
    %v681 = vcombine.high %v660, %v662
    %v683 = vunpack.c.l.s4 1983009808
    %v684 = vunpack.c.0.s8 %v683
    %v685 = vlaneseq
    %v686 = vshrl.u32 %v685, 7
    %v687 = vsub.s32 %v684, %v686
    %v688 = vrot.slane %v678, %v687
    %v690 = vunpack.c.l.s4 1983009808
    %v691 = vunpack.c.0.s8 %v690
    %v692 = vlaneseq
    %v693 = vshrl.u32 %v692, 7
    %v694 = vsub.s32 %v691, %v693
    %v695 = vrot.slane %v679, %v694
    %v697 = vunpack.c.l.s4 1983009808
    %v698 = vunpack.c.0.s8 %v697
    %v699 = vlaneseq
    %v700 = vshrl.u32 %v699, 7
    %v701 = vsub.s32 %v698, %v700
    %v702 = vrot.slane %v680, %v701
    %v704 = vunpack.c.l.s4 1983009808
    %v705 = vunpack.c.0.s8 %v704
    %v706 = vlaneseq
    %v707 = vshrl.u32 %v706, 7
    %v708 = vsub.s32 %v705, %v707
    %v709 = vrot.slane %v681, %v708
    %v710 = vcombine.low %v688, %v702
    %v711 = vcombine.high %v688, %v702
    %v712 = vcombine.low %v695, %v709
    %v713 = vcombine.high %v695, %v709
    %v714 = vcombine.low %v512, %v514
    %v715 = vcombine.low %v666, %v668
    %v717 = vunpack.c.l.s4 1983009808
    %v718 = vunpack.c.0.s8 %v717
    %v719 = vlaneseq
    %v720 = vshrl.u32 %v719, 7
    %v721 = vsub.s32 %v718, %v720
    %v722 = vrot.slane %v714, %v721
    %v724 = vunpack.c.l.s4 1983009808
    %v725 = vunpack.c.0.s8 %v724
    %v726 = vlaneseq
    %v727 = vshrl.u32 %v726, 7
    %v728 = vsub.s32 %v725, %v727
    %v729 = vrot.slane %v715, %v728
    %v730 = vcombine.low %v722, %v729
    %v731 = vcombine.high %v722, %v729
    %v732 = vld [vmem:[#allocation4] sm:$0xff]
    %v733 = vld [vmem:[#allocation4 + $0x8] sm:$0xff]
    %v734 = vld [vmem:[#allocation4 + $0x10] sm:$0xff]
    %v735 = vld [vmem:[#allocation4 + $0x18] sm:$0xff]
    %v736 = vld [vmem:[#allocation4 + $0x20] sm:$0xff]
    %v737 = vld [vmem:[#allocation4 + $0x28] sm:$0xff]
    %v738 = vld [vmem:[#allocation4 + $0x30] sm:$0xff]
    %v739 = vld [vmem:[#allocation4 + $0x38] sm:$0xff]
    %v740 = vld [vmem:[#allocation4 + $0x40] sm:$0xff]
    %v741 = vld [vmem:[#allocation4 + $0x48] sm:$0xff]
    %v742 = vld [vmem:[#allocation4 + $0x50] sm:$0xff]
    %v743 = vld [vmem:[#allocation4 + $0x58] sm:$0xff]
    %v744 = vld [vmem:[#allocation4 + $0x60] sm:$0xff]
    %v745 = vld [vmem:[#allocation4 + $0x68] sm:$0xff]
    %v746 = vld [vmem:[#allocation4 + $0x70] sm:$0xff]
    %v747 = vld [vmem:[#allocation4 + $0x78] sm:$0xff]
    %v748 = vld [vmem:[#allocation4 + $0x80] sm:$0xff]
    %v749 = vld [vmem:[#allocation4 + $0x88] sm:$0xff]
    %v750 = vld [vmem:[#allocation4 + $0x90] sm:$0xff]
    %v751 = vld [vmem:[#allocation4 + $0x98] sm:$0xff]
    %v752 = vld [vmem:[#allocation4 + $0xa0] sm:$0xff]
    %v753 = vld [vmem:[#allocation4 + $0xa8] sm:$0xff]
    %v754 = vld [vmem:[#allocation4 + $0xb0] sm:$0xff]
    %v755 = vld [vmem:[#allocation4 + $0xb8] sm:$0xff]
    %v756 = vld [vmem:[#allocation4 + $0xc0] sm:$0xff]
    %v757 = vld [vmem:[#allocation4 + $0xc8] sm:$0xff]
    %v758 = vld [vmem:[#allocation4 + $0xd0] sm:$0xff]
    %v759 = vld [vmem:[#allocation4 + $0xd8] sm:$0xff]
    %v760 = vld [vmem:[#allocation4 + $0xe0] sm:$0xff]
    %v761 = vld [vmem:[#allocation4 + $0xe8] sm:$0xff]
    %v762 = vld [vmem:[#allocation4 + $0xf0] sm:$0xff]
    %v763 = vld [vmem:[#allocation4 + $0xf8] sm:$0xff]
    %v764 = vld [vmem:[#allocation4 + $0x100] sm:$0xff]
    %v765 = vld [vmem:[#allocation4 + $0x108] sm:$0xff]
    %v766 = vld [vmem:[#allocation4 + $0x110] sm:$0xff]
    %v767 = vld [vmem:[#allocation4 + $0x118] sm:$0xff]
    %v768 = vld [vmem:[#allocation4 + $0x120] sm:$0xff]
    %v769 = vld [vmem:[#allocation4 + $0x128] sm:$0xff]
    %v770 = vld [vmem:[#allocation4 + $0x130] sm:$0xff]
    %v771 = vld [vmem:[#allocation4 + $0x138] sm:$0xff]
    %v772 = vld [vmem:[#allocation4 + $0x140] sm:$0xff]
    %v773 = vld [vmem:[#allocation4 + $0x148] sm:$0xff]
    %v774 = vld [vmem:[#allocation4 + $0x150] sm:$0xff]
    %v775 = vld [vmem:[#allocation4 + $0x158] sm:$0xff]
    %v776 = vld [vmem:[#allocation4 + $0x160] sm:$0xff]
    %v777 = vld [vmem:[#allocation4 + $0x168] sm:$0xff]
    %v778 = vld [vmem:[#allocation4 + $0x170] sm:$0xff]
    %v779 = vld [vmem:[#allocation4 + $0x178] sm:$0xff]
    %v780 = vld [vmem:[#allocation4 + $0x180] sm:$0xff]
    %v781 = vld [vmem:[#allocation4 + $0x188] sm:$0xff]
    %v782 = vld [vmem:[#allocation4 + $0x190] sm:$0xff]
    %v783 = vld [vmem:[#allocation4 + $0x198] sm:$0xff]
    %v784 = vld [vmem:[#allocation4 + $0x1a0] sm:$0xff]
    %v785 = vld [vmem:[#allocation4 + $0x1a8] sm:$0xff]
    %v786 = vld [vmem:[#allocation4 + $0x1b0] sm:$0xff]
    %v787 = vld [vmem:[#allocation4 + $0x1b8] sm:$0xff]
    %v788 = vld [vmem:[#allocation4 + $0x1c0] sm:$0xff]
    %v789 = vld [vmem:[#allocation4 + $0x1c8] sm:$0xff]
    %v790 = vld [vmem:[#allocation4 + $0x1d0] sm:$0xff]
    %v791 = vld [vmem:[#allocation4 + $0x1d8] sm:$0xff]
    %v792 = vld [vmem:[#allocation4 + $0x1e0] sm:$0xff]
    %v793 = vld [vmem:[#allocation4 + $0x1e8] sm:$0xff]
    %v794 = vld [vmem:[#allocation4 + $0x1f0] sm:$0xff]
    %v795 = vld [vmem:[#allocation4 + $0x1f8] sm:$0xff]
    %v796 = vlaneseq
    %v797 = vand.u32 %v796, 127
    %v798 = vadd.s32 %v797, 128
    %v799 = vadd.s32 %v797, 256
    %v800 = vadd.s32 %v797, 384
    %v801 = vand.u32 %v797, 127
    %v802 = vand.u32 %v798, 127
    %v803 = vand.u32 %v799, 127
    %v804 = vand.u32 %v800, 127
    %vm805 = vcmp.lt.s32.totalorder %v801, 50
    %vm806 = vcmp.lt.s32.totalorder %v802, 50
    %vm807 = vcmp.lt.s32.totalorder %v803, 50
    %vm808 = vcmp.lt.s32.totalorder %v804, 50
    %vm809 = vcmp.lt.s32.totalorder %v797, 50
    %v810 = vsel %vm805, 1, 0
    %v811 = vsel %vm806, 1, 0
    %v812 = vsel %vm807, 1, 0
    %v813 = vsel %vm808, 1, 0
    %vm814 = vcmp.eq.s32.totalorder %v810, 1
    %vm815 = vcmp.eq.s32.totalorder %v811, 1
    %vm816 = vcmp.eq.s32.totalorder %v812, 1
    %vm817 = vcmp.eq.s32.totalorder %v813, 1
    %v818 = vcombine.high %v710, %v710
    %v820 = vunpack.c.l.s4 1983009808
    %v821 = vunpack.c.0.s8 %v820
    %v822 = vlaneseq
    %v823 = vshrl.u32 %v822, 7
    %v824 = vsub.s32 %v821, %v823
    %v825 = vrot.slane %v710, %v824
    %v827 = vunpack.c.l.s4 1983009808
    %v828 = vunpack.c.0.s8 %v827
    %v829 = vlaneseq
    %v830 = vshrl.u32 %v829, 7
    %v831 = vsub.s32 %v828, %v830
    %v832 = vrot.slane %v818, %v831
    %v833 = vcombine.high %v825, %v825
    %v834 = vcombine.high %v832, %v832
    %v839 = vcombine.high %v731, %v731
    %v841 = vunpack.c.l.s4 1983009808
    %v842 = vunpack.c.0.s8 %v841
    %v843 = vlaneseq
    %v844 = vshrl.u32 %v843, 7
    %v845 = vsub.s32 %v842, %v844
    %v846 = vrot.slane %v731, %v845
    %v848 = vunpack.c.l.s4 1983009808
    %v849 = vunpack.c.0.s8 %v848
    %v850 = vlaneseq
    %v851 = vshrl.u32 %v850, 7
    %v852 = vsub.s32 %v849, %v851
    %v853 = vrot.slane %v839, %v852
    %v854 = vcombine.high %v846, %v846
    %v855 = vcombine.high %v853, %v853
    %v860 = vsel %vm814, %v825, %v846
    %v861 = vsel %vm815, %v833, %v854
    %v862 = vsel %vm816, %v832, %v853
    %v863 = vsel %vm817, %v834, %v855
    %864 = vmatprep.subr.mxu0 %v733
    %865 = vmatpush1.msra.mxu0 %v732
    %866 = vmatprep.subr.mxu0 %v737
    %867 = vmatpush1.msra.mxu0 %v736
    %868 = vmatprep.subr.mxu0 %v741
    %869 = vmatpush1.msra.mxu0 %v740
    %870 = vmatprep.subr.mxu0 %v745
    %871 = vmatpush1.msra.mxu0 %v744
    %872 = vmatprep.subr.mxu0 %v749
    %873 = vmatpush1.msra.mxu0 %v748
    %874 = vmatprep.subr.mxu0 %v753
    %875 = vmatpush1.msra.mxu0 %v752
    %876 = vmatprep.subr.mxu0 %v757
    %877 = vmatpush1.msra.mxu0 %v756
    %878 = vmatprep.subr.mxu0 %v761
    %879 = vmatpush1.msra.mxu0 %v760
    %880 = vmatprep.subr.mxu0 %v765
    %881 = vmatpush1.msra.mxu0 %v764
    %882 = vmatprep.subr.mxu0 %v769
    %883 = vmatpush1.msra.mxu0 %v768
    %884 = vmatprep.subr.mxu0 %v773
    %885 = vmatpush1.msra.mxu0 %v772
    %886 = vmatprep.subr.mxu0 %v777
    %887 = vmatpush1.msra.mxu0 %v776
    %888 = vmatprep.subr.mxu0 %v781
    %889 = vmatpush1.msra.mxu0 %v780
    %890 = vmatprep.subr.mxu0 %v785
    %891 = vmatpush1.msra.mxu0 %v784
    %892 = vmatprep.subr.mxu0 %v789
    %893 = vmatpush1.msra.mxu0 %v788
    %894 = vmatprep.subr.mxu0 %v793
    %895 = vmatpush1.msra.mxu0 %v792
    %896 = vmatprep.subr.mxu0 0.0
    %897 = vmatpush1.msra.mxu0 0.0
    %898 = vmatprep.subr.mxu0 0.0
    %899 = vmatpush1.msra.mxu0 0.0
    %900 = vmatprep.subr.mxu0 0.0
    %901 = vmatpush1.msra.mxu0 0.0
    %902 = vmatprep.subr.mxu0 0.0
    %903 = vmatpush1.msra.mxu0 0.0
    %904 = vmatprep.subr.mxu0 0.0
    %905 = vmatpush1.msra.mxu0 0.0
    %906 = vmatprep.subr.mxu0 0.0
    %907 = vmatpush1.msra.mxu0 0.0
    %908 = vmatprep.subr.mxu0 0.0
    %909 = vmatpush1.msra.mxu0 0.0
    %910 = vmatprep.subr.mxu0 0.0
    %911 = vmatpush1.msra.mxu0 0.0
    %912 = vmatprep.subr.mxu0 0.0
    %913 = vmatpush1.msra.mxu0 0.0
    %914 = vmatprep.subr.mxu0 0.0
    %915 = vmatpush1.msra.mxu0 0.0
    %916 = vmatprep.subr.mxu0 0.0
    %917 = vmatpush1.msra.mxu0 0.0
    %918 = vmatprep.subr.mxu0 0.0
    %919 = vmatpush1.msra.mxu0 0.0
    %920 = vmatprep.subr.mxu0 0.0
    %921 = vmatpush1.msra.mxu0 0.0
    %922 = vmatprep.subr.mxu0 0.0
    %923 = vmatpush1.msra.mxu0 0.0
    %924 = vmatprep.subr.mxu0 0.0
    %925 = vmatpush1.msra.mxu0 0.0
    %926 = vmatprep.subr.mxu0 0.0
    %927 = vmatpush1.msra.mxu0 0.0
    %928 = vmatprep.mubr.f32.mxu0 0.0
    %929 = vmatmul.mubr.f32.gmra.mrb[0].mxu0 0.0
    %v930 = vpop.f32.mrb[0].mxu0
    %v931 = vadd.f32 0.0, %v930
    %v932 = vpop.f32.mrb[0].mxu0
    %v933 = vadd.f32 0.0, %v932
    %934 = vdwg.mxu0
    %935 = vmatprep.subr.mxu0 %v735
    %936 = vmatpush1.msra.mxu0 %v734
    %937 = vmatprep.subr.mxu0 %v739
    %938 = vmatpush1.msra.mxu0 %v738
    %939 = vmatprep.subr.mxu0 %v743
    %940 = vmatpush1.msra.mxu0 %v742
    %941 = vmatprep.subr.mxu0 %v747
    %942 = vmatpush1.msra.mxu0 %v746
    %943 = vmatprep.subr.mxu0 %v751
    %944 = vmatpush1.msra.mxu0 %v750
    %945 = vmatprep.subr.mxu0 %v755
    %946 = vmatpush1.msra.mxu0 %v754
    %947 = vmatprep.subr.mxu0 %v759
    %948 = vmatpush1.msra.mxu0 %v758
    %949 = vmatprep.subr.mxu0 %v763
    %950 = vmatpush1.msra.mxu0 %v762
    %951 = vmatprep.subr.mxu0 %v767
    %952 = vmatpush1.msra.mxu0 %v766
    %953 = vmatprep.subr.mxu0 %v771
    %954 = vmatpush1.msra.mxu0 %v770
    %955 = vmatprep.subr.mxu0 %v775
    %956 = vmatpush1.msra.mxu0 %v774
    %957 = vmatprep.subr.mxu0 %v779
    %958 = vmatpush1.msra.mxu0 %v778
    %959 = vmatprep.subr.mxu0 %v783
    %960 = vmatpush1.msra.mxu0 %v782
    %961 = vmatprep.subr.mxu0 %v787
    %962 = vmatpush1.msra.mxu0 %v786
    %963 = vmatprep.subr.mxu0 %v791
    %964 = vmatpush1.msra.mxu0 %v790
    %965 = vmatprep.subr.mxu0 %v795
    %966 = vmatpush1.msra.mxu0 %v794
    %967 = vmatprep.subr.mxu0 0.0
    %968 = vmatpush1.msra.mxu0 0.0
    %969 = vmatprep.subr.mxu0 0.0
    %970 = vmatpush1.msra.mxu0 0.0
    %971 = vmatprep.subr.mxu0 0.0
    %972 = vmatpush1.msra.mxu0 0.0
    %973 = vmatprep.subr.mxu0 0.0
    %974 = vmatpush1.msra.mxu0 0.0
    %975 = vmatprep.subr.mxu0 0.0
    %976 = vmatpush1.msra.mxu0 0.0
    %977 = vmatprep.subr.mxu0 0.0
    %978 = vmatpush1.msra.mxu0 0.0
    %979 = vmatprep.subr.mxu0 0.0
    %980 = vmatpush1.msra.mxu0 0.0
    %981 = vmatprep.subr.mxu0 0.0
    %982 = vmatpush1.msra.mxu0 0.0
    %983 = vmatprep.subr.mxu0 0.0
    %984 = vmatpush1.msra.mxu0 0.0
    %985 = vmatprep.subr.mxu0 0.0
    %986 = vmatpush1.msra.mxu0 0.0
    %987 = vmatprep.subr.mxu0 0.0
    %988 = vmatpush1.msra.mxu0 0.0
    %989 = vmatprep.subr.mxu0 0.0
    %990 = vmatpush1.msra.mxu0 0.0
    %991 = vmatprep.subr.mxu0 0.0
    %992 = vmatpush1.msra.mxu0 0.0
    %993 = vmatprep.subr.mxu0 0.0
    %994 = vmatpush1.msra.mxu0 0.0
    %995 = vmatprep.subr.mxu0 0.0
    %996 = vmatpush1.msra.mxu0 0.0
    %997 = vmatprep.subr.mxu0 0.0
    %998 = vmatpush1.msra.mxu0 0.0
    %999 = vmatprep.mubr.f32.mxu0 0.0
    %1000 = vmatmul.mubr.f32.gmra.mrb[0].mxu0 0.0
    %v1001 = vpop.f32.mrb[0].mxu0
    %v1002 = vadd.f32 0.0, %v1001
    %v1003 = vpop.f32.mrb[0].mxu0
    %v1004 = vadd.f32 0.0, %v1003
    %1005 = vdwg.mxu0
    %v1006 = vadd.f32 %v860, %v931
    %v1007 = vadd.f32 %v861, %v933
    %v1008 = vadd.f32 %v862, %v1002
    %v1009 = vadd.f32 %v863, %v1004
    %v1010 = vxor.u32 %v1006, 2147483648
    %v1011 = vmul.f32 %v1010, 1.442695
    %v1012 = vpow.pop %v1011
    %v1013 = vadd.f32 %v1012, 1.0
    %v1014 = vrcp.pop %v1013
    %v1015 = vmul.f32 1.0, %v1014
    %v1016 = vxor.u32 %v1007, 2147483648
    %v1017 = vmul.f32 %v1016, 1.442695
    %v1018 = vpow.pop %v1017
    %v1019 = vadd.f32 %v1018, 1.0
    %v1020 = vrcp.pop %v1019
    %v1021 = vmul.f32 1.0, %v1020
    %v1022 = vtanh.pop %v1008
    %v1023 = vxor.u32 %v1009, 2147483648
    %v1024 = vmul.f32 %v1023, 1.442695
    %v1025 = vpow.pop %v1024
    %v1026 = vadd.f32 %v1025, 1.0
    %v1027 = vrcp.pop %v1026
    %v1028 = vmul.f32 1.0, %v1027
    %v1029 = vmul.f32 %v1021, 0.0
    %v1030 = vmul.f32 %v1015, %v1022
    %v1031 = vadd.f32 %v1029, %v1030
    %v1032 = vtanh.pop %v1031
    %v1033 = vmul.f32 %v1028, %v1032
    %v1034 = vmax.f32 %v1033, 0.0
    %v1035 = vcombine.high %v711, %v711
    %v1037 = vunpack.c.l.s4 1983009808
    %v1038 = vunpack.c.0.s8 %v1037
    %v1039 = vlaneseq
    %v1040 = vshrl.u32 %v1039, 7
    %v1041 = vsub.s32 %v1038, %v1040
    %v1042 = vrot.slane %v711, %v1041
    %v1044 = vunpack.c.l.s4 1983009808
    %v1045 = vunpack.c.0.s8 %v1044
    %v1046 = vlaneseq
    %v1047 = vshrl.u32 %v1046, 7
    %v1048 = vsub.s32 %v1045, %v1047
    %v1049 = vrot.slane %v1035, %v1048
    %v1050 = vcombine.high %v1042, %v1042
    %v1051 = vcombine.high %v1049, %v1049
    %v1056 = vcombine.high %v730, %v730
    %v1058 = vunpack.c.l.s4 1983009808
    %v1059 = vunpack.c.0.s8 %v1058
    %v1060 = vlaneseq
    %v1061 = vshrl.u32 %v1060, 7
    %v1062 = vsub.s32 %v1059, %v1061
    %v1063 = vrot.slane %v730, %v1062
    %v1065 = vunpack.c.l.s4 1983009808
    %v1066 = vunpack.c.0.s8 %v1065
    %v1067 = vlaneseq
    %v1068 = vshrl.u32 %v1067, 7
    %v1069 = vsub.s32 %v1066, %v1068
    %v1070 = vrot.slane %v1056, %v1069
    %v1071 = vcombine.high %v1063, %v1063
    %v1072 = vcombine.high %v1070, %v1070
    %v1077 = vsel %vm814, %v1042, %v1063
    %v1078 = vsel %vm815, %v1050, %v1071
    %v1079 = vsel %vm816, %v1049, %v1070
    %v1080 = vsel %vm817, %v1051, %v1072
    %1081 = vmatprep.subr.mxu0 %v733
    %1082 = vmatpush1.msra.mxu0 %v732
    %1083 = vmatprep.subr.mxu0 %v737
    %1084 = vmatpush1.msra.mxu0 %v736
    %1085 = vmatprep.subr.mxu0 %v741
    %1086 = vmatpush1.msra.mxu0 %v740
    %1087 = vmatprep.subr.mxu0 %v745
    %1088 = vmatpush1.msra.mxu0 %v744
    %1089 = vmatprep.subr.mxu0 %v749
    %1090 = vmatpush1.msra.mxu0 %v748
    %1091 = vmatprep.subr.mxu0 %v753
    %1092 = vmatpush1.msra.mxu0 %v752
    %1093 = vmatprep.subr.mxu0 %v757
    %1094 = vmatpush1.msra.mxu0 %v756
    %1095 = vmatprep.subr.mxu0 %v761
    %1096 = vmatpush1.msra.mxu0 %v760
    %1097 = vmatprep.subr.mxu0 %v765
    %1098 = vmatpush1.msra.mxu0 %v764
    %1099 = vmatprep.subr.mxu0 %v769
    %1100 = vmatpush1.msra.mxu0 %v768
    %1101 = vmatprep.subr.mxu0 %v773
    %1102 = vmatpush1.msra.mxu0 %v772
    %1103 = vmatprep.subr.mxu0 %v777
    %1104 = vmatpush1.msra.mxu0 %v776
    %1105 = vmatprep.subr.mxu0 %v781
    %1106 = vmatpush1.msra.mxu0 %v780
    %1107 = vmatprep.subr.mxu0 %v785
    %1108 = vmatpush1.msra.mxu0 %v784
    %1109 = vmatprep.subr.mxu0 %v789
    %1110 = vmatpush1.msra.mxu0 %v788
    %1111 = vmatprep.subr.mxu0 %v793
    %1112 = vmatpush1.msra.mxu0 %v792
    %1113 = vmatprep.subr.mxu0 0.0
    %1114 = vmatpush1.msra.mxu0 0.0
    %1115 = vmatprep.subr.mxu0 0.0
    %1116 = vmatpush1.msra.mxu0 0.0
    %1117 = vmatprep.subr.mxu0 0.0
    %1118 = vmatpush1.msra.mxu0 0.0
    %1119 = vmatprep.subr.mxu0 0.0
    %1120 = vmatpush1.msra.mxu0 0.0
    %1121 = vmatprep.subr.mxu0 0.0
    %1122 = vmatpush1.msra.mxu0 0.0
    %1123 = vmatprep.subr.mxu0 0.0
    %1124 = vmatpush1.msra.mxu0 0.0
    %1125 = vmatprep.subr.mxu0 0.0
    %1126 = vmatpush1.msra.mxu0 0.0
    %1127 = vmatprep.subr.mxu0 0.0
    %1128 = vmatpush1.msra.mxu0 0.0
    %1129 = vmatprep.subr.mxu0 0.0
    %1130 = vmatpush1.msra.mxu0 0.0
    %1131 = vmatprep.subr.mxu0 0.0
    %1132 = vmatpush1.msra.mxu0 0.0
    %1133 = vmatprep.subr.mxu0 0.0
    %1134 = vmatpush1.msra.mxu0 0.0
    %1135 = vmatprep.subr.mxu0 0.0
    %1136 = vmatpush1.msra.mxu0 0.0
    %1137 = vmatprep.subr.mxu0 0.0
    %1138 = vmatpush1.msra.mxu0 0.0
    %1139 = vmatprep.subr.mxu0 0.0
    %1140 = vmatpush1.msra.mxu0 0.0
    %1141 = vmatprep.subr.mxu0 0.0
    %1142 = vmatpush1.msra.mxu0 0.0
    %1143 = vmatprep.subr.mxu0 0.0
    %1144 = vmatpush1.msra.mxu0 0.0
    %1145 = vmatprep.mubr.f32.mxu0 0.0
    %1146 = vmatmul.mubr.f32.gmra.mrb[0].mxu0 %v1033
    %v1147 = vpop.f32.mrb[0].mxu0
    %v1148 = vadd.f32 0.0, %v1147
    %v1149 = vpop.f32.mrb[0].mxu0
    %v1150 = vadd.f32 0.0, %v1149
    %1151 = vdwg.mxu0
    %1152 = vmatprep.subr.mxu0 %v735
    %1153 = vmatpush1.msra.mxu0 %v734
    %1154 = vmatprep.subr.mxu0 %v739
    %1155 = vmatpush1.msra.mxu0 %v738
    %1156 = vmatprep.subr.mxu0 %v743
    %1157 = vmatpush1.msra.mxu0 %v742
    %1158 = vmatprep.subr.mxu0 %v747
    %1159 = vmatpush1.msra.mxu0 %v746
    %1160 = vmatprep.subr.mxu0 %v751
    %1161 = vmatpush1.msra.mxu0 %v750
    %1162 = vmatprep.subr.mxu0 %v755
    %1163 = vmatpush1.msra.mxu0 %v754
    %1164 = vmatprep.subr.mxu0 %v759
    %1165 = vmatpush1.msra.mxu0 %v758
    %1166 = vmatprep.subr.mxu0 %v763
    %1167 = vmatpush1.msra.mxu0 %v762
    %1168 = vmatprep.subr.mxu0 %v767
    %1169 = vmatpush1.msra.mxu0 %v766
    %1170 = vmatprep.subr.mxu0 %v771
    %1171 = vmatpush1.msra.mxu0 %v770
    %1172 = vmatprep.subr.mxu0 %v775
    %1173 = vmatpush1.msra.mxu0 %v774
    %1174 = vmatprep.subr.mxu0 %v779
    %1175 = vmatpush1.msra.mxu0 %v778
    %1176 = vmatprep.subr.mxu0 %v783
    %1177 = vmatpush1.msra.mxu0 %v782
    %1178 = vmatprep.subr.mxu0 %v787
    %1179 = vmatpush1.msra.mxu0 %v786
    %1180 = vmatprep.subr.mxu0 %v791
    %1181 = vmatpush1.msra.mxu0 %v790
    %1182 = vmatprep.subr.mxu0 %v795
    %1183 = vmatpush1.msra.mxu0 %v794
    %1184 = vmatprep.subr.mxu0 0.0
    %1185 = vmatpush1.msra.mxu0 0.0
    %1186 = vmatprep.subr.mxu0 0.0
    %1187 = vmatpush1.msra.mxu0 0.0
    %1188 = vmatprep.subr.mxu0 0.0
    %1189 = vmatpush1.msra.mxu0 0.0
    %1190 = vmatprep.subr.mxu0 0.0
    %1191 = vmatpush1.msra.mxu0 0.0
    %1192 = vmatprep.subr.mxu0 0.0
    %1193 = vmatpush1.msra.mxu0 0.0
    %1194 = vmatprep.subr.mxu0 0.0
    %1195 = vmatpush1.msra.mxu0 0.0
    %1196 = vmatprep.subr.mxu0 0.0
    %1197 = vmatpush1.msra.mxu0 0.0
    %1198 = vmatprep.subr.mxu0 0.0
    %1199 = vmatpush1.msra.mxu0 0.0
    %1200 = vmatprep.subr.mxu0 0.0
    %1201 = vmatpush1.msra.mxu0 0.0
    %1202 = vmatprep.subr.mxu0 0.0
    %1203 = vmatpush1.msra.mxu0 0.0
    %1204 = vmatprep.subr.mxu0 0.0
    %1205 = vmatpush1.msra.mxu0 0.0
    %1206 = vmatprep.subr.mxu0 0.0
    %1207 = vmatpush1.msra.mxu0 0.0
    %1208 = vmatprep.subr.mxu0 0.0
    %1209 = vmatpush1.msra.mxu0 0.0
    %1210 = vmatprep.subr.mxu0 0.0
    %1211 = vmatpush1.msra.mxu0 0.0
    %1212 = vmatprep.subr.mxu0 0.0
    %1213 = vmatpush1.msra.mxu0 0.0
    %1214 = vmatprep.subr.mxu0 0.0
    %1215 = vmatpush1.msra.mxu0 0.0
    %1216 = vmatprep.mubr.f32.mxu0 0.0
    %1217 = vmatmul.mubr.f32.gmra.mrb[0].mxu0 %v1033
    %v1218 = vpop.f32.mrb[0].mxu0
    %v1219 = vadd.f32 0.0, %v1218
    %v1220 = vpop.f32.mrb[0].mxu0
    %v1221 = vadd.f32 0.0, %v1220
    %1222 = vdwg.mxu0
    %v1223 = vadd.f32 %v1077, %v1148
    %v1224 = vadd.f32 %v1078, %v1150
    %v1225 = vadd.f32 %v1079, %v1219
    %v1226 = vadd.f32 %v1080, %v1221
    %v1227 = vxor.u32 %v1223, 2147483648
    %v1228 = vmul.f32 %v1227, 1.442695
    %v1229 = vpow.pop %v1228
    %v1230 = vadd.f32 %v1229, 1.0
    %v1231 = vrcp.pop %v1230
    %v1232 = vmul.f32 1.0, %v1231
    %v1233 = vxor.u32 %v1224, 2147483648
    %v1234 = vmul.f32 %v1233, 1.442695
    %v1235 = vpow.pop %v1234
    %v1236 = vadd.f32 %v1235, 1.0
    %v1237 = vrcp.pop %v1236
    %v1238 = vmul.f32 1.0, %v1237
    %v1239 = vtanh.pop %v1225
    %v1240 = vxor.u32 %v1226, 2147483648
    %v1241 = vmul.f32 %v1240, 1.442695
    %v1242 = vpow.pop %v1241
    %v1243 = vadd.f32 %v1242, 1.0
    %v1244 = vrcp.pop %v1243
    %v1245 = vmul.f32 1.0, %v1244
    %v1246 = vmul.f32 %v1238, %v1031
    %v1247 = vmul.f32 %v1232, %v1239
    %v1248 = vadd.f32 %v1246, %v1247
    %v1249 = vtanh.pop %v1248
    %v1250 = vmul.f32 %v1245, %v1249
    %v1251 = vmax.f32 %v1250, 0.0
    %v1252 = vcombine.high %v712, %v712
    %v1254 = vunpack.c.l.s4 1983009808
    %v1255 = vunpack.c.0.s8 %v1254
    %v1256 = vlaneseq
    %v1257 = vshrl.u32 %v1256, 7
    %v1258 = vsub.s32 %v1255, %v1257
    %v1259 = vrot.slane %v712, %v1258
    %v1261 = vunpack.c.l.s4 1983009808
    %v1262 = vunpack.c.0.s8 %v1261
    %v1263 = vlaneseq
    %v1264 = vshrl.u32 %v1263, 7
    %v1265 = vsub.s32 %v1262, %v1264
    %v1266 = vrot.slane %v1252, %v1265
    %v1267 = vcombine.high %v1259, %v1259
    %v1268 = vcombine.high %v1266, %v1266
    %v1273 = vcombine.high %v713, %v713
    %v1275 = vunpack.c.l.s4 1983009808
    %v1276 = vunpack.c.0.s8 %v1275
    %v1277 = vlaneseq
    %v1278 = vshrl.u32 %v1277, 7
    %v1279 = vsub.s32 %v1276, %v1278
    %v1280 = vrot.slane %v713, %v1279
    %v1282 = vunpack.c.l.s4 1983009808
    %v1283 = vunpack.c.0.s8 %v1282
    %v1284 = vlaneseq
    %v1285 = vshrl.u32 %v1284, 7
    %v1286 = vsub.s32 %v1283, %v1285
    %v1287 = vrot.slane %v1273, %v1286
    %v1288 = vcombine.high %v1280, %v1280
    %v1289 = vcombine.high %v1287, %v1287
    %v1294 = vsel %vm814, %v1259, %v1280
    %v1295 = vsel %vm815, %v1267, %v1288
    %v1296 = vsel %vm816, %v1266, %v1287
    %v1297 = vsel %vm817, %v1268, %v1289
    %1298 = vmatprep.subr.mxu0 %v733
    %1299 = vmatpush1.msra.mxu0 %v732
    %1300 = vmatprep.subr.mxu0 %v737
    %1301 = vmatpush1.msra.mxu0 %v736
    %1302 = vmatprep.subr.mxu0 %v741
    %1303 = vmatpush1.msra.mxu0 %v740
    %1304 = vmatprep.subr.mxu0 %v745
    %1305 = vmatpush1.msra.mxu0 %v744
    %1306 = vmatprep.subr.mxu0 %v749
    %1307 = vmatpush1.msra.mxu0 %v748
    %1308 = vmatprep.subr.mxu0 %v753
    %1309 = vmatpush1.msra.mxu0 %v752
    %1310 = vmatprep.subr.mxu0 %v757
    %1311 = vmatpush1.msra.mxu0 %v756
    %1312 = vmatprep.subr.mxu0 %v761
    %1313 = vmatpush1.msra.mxu0 %v760
    %1314 = vmatprep.subr.mxu0 %v765
    %1315 = vmatpush1.msra.mxu0 %v764
    %1316 = vmatprep.subr.mxu0 %v769
    %1317 = vmatpush1.msra.mxu0 %v768
    %1318 = vmatprep.subr.mxu0 %v773
    %1319 = vmatpush1.msra.mxu0 %v772
    %1320 = vmatprep.subr.mxu0 %v777
    %1321 = vmatpush1.msra.mxu0 %v776
    %1322 = vmatprep.subr.mxu0 %v781
    %1323 = vmatpush1.msra.mxu0 %v780
    %1324 = vmatprep.subr.mxu0 %v785
    %1325 = vmatpush1.msra.mxu0 %v784
    %1326 = vmatprep.subr.mxu0 %v789
    %1327 = vmatpush1.msra.mxu0 %v788
    %1328 = vmatprep.subr.mxu0 %v793
    %1329 = vmatpush1.msra.mxu0 %v792
    %1330 = vmatprep.subr.mxu0 0.0
    %1331 = vmatpush1.msra.mxu0 0.0
    %1332 = vmatprep.subr.mxu0 0.0
    %1333 = vmatpush1.msra.mxu0 0.0
    %1334 = vmatprep.subr.mxu0 0.0
    %1335 = vmatpush1.msra.mxu0 0.0
    %1336 = vmatprep.subr.mxu0 0.0
    %1337 = vmatpush1.msra.mxu0 0.0
    %1338 = vmatprep.subr.mxu0 0.0
    %1339 = vmatpush1.msra.mxu0 0.0
    %1340 = vmatprep.subr.mxu0 0.0
    %1341 = vmatpush1.msra.mxu0 0.0
    %1342 = vmatprep.subr.mxu0 0.0
    %1343 = vmatpush1.msra.mxu0 0.0
    %1344 = vmatprep.subr.mxu0 0.0
    %1345 = vmatpush1.msra.mxu0 0.0
    %1346 = vmatprep.subr.mxu0 0.0
    %1347 = vmatpush1.msra.mxu0 0.0
    %1348 = vmatprep.subr.mxu0 0.0
    %1349 = vmatpush1.msra.mxu0 0.0
    %1350 = vmatprep.subr.mxu0 0.0
    %1351 = vmatpush1.msra.mxu0 0.0
    %1352 = vmatprep.subr.mxu0 0.0
    %1353 = vmatpush1.msra.mxu0 0.0
    %1354 = vmatprep.subr.mxu0 0.0
    %1355 = vmatpush1.msra.mxu0 0.0
    %1356 = vmatprep.subr.mxu0 0.0
    %1357 = vmatpush1.msra.mxu0 0.0
    %1358 = vmatprep.subr.mxu0 0.0
    %1359 = vmatpush1.msra.mxu0 0.0
    %1360 = vmatprep.subr.mxu0 0.0
    %1361 = vmatpush1.msra.mxu0 0.0
    %1362 = vmatprep.mubr.f32.mxu0 0.0
    %1363 = vmatmul.mubr.f32.gmra.mrb[0].mxu0 %v1250
    %v1364 = vpop.f32.mrb[0].mxu0
    %v1365 = vadd.f32 0.0, %v1364
    %v1366 = vpop.f32.mrb[0].mxu0
    %v1367 = vadd.f32 0.0, %v1366
    %1368 = vdwg.mxu0
    %1369 = vmatprep.subr.mxu0 %v735
    %1370 = vmatpush1.msra.mxu0 %v734
    %1371 = vmatprep.subr.mxu0 %v739
    %1372 = vmatpush1.msra.mxu0 %v738
    %1373 = vmatprep.subr.mxu0 %v743
    %1374 = vmatpush1.msra.mxu0 %v742
    %1375 = vmatprep.subr.mxu0 %v747
    %1376 = vmatpush1.msra.mxu0 %v746
    %1377 = vmatprep.subr.mxu0 %v751
    %1378 = vmatpush1.msra.mxu0 %v750
    %1379 = vmatprep.subr.mxu0 %v755
    %1380 = vmatpush1.msra.mxu0 %v754
    %1381 = vmatprep.subr.mxu0 %v759
    %1382 = vmatpush1.msra.mxu0 %v758
    %1383 = vmatprep.subr.mxu0 %v763
    %1384 = vmatpush1.msra.mxu0 %v762
    %1385 = vmatprep.subr.mxu0 %v767
    %1386 = vmatpush1.msra.mxu0 %v766
    %1387 = vmatprep.subr.mxu0 %v771
    %1388 = vmatpush1.msra.mxu0 %v770
    %1389 = vmatprep.subr.mxu0 %v775
    %1390 = vmatpush1.msra.mxu0 %v774
    %1391 = vmatprep.subr.mxu0 %v779
    %1392 = vmatpush1.msra.mxu0 %v778
    %1393 = vmatprep.subr.mxu0 %v783
    %1394 = vmatpush1.msra.mxu0 %v782
    %1395 = vmatprep.subr.mxu0 %v787
    %1396 = vmatpush1.msra.mxu0 %v786
    %1397 = vmatprep.subr.mxu0 %v791
    %1398 = vmatpush1.msra.mxu0 %v790
    %1399 = vmatprep.subr.mxu0 %v795
    %1400 = vmatpush1.msra.mxu0 %v794
    %1401 = vmatprep.subr.mxu0 0.0
    %1402 = vmatpush1.msra.mxu0 0.0
    %1403 = vmatprep.subr.mxu0 0.0
    %1404 = vmatpush1.msra.mxu0 0.0
    %1405 = vmatprep.subr.mxu0 0.0
    %1406 = vmatpush1.msra.mxu0 0.0
    %1407 = vmatprep.subr.mxu0 0.0
    %1408 = vmatpush1.msra.mxu0 0.0
    %1409 = vmatprep.subr.mxu0 0.0
    %1410 = vmatpush1.msra.mxu0 0.0
    %1411 = vmatprep.subr.mxu0 0.0
    %1412 = vmatpush1.msra.mxu0 0.0
    %1413 = vmatprep.subr.mxu0 0.0
    %1414 = vmatpush1.msra.mxu0 0.0
    %1415 = vmatprep.subr.mxu0 0.0
    %1416 = vmatpush1.msra.mxu0 0.0
    %1417 = vmatprep.subr.mxu0 0.0
    %1418 = vmatpush1.msra.mxu0 0.0
    %1419 = vmatprep.subr.mxu0 0.0
    %1420 = vmatpush1.msra.mxu0 0.0
    %1421 = vmatprep.subr.mxu0 0.0
    %1422 = vmatpush1.msra.mxu0 0.0
    %1423 = vmatprep.subr.mxu0 0.0
    %1424 = vmatpush1.msra.mxu0 0.0
    %1425 = vmatprep.subr.mxu0 0.0
    %1426 = vmatpush1.msra.mxu0 0.0
    %1427 = vmatprep.subr.mxu0 0.0
    %1428 = vmatpush1.msra.mxu0 0.0
    %1429 = vmatprep.subr.mxu0 0.0
    %1430 = vmatpush1.msra.mxu0 0.0
    %1431 = vmatprep.subr.mxu0 0.0
    %1432 = vmatpush1.msra.mxu0 0.0
    %1433 = vmatprep.mubr.f32.mxu0 0.0
    %1434 = vmatmul.mubr.f32.gmra.mrb[0].mxu0 %v1250
    %v1435 = vpop.f32.mrb[0].mxu0
    %v1436 = vadd.f32 0.0, %v1435
    %v1437 = vpop.f32.mrb[0].mxu0
    %v1438 = vadd.f32 0.0, %v1437
    %1439 = vdwg.mxu0
    %v1440 = vadd.f32 %v1294, %v1365
    %v1441 = vadd.f32 %v1295, %v1367
    %v1442 = vadd.f32 %v1296, %v1436
    %v1443 = vadd.f32 %v1297, %v1438
    %v1444 = vxor.u32 %v1440, 2147483648
    %v1445 = vmul.f32 %v1444, 1.442695
    %v1446 = vpow.pop %v1445
    %v1447 = vadd.f32 %v1446, 1.0
    %v1448 = vrcp.pop %v1447
    %v1449 = vmul.f32 1.0, %v1448
    %v1450 = vxor.u32 %v1441, 2147483648
    %v1451 = vmul.f32 %v1450, 1.442695
    %v1452 = vpow.pop %v1451
    %v1453 = vadd.f32 %v1452, 1.0
    %v1454 = vrcp.pop %v1453
    %v1455 = vmul.f32 1.0, %v1454
    %v1456 = vtanh.pop %v1442
    %v1457 = vxor.u32 %v1443, 2147483648
    %v1458 = vmul.f32 %v1457, 1.442695
    %v1459 = vpow.pop %v1458
    %v1460 = vadd.f32 %v1459, 1.0
    %v1461 = vrcp.pop %v1460
    %v1462 = vmul.f32 1.0, %v1461
    %v1463 = vmul.f32 %v1455, %v1248
    %v1464 = vmul.f32 %v1449, %v1456
    %v1465 = vadd.f32 %v1463, %v1464
    %v1466 = vtanh.pop %v1465
    %v1467 = vmul.f32 %v1462, %v1466
    %v1468 = vmax.f32 %v1467, 0.0
    %v1469 = vsel %vm814, %v1280, %v1259
    %v1470 = vsel %vm815, %v1288, %v1267
    %v1471 = vsel %vm816, %v1287, %v1266
    %v1472 = vsel %vm817, %v1289, %v1268
    %1473 = vmatprep.subr.mxu0 %v733
    %1474 = vmatpush1.msra.mxu0 %v732
    %1475 = vmatprep.subr.mxu0 %v737
    %1476 = vmatpush1.msra.mxu0 %v736
    %1477 = vmatprep.subr.mxu0 %v741
    %1478 = vmatpush1.msra.mxu0 %v740
    %1479 = vmatprep.subr.mxu0 %v745
    %1480 = vmatpush1.msra.mxu0 %v744
    %1481 = vmatprep.subr.mxu0 %v749
    %1482 = vmatpush1.msra.mxu0 %v748
    %1483 = vmatprep.subr.mxu0 %v753
    %1484 = vmatpush1.msra.mxu0 %v752
    %1485 = vmatprep.subr.mxu0 %v757
    %1486 = vmatpush1.msra.mxu0 %v756
    %1487 = vmatprep.subr.mxu0 %v761
    %1488 = vmatpush1.msra.mxu0 %v760
    %1489 = vmatprep.subr.mxu0 %v765
    %1490 = vmatpush1.msra.mxu0 %v764
    %1491 = vmatprep.subr.mxu0 %v769
    %1492 = vmatpush1.msra.mxu0 %v768
    %1493 = vmatprep.subr.mxu0 %v773
    %1494 = vmatpush1.msra.mxu0 %v772
    %1495 = vmatprep.subr.mxu0 %v777
    %1496 = vmatpush1.msra.mxu0 %v776
    %1497 = vmatprep.subr.mxu0 %v781
    %1498 = vmatpush1.msra.mxu0 %v780
    %1499 = vmatprep.subr.mxu0 %v785
    %1500 = vmatpush1.msra.mxu0 %v784
    %1501 = vmatprep.subr.mxu0 %v789
    %1502 = vmatpush1.msra.mxu0 %v788
    %1503 = vmatprep.subr.mxu0 %v793
    %1504 = vmatpush1.msra.mxu0 %v792
    %1505 = vmatprep.subr.mxu0 0.0
    %1506 = vmatpush1.msra.mxu0 0.0
    %1507 = vmatprep.subr.mxu0 0.0
    %1508 = vmatpush1.msra.mxu0 0.0
    %1509 = vmatprep.subr.mxu0 0.0
    %1510 = vmatpush1.msra.mxu0 0.0
    %1511 = vmatprep.subr.mxu0 0.0
    %1512 = vmatpush1.msra.mxu0 0.0
    %1513 = vmatprep.subr.mxu0 0.0
    %1514 = vmatpush1.msra.mxu0 0.0
    %1515 = vmatprep.subr.mxu0 0.0
    %1516 = vmatpush1.msra.mxu0 0.0
    %1517 = vmatprep.subr.mxu0 0.0
    %1518 = vmatpush1.msra.mxu0 0.0
    %1519 = vmatprep.subr.mxu0 0.0
    %1520 = vmatpush1.msra.mxu0 0.0
    %1521 = vmatprep.subr.mxu0 0.0
    %1522 = vmatpush1.msra.mxu0 0.0
    %1523 = vmatprep.subr.mxu0 0.0
    %1524 = vmatpush1.msra.mxu0 0.0
    %1525 = vmatprep.subr.mxu0 0.0
    %1526 = vmatpush1.msra.mxu0 0.0
    %1527 = vmatprep.subr.mxu0 0.0
    %1528 = vmatpush1.msra.mxu0 0.0
    %1529 = vmatprep.subr.mxu0 0.0
    %1530 = vmatpush1.msra.mxu0 0.0
    %1531 = vmatprep.subr.mxu0 0.0
    %1532 = vmatpush1.msra.mxu0 0.0
    %1533 = vmatprep.subr.mxu0 0.0
    %1534 = vmatpush1.msra.mxu0 0.0
    %1535 = vmatprep.subr.mxu0 0.0
    %1536 = vmatpush1.msra.mxu0 0.0
    %1537 = vmatprep.mubr.f32.mxu0 0.0
    %1538 = vmatmul.mubr.f32.gmra.mrb[0].mxu0 %v1467
    %v1539 = vpop.f32.mrb[0].mxu0
    %v1540 = vadd.f32 0.0, %v1539
    %v1541 = vpop.f32.mrb[0].mxu0
    %v1542 = vadd.f32 0.0, %v1541
    %1543 = vdwg.mxu0
    %1544 = vmatprep.subr.mxu0 %v735
    %1545 = vmatpush1.msra.mxu0 %v734
    %1546 = vmatprep.subr.mxu0 %v739
    %1547 = vmatpush1.msra.mxu0 %v738
    %1548 = vmatprep.subr.mxu0 %v743
    %1549 = vmatpush1.msra.mxu0 %v742
    %1550 = vmatprep.subr.mxu0 %v747
    %1551 = vmatpush1.msra.mxu0 %v746
    %1552 = vmatprep.subr.mxu0 %v751
    %1553 = vmatpush1.msra.mxu0 %v750
    %1554 = vmatprep.subr.mxu0 %v755
    %1555 = vmatpush1.msra.mxu0 %v754
    %1556 = vmatprep.subr.mxu0 %v759
    %1557 = vmatpush1.msra.mxu0 %v758
    %1558 = vmatprep.subr.mxu0 %v763
    %1559 = vmatpush1.msra.mxu0 %v762
    %1560 = vmatprep.subr.mxu0 %v767
    %1561 = vmatpush1.msra.mxu0 %v766
    %1562 = vmatprep.subr.mxu0 %v771
    %1563 = vmatpush1.msra.mxu0 %v770
    %1564 = vmatprep.subr.mxu0 %v775
    %1565 = vmatpush1.msra.mxu0 %v774
    %1566 = vmatprep.subr.mxu0 %v779
    %1567 = vmatpush1.msra.mxu0 %v778
    %1568 = vmatprep.subr.mxu0 %v783
    %1569 = vmatpush1.msra.mxu0 %v782
    %1570 = vmatprep.subr.mxu0 %v787
    %1571 = vmatpush1.msra.mxu0 %v786
    %1572 = vmatprep.subr.mxu0 %v791
    %1573 = vmatpush1.msra.mxu0 %v790
    %1574 = vmatprep.subr.mxu0 %v795
    %1575 = vmatpush1.msra.mxu0 %v794
    %1576 = vmatprep.subr.mxu0 0.0
    %1577 = vmatpush1.msra.mxu0 0.0
    %1578 = vmatprep.subr.mxu0 0.0
    %1579 = vmatpush1.msra.mxu0 0.0
    %1580 = vmatprep.subr.mxu0 0.0
    %1581 = vmatpush1.msra.mxu0 0.0
    %1582 = vmatprep.subr.mxu0 0.0
    %1583 = vmatpush1.msra.mxu0 0.0
    %1584 = vmatprep.subr.mxu0 0.0
    %1585 = vmatpush1.msra.mxu0 0.0
    %1586 = vmatprep.subr.mxu0 0.0
    %1587 = vmatpush1.msra.mxu0 0.0
    %1588 = vmatprep.subr.mxu0 0.0
    %1589 = vmatpush1.msra.mxu0 0.0
    %1590 = vmatprep.subr.mxu0 0.0
    %1591 = vmatpush1.msra.mxu0 0.0
    %1592 = vmatprep.subr.mxu0 0.0
    %1593 = vmatpush1.msra.mxu0 0.0
    %1594 = vmatprep.subr.mxu0 0.0
    %1595 = vmatpush1.msra.mxu0 0.0
    %1596 = vmatprep.subr.mxu0 0.0
    %1597 = vmatpush1.msra.mxu0 0.0
    %1598 = vmatprep.subr.mxu0 0.0
    %1599 = vmatpush1.msra.mxu0 0.0
    %1600 = vmatprep.subr.mxu0 0.0
    %1601 = vmatpush1.msra.mxu0 0.0
    %1602 = vmatprep.subr.mxu0 0.0
    %1603 = vmatpush1.msra.mxu0 0.0
    %1604 = vmatprep.subr.mxu0 0.0
    %1605 = vmatpush1.msra.mxu0 0.0
    %1606 = vmatprep.subr.mxu0 0.0
    %1607 = vmatpush1.msra.mxu0 0.0
    %1608 = vmatprep.mubr.f32.mxu0 0.0
    %1609 = vmatmul.mubr.f32.gmra.mrb[0].mxu0 %v1467
    %v1610 = vpop.f32.mrb[0].mxu0
    %v1611 = vadd.f32 0.0, %v1610
    %v1612 = vpop.f32.mrb[0].mxu0
    %v1613 = vadd.f32 0.0, %v1612
    %1614 = vdwg.mxu0
    %v1615 = vadd.f32 %v1469, %v1540
    %v1616 = vadd.f32 %v1470, %v1542
    %v1617 = vadd.f32 %v1471, %v1611
    %v1618 = vadd.f32 %v1472, %v1613
    %v1619 = vxor.u32 %v1615, 2147483648
    %v1620 = vmul.f32 %v1619, 1.442695
    %v1621 = vpow.pop %v1620
    %v1622 = vadd.f32 %v1621, 1.0
    %v1623 = vrcp.pop %v1622
    %v1624 = vmul.f32 1.0, %v1623
    %v1625 = vxor.u32 %v1616, 2147483648
    %v1626 = vmul.f32 %v1625, 1.442695
    %v1627 = vpow.pop %v1626
    %v1628 = vadd.f32 %v1627, 1.0
    %v1629 = vrcp.pop %v1628
    %v1630 = vmul.f32 1.0, %v1629
    %v1631 = vtanh.pop %v1617
    %v1632 = vxor.u32 %v1618, 2147483648
    %v1633 = vmul.f32 %v1632, 1.442695
    %v1634 = vpow.pop %v1633
    %v1635 = vadd.f32 %v1634, 1.0
    %v1636 = vrcp.pop %v1635
    %v1637 = vmul.f32 1.0, %v1636
    %v1638 = vmul.f32 %v1630, %v1465
    %v1639 = vmul.f32 %v1624, %v1631
    %v1640 = vadd.f32 %v1638, %v1639
    %v1641 = vtanh.pop %v1640
    %v1642 = vmul.f32 %v1637, %v1641
    %v1643 = vmax.f32 %v1642, 0.0
    %v1644 = vsel %vm814, %v1063, %v1042
    %v1645 = vsel %vm815, %v1071, %v1050
    %v1646 = vsel %vm816, %v1070, %v1049
    %v1647 = vsel %vm817, %v1072, %v1051
    %1648 = vmatprep.subr.mxu0 %v733
    %1649 = vmatpush1.msra.mxu0 %v732
    %1650 = vmatprep.subr.mxu0 %v737
    %1651 = vmatpush1.msra.mxu0 %v736
    %1652 = vmatprep.subr.mxu0 %v741
    %1653 = vmatpush1.msra.mxu0 %v740
    %1654 = vmatprep.subr.mxu0 %v745
    %1655 = vmatpush1.msra.mxu0 %v744
    %1656 = vmatprep.subr.mxu0 %v749
    %1657 = vmatpush1.msra.mxu0 %v748
    %1658 = vmatprep.subr.mxu0 %v753
    %1659 = vmatpush1.msra.mxu0 %v752
    %1660 = vmatprep.subr.mxu0 %v757
    %1661 = vmatpush1.msra.mxu0 %v756
    %1662 = vmatprep.subr.mxu0 %v761
    %1663 = vmatpush1.msra.mxu0 %v760
    %1664 = vmatprep.subr.mxu0 %v765
    %1665 = vmatpush1.msra.mxu0 %v764
    %1666 = vmatprep.subr.mxu0 %v769
    %1667 = vmatpush1.msra.mxu0 %v768
    %1668 = vmatprep.subr.mxu0 %v773
    %1669 = vmatpush1.msra.mxu0 %v772
    %1670 = vmatprep.subr.mxu0 %v777
    %1671 = vmatpush1.msra.mxu0 %v776
    %1672 = vmatprep.subr.mxu0 %v781
    %1673 = vmatpush1.msra.mxu0 %v780
    %1674 = vmatprep.subr.mxu0 %v785
    %1675 = vmatpush1.msra.mxu0 %v784
    %1676 = vmatprep.subr.mxu0 %v789
    %1677 = vmatpush1.msra.mxu0 %v788
    %1678 = vmatprep.subr.mxu0 %v793
    %1679 = vmatpush1.msra.mxu0 %v792
    %1680 = vmatprep.subr.mxu0 0.0
    %1681 = vmatpush1.msra.mxu0 0.0
    %1682 = vmatprep.subr.mxu0 0.0
    %1683 = vmatpush1.msra.mxu0 0.0
    %1684 = vmatprep.subr.mxu0 0.0
    %1685 = vmatpush1.msra.mxu0 0.0
    %1686 = vmatprep.subr.mxu0 0.0
    %1687 = vmatpush1.msra.mxu0 0.0
    %1688 = vmatprep.subr.mxu0 0.0
    %1689 = vmatpush1.msra.mxu0 0.0
    %1690 = vmatprep.subr.mxu0 0.0
    %1691 = vmatpush1.msra.mxu0 0.0
    %1692 = vmatprep.subr.mxu0 0.0
    %1693 = vmatpush1.msra.mxu0 0.0
    %1694 = vmatprep.subr.mxu0 0.0
    %1695 = vmatpush1.msra.mxu0 0.0
    %1696 = vmatprep.subr.mxu0 0.0
    %1697 = vmatpush1.msra.mxu0 0.0
    %1698 = vmatprep.subr.mxu0 0.0
    %1699 = vmatpush1.msra.mxu0 0.0
    %1700 = vmatprep.subr.mxu0 0.0
    %1701 = vmatpush1.msra.mxu0 0.0
    %1702 = vmatprep.subr.mxu0 0.0
    %1703 = vmatpush1.msra.mxu0 0.0
    %1704 = vmatprep.subr.mxu0 0.0
    %1705 = vmatpush1.msra.mxu0 0.0
    %1706 = vmatprep.subr.mxu0 0.0
    %1707 = vmatpush1.msra.mxu0 0.0
    %1708 = vmatprep.subr.mxu0 0.0
    %1709 = vmatpush1.msra.mxu0 0.0
    %1710 = vmatprep.subr.mxu0 0.0
    %1711 = vmatpush1.msra.mxu0 0.0
    %1712 = vmatprep.mubr.f32.mxu0 0.0
    %1713 = vmatmul.mubr.f32.gmra.mrb[0].mxu0 %v1642
    %v1714 = vpop.f32.mrb[0].mxu0
    %v1715 = vadd.f32 0.0, %v1714
    %v1716 = vpop.f32.mrb[0].mxu0
    %v1717 = vadd.f32 0.0, %v1716
    %1718 = vdwg.mxu0
    %1719 = vmatprep.subr.mxu0 %v735
    %1720 = vmatpush1.msra.mxu0 %v734
    %1721 = vmatprep.subr.mxu0 %v739
    %1722 = vmatpush1.msra.mxu0 %v738
    %1723 = vmatprep.subr.mxu0 %v743
    %1724 = vmatpush1.msra.mxu0 %v742
    %1725 = vmatprep.subr.mxu0 %v747
    %1726 = vmatpush1.msra.mxu0 %v746
    %1727 = vmatprep.subr.mxu0 %v751
    %1728 = vmatpush1.msra.mxu0 %v750
    %1729 = vmatprep.subr.mxu0 %v755
    %1730 = vmatpush1.msra.mxu0 %v754
    %1731 = vmatprep.subr.mxu0 %v759
    %1732 = vmatpush1.msra.mxu0 %v758
    %1733 = vmatprep.subr.mxu0 %v763
    %1734 = vmatpush1.msra.mxu0 %v762
    %1735 = vmatprep.subr.mxu0 %v767
    %1736 = vmatpush1.msra.mxu0 %v766
    %1737 = vmatprep.subr.mxu0 %v771
    %1738 = vmatpush1.msra.mxu0 %v770
    %1739 = vmatprep.subr.mxu0 %v775
    %1740 = vmatpush1.msra.mxu0 %v774
    %1741 = vmatprep.subr.mxu0 %v779
    %1742 = vmatpush1.msra.mxu0 %v778
    %1743 = vmatprep.subr.mxu0 %v783
    %1744 = vmatpush1.msra.mxu0 %v782
    %1745 = vmatprep.subr.mxu0 %v787
    %1746 = vmatpush1.msra.mxu0 %v786
    %1747 = vmatprep.subr.mxu0 %v791
    %1748 = vmatpush1.msra.mxu0 %v790
    %1749 = vmatprep.subr.mxu0 %v795
    %1750 = vmatpush1.msra.mxu0 %v794
    %1751 = vmatprep.subr.mxu0 0.0
    %1752 = vmatpush1.msra.mxu0 0.0
    %1753 = vmatprep.subr.mxu0 0.0
    %1754 = vmatpush1.msra.mxu0 0.0
    %1755 = vmatprep.subr.mxu0 0.0
    %1756 = vmatpush1.msra.mxu0 0.0
    %1757 = vmatprep.subr.mxu0 0.0
    %1758 = vmatpush1.msra.mxu0 0.0
    %1759 = vmatprep.subr.mxu0 0.0
    %1760 = vmatpush1.msra.mxu0 0.0
    %1761 = vmatprep.subr.mxu0 0.0
    %1762 = vmatpush1.msra.mxu0 0.0
    %1763 = vmatprep.subr.mxu0 0.0
    %1764 = vmatpush1.msra.mxu0 0.0
    %1765 = vmatprep.subr.mxu0 0.0
    %1766 = vmatpush1.msra.mxu0 0.0
    %1767 = vmatprep.subr.mxu0 0.0
    %1768 = vmatpush1.msra.mxu0 0.0
    %1769 = vmatprep.subr.mxu0 0.0
    %1770 = vmatpush1.msra.mxu0 0.0
    %1771 = vmatprep.subr.mxu0 0.0
    %1772 = vmatpush1.msra.mxu0 0.0
    %1773 = vmatprep.subr.mxu0 0.0
    %1774 = vmatpush1.msra.mxu0 0.0
    %1775 = vmatprep.subr.mxu0 0.0
    %1776 = vmatpush1.msra.mxu0 0.0
    %1777 = vmatprep.subr.mxu0 0.0
    %1778 = vmatpush1.msra.mxu0 0.0
    %1779 = vmatprep.subr.mxu0 0.0
    %1780 = vmatpush1.msra.mxu0 0.0
    %1781 = vmatprep.subr.mxu0 0.0
    %1782 = vmatpush1.msra.mxu0 0.0
    %1783 = vmatprep.mubr.f32.mxu0 0.0
    %1784 = vmatmul.mubr.f32.gmra.mrb[0].mxu0 %v1642
    %v1785 = vpop.f32.mrb[0].mxu0
    %v1786 = vadd.f32 0.0, %v1785
    %v1787 = vpop.f32.mrb[0].mxu0
    %v1788 = vadd.f32 0.0, %v1787
    %1789 = vdwg.mxu0
    %v1790 = vadd.f32 %v1644, %v1715
    %v1791 = vadd.f32 %v1645, %v1717
    %v1792 = vadd.f32 %v1646, %v1786
    %v1793 = vadd.f32 %v1647, %v1788
    %v1794 = vxor.u32 %v1790, 2147483648
    %v1795 = vmul.f32 %v1794, 1.442695
    %v1796 = vpow.pop %v1795
    %v1797 = vadd.f32 %v1796, 1.0
    %v1798 = vrcp.pop %v1797
    %v1799 = vmul.f32 1.0, %v1798
    %v1800 = vxor.u32 %v1791, 2147483648
    %v1801 = vmul.f32 %v1800, 1.442695
    %v1802 = vpow.pop %v1801
    %v1803 = vadd.f32 %v1802, 1.0
    %v1804 = vrcp.pop %v1803
    %v1805 = vmul.f32 1.0, %v1804
    %v1806 = vtanh.pop %v1792
    %v1807 = vxor.u32 %v1793, 2147483648
    %v1808 = vmul.f32 %v1807, 1.442695
    %v1809 = vpow.pop %v1808
    %v1810 = vadd.f32 %v1809, 1.0
    %v1811 = vrcp.pop %v1810
    %v1812 = vmul.f32 1.0, %v1811
    %v1813 = vmul.f32 %v1805, %v1640
    %v1814 = vmul.f32 %v1799, %v1806
    %v1815 = vadd.f32 %v1813, %v1814
    %v1816 = vtanh.pop %v1815
    %v1817 = vmul.f32 %v1812, %v1816
    %v1818 = vmax.f32 %v1817, 0.0
    %v1819 = vsel %vm814, %v846, %v825
    %v1820 = vsel %vm815, %v854, %v833
    %v1821 = vsel %vm816, %v853, %v832
    %v1822 = vsel %vm817, %v855, %v834
    %1823 = vmatprep.subr.mxu0 %v733
    %1824 = vmatpush1.msra.mxu0 %v732
    %1825 = vmatprep.subr.mxu0 %v737
    %1826 = vmatpush1.msra.mxu0 %v736
    %1827 = vmatprep.subr.mxu0 %v741
    %1828 = vmatpush1.msra.mxu0 %v740
    %1829 = vmatprep.subr.mxu0 %v745
    %1830 = vmatpush1.msra.mxu0 %v744
    %1831 = vmatprep.subr.mxu0 %v749
    %1832 = vmatpush1.msra.mxu0 %v748
    %1833 = vmatprep.subr.mxu0 %v753
    %1834 = vmatpush1.msra.mxu0 %v752
    %1835 = vmatprep.subr.mxu0 %v757
    %1836 = vmatpush1.msra.mxu0 %v756
    %1837 = vmatprep.subr.mxu0 %v761
    %1838 = vmatpush1.msra.mxu0 %v760
    %1839 = vmatprep.subr.mxu0 %v765
    %1840 = vmatpush1.msra.mxu0 %v764
    %1841 = vmatprep.subr.mxu0 %v769
    %1842 = vmatpush1.msra.mxu0 %v768
    %1843 = vmatprep.subr.mxu0 %v773
    %1844 = vmatpush1.msra.mxu0 %v772
    %1845 = vmatprep.subr.mxu0 %v777
    %1846 = vmatpush1.msra.mxu0 %v776
    %1847 = vmatprep.subr.mxu0 %v781
    %1848 = vmatpush1.msra.mxu0 %v780
    %1849 = vmatprep.subr.mxu0 %v785
    %1850 = vmatpush1.msra.mxu0 %v784
    %1851 = vmatprep.subr.mxu0 %v789
    %1852 = vmatpush1.msra.mxu0 %v788
    %1853 = vmatprep.subr.mxu0 %v793
    %1854 = vmatpush1.msra.mxu0 %v792
    %1855 = vmatprep.subr.mxu0 0.0
    %1856 = vmatpush1.msra.mxu0 0.0
    %1857 = vmatprep.subr.mxu0 0.0
    %1858 = vmatpush1.msra.mxu0 0.0
    %1859 = vmatprep.subr.mxu0 0.0
    %1860 = vmatpush1.msra.mxu0 0.0
    %1861 = vmatprep.subr.mxu0 0.0
    %1862 = vmatpush1.msra.mxu0 0.0
    %1863 = vmatprep.subr.mxu0 0.0
    %1864 = vmatpush1.msra.mxu0 0.0
    %1865 = vmatprep.subr.mxu0 0.0
    %1866 = vmatpush1.msra.mxu0 0.0
    %1867 = vmatprep.subr.mxu0 0.0
    %1868 = vmatpush1.msra.mxu0 0.0
    %1869 = vmatprep.subr.mxu0 0.0
    %1870 = vmatpush1.msra.mxu0 0.0
    %1871 = vmatprep.subr.mxu0 0.0
    %1872 = vmatpush1.msra.mxu0 0.0
    %1873 = vmatprep.subr.mxu0 0.0
    %1874 = vmatpush1.msra.mxu0 0.0
    %1875 = vmatprep.subr.mxu0 0.0
    %1876 = vmatpush1.msra.mxu0 0.0
    %1877 = vmatprep.subr.mxu0 0.0
    %1878 = vmatpush1.msra.mxu0 0.0
    %1879 = vmatprep.subr.mxu0 0.0
    %1880 = vmatpush1.msra.mxu0 0.0
    %1881 = vmatprep.subr.mxu0 0.0
    %1882 = vmatpush1.msra.mxu0 0.0
    %1883 = vmatprep.subr.mxu0 0.0
    %1884 = vmatpush1.msra.mxu0 0.0
    %1885 = vmatprep.subr.mxu0 0.0
    %1886 = vmatpush1.msra.mxu0 0.0
    %1887 = vmatprep.mubr.f32.mxu0 0.0
    %1888 = vmatmul.mubr.f32.gmra.mrb[0].mxu0 %v1817
    %v1889 = vpop.f32.mrb[0].mxu0
    %v1890 = vadd.f32 0.0, %v1889
    %v1891 = vpop.f32.mrb[0].mxu0
    %v1892 = vadd.f32 0.0, %v1891
    %1893 = vdwg.mxu0
    %1894 = vmatprep.subr.mxu0 %v735
    %1895 = vmatpush1.msra.mxu0 %v734
    %1896 = vmatprep.subr.mxu0 %v739
    %1897 = vmatpush1.msra.mxu0 %v738
    %1898 = vmatprep.subr.mxu0 %v743
    %1899 = vmatpush1.msra.mxu0 %v742
    %1900 = vmatprep.subr.mxu0 %v747
    %1901 = vmatpush1.msra.mxu0 %v746
    %1902 = vmatprep.subr.mxu0 %v751
    %1903 = vmatpush1.msra.mxu0 %v750
    %1904 = vmatprep.subr.mxu0 %v755
    %1905 = vmatpush1.msra.mxu0 %v754
    %1906 = vmatprep.subr.mxu0 %v759
    %1907 = vmatpush1.msra.mxu0 %v758
    %1908 = vmatprep.subr.mxu0 %v763
    %1909 = vmatpush1.msra.mxu0 %v762
    %1910 = vmatprep.subr.mxu0 %v767
    %1911 = vmatpush1.msra.mxu0 %v766
    %1912 = vmatprep.subr.mxu0 %v771
    %1913 = vmatpush1.msra.mxu0 %v770
    %1914 = vmatprep.subr.mxu0 %v775
    %1915 = vmatpush1.msra.mxu0 %v774
    %1916 = vmatprep.subr.mxu0 %v779
    %1917 = vmatpush1.msra.mxu0 %v778
    %1918 = vmatprep.subr.mxu0 %v783
    %1919 = vmatpush1.msra.mxu0 %v782
    %1920 = vmatprep.subr.mxu0 %v787
    %1921 = vmatpush1.msra.mxu0 %v786
    %1922 = vmatprep.subr.mxu0 %v791
    %1923 = vmatpush1.msra.mxu0 %v790
    %1924 = vmatprep.subr.mxu0 %v795
    %1925 = vmatpush1.msra.mxu0 %v794
    %1926 = vmatprep.subr.mxu0 0.0
    %1927 = vmatpush1.msra.mxu0 0.0
    %1928 = vmatprep.subr.mxu0 0.0
    %1929 = vmatpush1.msra.mxu0 0.0
    %1930 = vmatprep.subr.mxu0 0.0
    %1931 = vmatpush1.msra.mxu0 0.0
    %1932 = vmatprep.subr.mxu0 0.0
    %1933 = vmatpush1.msra.mxu0 0.0
    %1934 = vmatprep.subr.mxu0 0.0
    %1935 = vmatpush1.msra.mxu0 0.0
    %1936 = vmatprep.subr.mxu0 0.0
    %1937 = vmatpush1.msra.mxu0 0.0
    %1938 = vmatprep.subr.mxu0 0.0
    %1939 = vmatpush1.msra.mxu0 0.0
    %1940 = vmatprep.subr.mxu0 0.0
    %1941 = vmatpush1.msra.mxu0 0.0
    %1942 = vmatprep.subr.mxu0 0.0
    %1943 = vmatpush1.msra.mxu0 0.0
    %1944 = vmatprep.subr.mxu0 0.0
    %1945 = vmatpush1.msra.mxu0 0.0
    %1946 = vmatprep.subr.mxu0 0.0
    %1947 = vmatpush1.msra.mxu0 0.0
    %1948 = vmatprep.subr.mxu0 0.0
    %1949 = vmatpush1.msra.mxu0 0.0
    %1950 = vmatprep.subr.mxu0 0.0
    %1951 = vmatpush1.msra.mxu0 0.0
    %1952 = vmatprep.subr.mxu0 0.0
    %1953 = vmatpush1.msra.mxu0 0.0
    %1954 = vmatprep.subr.mxu0 0.0
    %1955 = vmatpush1.msra.mxu0 0.0
    %1956 = vmatprep.subr.mxu0 0.0
    %1957 = vmatpush1.msra.mxu0 0.0
    %1958 = vmatprep.mubr.f32.mxu0 0.0
    %1959 = vmatmul.mubr.f32.gmra.mrb[0].mxu0 %v1817
    %v1960 = vpop.f32.mrb[0].mxu0
    %v1961 = vadd.f32 0.0, %v1960
    %v1962 = vpop.f32.mrb[0].mxu0
    %v1963 = vadd.f32 0.0, %v1962
    %1964 = vdwg.mxu0
    %v1965 = vadd.f32 %v1819, %v1890
    %v1966 = vadd.f32 %v1820, %v1892
    %v1967 = vadd.f32 %v1821, %v1961
    %v1968 = vadd.f32 %v1822, %v1963
    %v1969 = vxor.u32 %v1965, 2147483648
    %v1970 = vmul.f32 %v1969, 1.442695
    %v1971 = vpow.pop %v1970
    %v1972 = vadd.f32 %v1971, 1.0
    %v1973 = vrcp.pop %v1972
    %v1974 = vmul.f32 1.0, %v1973
    %v1975 = vxor.u32 %v1966, 2147483648
    %v1976 = vmul.f32 %v1975, 1.442695
    %v1977 = vpow.pop %v1976
    %v1978 = vadd.f32 %v1977, 1.0
    %v1979 = vrcp.pop %v1978
    %v1980 = vmul.f32 1.0, %v1979
    %v1981 = vtanh.pop %v1967
    %v1982 = vxor.u32 %v1968, 2147483648
    %v1983 = vmul.f32 %v1982, 1.442695
    %v1984 = vpow.pop %v1983
    %v1985 = vadd.f32 %v1984, 1.0
    %v1986 = vrcp.pop %v1985
    %v1987 = vmul.f32 1.0, %v1986
    %v1988 = vmul.f32 %v1980, %v1815
    %v1989 = vmul.f32 %v1974, %v1981
    %v1990 = vadd.f32 %v1988, %v1989
    %v1991 = vtanh.pop %v1990
    %v1992 = vmul.f32 %v1987, %v1991
    %v1993 = vmax.f32 %v1992, 0.0
    %v1994 = vsel %vm809, 1, 0
    %vm1995 = vcmp.eq.s32.totalorder %v1994, 1
    %v1996 = vsel %vm1995, %v1034, %v1993
    %v1997 = vsel %vm1995, %v1251, %v1818
    %v1998 = vsel %vm1995, %v1468, %v1643
    %v1999 = vsel %vm1995, %v1643, %v1468
    %v2000 = vsel %vm1995, %v1818, %v1251
    %v2001 = vsel %vm1995, %v1993, %v1034
    %v2004 = vunpack.c.l.s4 1966171168
    %v2005 = vunpack.c.0.s8 %v2004
    %v2006 = vlaneseq
    %v2007 = vshrl.u32 %v2006, 7
    %v2008 = vsub.s32 %v2005, %v2007
    %v2009 = vrot.slane %v1996, %v2008
    %v2010 = vcombine.high %v2009, %v2009
    %v2012 = vunpack.c.l.s4 1966171168
    %v2013 = vunpack.c.0.s8 %v2012
    %v2014 = vlaneseq
    %v2015 = vshrl.u32 %v2014, 7
    %v2016 = vsub.s32 %v2013, %v2015
    %v2017 = vrot.slane %v2009, %v2016
    %v2019 = vunpack.c.l.s4 1966171168
    %v2020 = vunpack.c.0.s8 %v2019
    %v2021 = vlaneseq
    %v2022 = vshrl.u32 %v2021, 7
    %v2023 = vsub.s32 %v2020, %v2022
    %v2024 = vrot.slane %v2010, %v2023
    %v2029 = vunpack.c.l.s4 1966171168
    %v2030 = vunpack.c.0.s8 %v2029
    %v2031 = vlaneseq
    %v2032 = vshrl.u32 %v2031, 7
    %v2033 = vsub.s32 %v2030, %v2032
    %v2034 = vrot.slane %v1997, %v2033
    %v2035 = vcombine.high %v2034, %v2034
    %v2037 = vunpack.c.l.s4 1966171168
    %v2038 = vunpack.c.0.s8 %v2037
    %v2039 = vlaneseq
    %v2040 = vshrl.u32 %v2039, 7
    %v2041 = vsub.s32 %v2038, %v2040
    %v2042 = vrot.slane %v2034, %v2041
    %v2044 = vunpack.c.l.s4 1966171168
    %v2045 = vunpack.c.0.s8 %v2044
    %v2046 = vlaneseq
    %v2047 = vshrl.u32 %v2046, 7
    %v2048 = vsub.s32 %v2045, %v2047
    %v2049 = vrot.slane %v2035, %v2048
    %v2052 = vunpack.c.l.s4 1966171168
    %v2053 = vunpack.c.0.s8 %v2052
    %v2054 = vlaneseq
    %v2055 = vshrl.u32 %v2054, 7
    %v2056 = vsub.s32 %v2053, %v2055
    %v2057 = vrot.slane %v1998, %v2056
    %v2058 = vcombine.high %v2057, %v2057
    %v2060 = vunpack.c.l.s4 1966171168
    %v2061 = vunpack.c.0.s8 %v2060
    %v2062 = vlaneseq
    %v2063 = vshrl.u32 %v2062, 7
    %v2064 = vsub.s32 %v2061, %v2063
    %v2065 = vrot.slane %v2057, %v2064
    %v2067 = vunpack.c.l.s4 1966171168
    %v2068 = vunpack.c.0.s8 %v2067
    %v2069 = vlaneseq
    %v2070 = vshrl.u32 %v2069, 7
    %v2071 = vsub.s32 %v2068, %v2070
    %v2072 = vrot.slane %v2058, %v2071
    %v2075 = vunpack.c.l.s4 1966171168
    %v2076 = vunpack.c.0.s8 %v2075
    %v2077 = vlaneseq
    %v2078 = vshrl.u32 %v2077, 7
    %v2079 = vsub.s32 %v2076, %v2078
    %v2080 = vrot.slane %v1999, %v2079
    %v2081 = vcombine.high %v2080, %v2080
    %v2083 = vunpack.c.l.s4 1966171168
    %v2084 = vunpack.c.0.s8 %v2083
    %v2085 = vlaneseq
    %v2086 = vshrl.u32 %v2085, 7
    %v2087 = vsub.s32 %v2084, %v2086
    %v2088 = vrot.slane %v2080, %v2087
    %v2090 = vunpack.c.l.s4 1966171168
    %v2091 = vunpack.c.0.s8 %v2090
    %v2092 = vlaneseq
    %v2093 = vshrl.u32 %v2092, 7
    %v2094 = vsub.s32 %v2091, %v2093
    %v2095 = vrot.slane %v2081, %v2094
    %v2098 = vunpack.c.l.s4 1966171168
    %v2099 = vunpack.c.0.s8 %v2098
    %v2100 = vlaneseq
    %v2101 = vshrl.u32 %v2100, 7
    %v2102 = vsub.s32 %v2099, %v2101
    %v2103 = vrot.slane %v2000, %v2102
    %v2104 = vcombine.high %v2103, %v2103
    %v2106 = vunpack.c.l.s4 1966171168
    %v2107 = vunpack.c.0.s8 %v2106
    %v2108 = vlaneseq
    %v2109 = vshrl.u32 %v2108, 7
    %v2110 = vsub.s32 %v2107, %v2109
    %v2111 = vrot.slane %v2103, %v2110
    %v2113 = vunpack.c.l.s4 1966171168
    %v2114 = vunpack.c.0.s8 %v2113
    %v2115 = vlaneseq
    %v2116 = vshrl.u32 %v2115, 7
    %v2117 = vsub.s32 %v2114, %v2116
    %v2118 = vrot.slane %v2104, %v2117
    %v2121 = vunpack.c.l.s4 1966171168
    %v2122 = vunpack.c.0.s8 %v2121
    %v2123 = vlaneseq
    %v2124 = vshrl.u32 %v2123, 7
    %v2125 = vsub.s32 %v2122, %v2124
    %v2126 = vrot.slane %v2001, %v2125
    %v2127 = vcombine.high %v2126, %v2126
    %v2129 = vunpack.c.l.s4 1966171168
    %v2130 = vunpack.c.0.s8 %v2129
    %v2131 = vlaneseq
    %v2132 = vshrl.u32 %v2131, 7
    %v2133 = vsub.s32 %v2130, %v2132
    %v2134 = vrot.slane %v2126, %v2133
    %v2136 = vunpack.c.l.s4 1966171168
    %v2137 = vunpack.c.0.s8 %v2136
    %v2138 = vlaneseq
    %v2139 = vshrl.u32 %v2138, 7
    %v2140 = vsub.s32 %v2137, %v2139
    %v2141 = vrot.slane %v2127, %v2140
    %v2142 = vlaneseq
    %v2143 = vshrl.u32 %v2142, 7
    %v2144 = vsub.s32 0, %v2143
    %v2145 = vrot.slane %v2042, %v2144
    %v2146 = vlaneseq
    %v2147 = vshrl.u32 %v2146, 7
    %v2148 = vsub.s32 0, %v2147
    %v2149 = vrot.slane %v2049, %v2148
    %v2152 = vlaneseq
    %v2153 = vshrl.u32 %v2152, 7
    %v2154 = vsub.s32 0, %v2153
    %v2155 = vrot.slane %v2065, %v2154
    %v2156 = vlaneseq
    %v2157 = vshrl.u32 %v2156, 7
    %v2158 = vsub.s32 0, %v2157
    %v2159 = vrot.slane %v2072, %v2158
    %v2162 = vlaneseq
    %v2163 = vshrl.u32 %v2162, 7
    %v2164 = vsub.s32 0, %v2163
    %v2165 = vrot.slane %v2088, %v2164
    %v2166 = vlaneseq
    %v2167 = vshrl.u32 %v2166, 7
    %v2168 = vsub.s32 0, %v2167
    %v2169 = vrot.slane %v2095, %v2168
    %v2172 = vlaneseq
    %v2173 = vshrl.u32 %v2172, 7
    %v2174 = vsub.s32 0, %v2173
    %v2175 = vrot.slane %v2111, %v2174
    %v2176 = vlaneseq
    %v2177 = vshrl.u32 %v2176, 7
    %v2178 = vsub.s32 0, %v2177
    %v2179 = vrot.slane %v2118, %v2178
    %v2182 = vlaneseq
    %v2183 = vshrl.u32 %v2182, 7
    %v2184 = vsub.s32 0, %v2183
    %v2185 = vrot.slane %v2134, %v2184
    %v2186 = vlaneseq
    %v2187 = vshrl.u32 %v2186, 7
    %v2188 = vsub.s32 0, %v2187
    %v2189 = vrot.slane %v2141, %v2188
    %vm2192 = vcmask 1040384
    %v2193 = vsel %vm2192, %v2017, %v2145
    %v2194 = vsel %vm2192, %v2024, %v2149
    %vm2195 = vcmask 1041408
    %v2196 = vsel %vm2195, %v2193, %v2155
    %v2197 = vsel %vm2195, %v2194, %v2159
    %vm2198 = vcmask 1042432
    %v2199 = vsel %vm2198, %v2196, %v2165
    %v2200 = vsel %vm2198, %v2197, %v2169
    %v2201 = vsel %vm349, %v2199, %v2175
    %v2202 = vsel %vm349, %v2200, %v2179
    %vm2203 = vcmask 1044480
    %v2204 = vsel %vm2203, %v2201, %v2185
    %v2205 = vsel %vm2203, %v2202, %v2189
    %v2206 = vld [vmem:[%s4] sm:$0xff]
    %v2207 = vld [vmem:[%s4 + $0x8] sm:$0xff]
    %v2208 = vld [vmem:[%s4 + $0x10] sm:$0xff]
    %v2209 = vld [vmem:[%s4 + $0x18] sm:$0xff]
    %v2210 = vld [vmem:[%s4 + $0x20] sm:$0xff]
    %v2211 = vld [vmem:[%s4 + $0x28] sm:$0xff]
    %v2212 = vld [vmem:[%s4 + $0x30] sm:$0xff]
    %v2213 = vld [vmem:[%s4 + $0x38] sm:$0xff]
    %v2214 = vld [vmem:[%s4 + $0x40] sm:$0xff]
    %v2215 = vld [vmem:[%s4 + $0x48] sm:$0xff]
    %v2216 = vld [vmem:[%s4 + $0x50] sm:$0xff]
    %v2217 = vld [vmem:[%s4 + $0x58] sm:$0xff]
    %v2218 = vld [vmem:[%s4 + $0x60] sm:$0xff]
    %v2219 = vld [vmem:[%s4 + $0x68] sm:$0xff]
    %v2220 = vld [vmem:[%s4 + $0x70] sm:$0xff]
    %v2221 = vld [vmem:[%s4 + $0x78] sm:$0xff]
    %v2222 = vld [vmem:[%s5] sm:$0x1]
    %v2224 = vlaneseq
    %v2225 = vshrl.u32 %v2224, 7
    %v2226 = vsub.s32 0, %v2225
    %v2227 = vrot.slane %v2222, %v2226
    %v2230 = vcombine.high %v2204, %v2204
    %v2232 = vunpack.c.l.s4 1983009808
    %v2233 = vunpack.c.0.s8 %v2232
    %v2234 = vlaneseq
    %v2235 = vshrl.u32 %v2234, 7
    %v2236 = vsub.s32 %v2233, %v2235
    %v2237 = vrot.slane %v2204, %v2236
    %v2239 = vunpack.c.l.s4 1983009808
    %v2240 = vunpack.c.0.s8 %v2239
    %v2241 = vlaneseq
    %v2242 = vshrl.u32 %v2241, 7
    %v2243 = vsub.s32 %v2240, %v2242
    %v2244 = vrot.slane %v2230, %v2243
    %v2245 = vcombine.high %v2237, %v2237
    %v2246 = vcombine.high %v2205, %v2205
    %v2248 = vunpack.c.l.s4 1983009808
    %v2249 = vunpack.c.0.s8 %v2248
    %v2250 = vlaneseq
    %v2251 = vshrl.u32 %v2250, 7
    %v2252 = vsub.s32 %v2249, %v2251
    %v2253 = vrot.slane %v2205, %v2252
    %v2255 = vunpack.c.l.s4 1983009808
    %v2256 = vunpack.c.0.s8 %v2255
    %v2257 = vlaneseq
    %v2258 = vshrl.u32 %v2257, 7
    %v2259 = vsub.s32 %v2256, %v2258
    %v2260 = vrot.slane %v2246, %v2259
    %v2261 = vcombine.high %v2253, %v2253
    %v2262 = vcombine.high %v2227, %v2227
    %v2264 = vunpack.c.l.s4 1983009808
    %v2265 = vunpack.c.0.s8 %v2264
    %v2266 = vlaneseq
    %v2267 = vshrl.u32 %v2266, 7
    %v2268 = vsub.s32 %v2265, %v2267
    %v2269 = vrot.slane %v2227, %v2268
    %v2271 = vunpack.c.l.s4 1983009808
    %v2272 = vunpack.c.0.s8 %v2271
    %v2273 = vlaneseq
    %v2274 = vshrl.u32 %v2273, 7
    %v2275 = vsub.s32 %v2272, %v2274
    %v2276 = vrot.slane %v2262, %v2275
    %v2277 = vcombine.high %v2269, %v2269
    %v2278 = vcombine.low %v2237, %v2245
    %v2279 = vcombine.low %v2244, %v2253
    %v2281 = vunpack.c.l.s4 1983009808
    %v2282 = vunpack.c.0.s8 %v2281
    %v2283 = vlaneseq
    %v2284 = vshrl.u32 %v2283, 7
    %v2285 = vsub.s32 %v2282, %v2284
    %v2286 = vrot.slane %v2278, %v2285
    %v2288 = vunpack.c.l.s4 1983009808
    %v2289 = vunpack.c.0.s8 %v2288
    %v2290 = vlaneseq
    %v2291 = vshrl.u32 %v2290, 7
    %v2292 = vsub.s32 %v2289, %v2291
    %v2293 = vrot.slane %v2279, %v2292
    %v2294 = vcombine.low %v2286, %v2293
    %v2295 = vcombine.low %v2261, %v2260
    %v2297 = vunpack.c.l.s4 1983009808
    %v2298 = vunpack.c.0.s8 %v2297
    %v2299 = vlaneseq
    %v2300 = vshrl.u32 %v2299, 7
    %v2301 = vsub.s32 %v2298, %v2300
    %v2302 = vrot.slane %v2295, %v2301
    %v2305 = vcombine.low %v2269, %v2277
    %v2306 = vcombine.low %v2276, %v2269
    %v2308 = vunpack.c.l.s4 1983009808
    %v2309 = vunpack.c.0.s8 %v2308
    %v2310 = vlaneseq
    %v2311 = vshrl.u32 %v2310, 7
    %v2312 = vsub.s32 %v2309, %v2311
    %v2313 = vrot.slane %v2305, %v2312
    %v2315 = vunpack.c.l.s4 1983009808
    %v2316 = vunpack.c.0.s8 %v2315
    %v2317 = vlaneseq
    %v2318 = vshrl.u32 %v2317, 7
    %v2319 = vsub.s32 %v2316, %v2318
    %v2320 = vrot.slane %v2306, %v2319
    %v2321 = vcombine.low %v2313, %v2320
    %v2322 = vcombine.low %v2277, %v2276
    %v2324 = vunpack.c.l.s4 1983009808
    %v2325 = vunpack.c.0.s8 %v2324
    %v2326 = vlaneseq
    %v2327 = vshrl.u32 %v2326, 7
    %v2328 = vsub.s32 %v2325, %v2327
    %v2329 = vrot.slane %v2322, %v2328
    %2332 = vmatprep.subr.mxu0 0.0
    %2333 = vmatpush1.msra.mxu0 %v2206
    %2334 = vmatprep.subr.mxu0 0.0
    %2335 = vmatpush1.msra.mxu0 %v2207
    %2336 = vmatprep.subr.mxu0 0.0
    %2337 = vmatpush1.msra.mxu0 %v2208
    %2338 = vmatprep.subr.mxu0 0.0
    %2339 = vmatpush1.msra.mxu0 %v2209
    %2340 = vmatprep.subr.mxu0 0.0
    %2341 = vmatpush1.msra.mxu0 %v2210
    %2342 = vmatprep.subr.mxu0 0.0
    %2343 = vmatpush1.msra.mxu0 %v2211
    %2344 = vmatprep.subr.mxu0 0.0
    %2345 = vmatpush1.msra.mxu0 %v2212
    %2346 = vmatprep.subr.mxu0 0.0
    %2347 = vmatpush1.msra.mxu0 %v2213
    %2348 = vmatprep.subr.mxu0 0.0
    %2349 = vmatpush1.msra.mxu0 %v2214
    %2350 = vmatprep.subr.mxu0 0.0
    %2351 = vmatpush1.msra.mxu0 %v2215
    %2352 = vmatprep.subr.mxu0 0.0
    %2353 = vmatpush1.msra.mxu0 %v2216
    %2354 = vmatprep.subr.mxu0 0.0
    %2355 = vmatpush1.msra.mxu0 %v2217
    %2356 = vmatprep.subr.mxu0 0.0
    %2357 = vmatpush1.msra.mxu0 %v2218
    %2358 = vmatprep.subr.mxu0 0.0
    %2359 = vmatpush1.msra.mxu0 %v2219
    %2360 = vmatprep.subr.mxu0 0.0
    %2361 = vmatpush1.msra.mxu0 %v2220
    %2362 = vmatprep.subr.mxu0 0.0
    %2363 = vmatpush1.msra.mxu0 %v2221
    %2364 = vmatprep.subr.mxu0 0.0
    %2365 = vmatpush1.msra.mxu0 0.0
    %2366 = vmatprep.subr.mxu0 0.0
    %2367 = vmatpush1.msra.mxu0 0.0
    %2368 = vmatprep.subr.mxu0 0.0
    %2369 = vmatpush1.msra.mxu0 0.0
    %2370 = vmatprep.subr.mxu0 0.0
    %2371 = vmatpush1.msra.mxu0 0.0
    %2372 = vmatprep.subr.mxu0 0.0
    %2373 = vmatpush1.msra.mxu0 0.0
    %2374 = vmatprep.subr.mxu0 0.0
    %2375 = vmatpush1.msra.mxu0 0.0
    %2376 = vmatprep.subr.mxu0 0.0
    %2377 = vmatpush1.msra.mxu0 0.0
    %2378 = vmatprep.subr.mxu0 0.0
    %2379 = vmatpush1.msra.mxu0 0.0
    %2380 = vmatprep.subr.mxu0 0.0
    %2381 = vmatpush1.msra.mxu0 0.0
    %2382 = vmatprep.subr.mxu0 0.0
    %2383 = vmatpush1.msra.mxu0 0.0
    %2384 = vmatprep.subr.mxu0 0.0
    %2385 = vmatpush1.msra.mxu0 0.0
    %2386 = vmatprep.subr.mxu0 0.0
    %2387 = vmatpush1.msra.mxu0 0.0
    %2388 = vmatprep.subr.mxu0 0.0
    %2389 = vmatpush1.msra.mxu0 0.0
    %2390 = vmatprep.subr.mxu0 0.0
    %2391 = vmatpush1.msra.mxu0 0.0
    %2392 = vmatprep.subr.mxu0 0.0
    %2393 = vmatpush1.msra.mxu0 0.0
    %2394 = vmatprep.subr.mxu0 0.0
    %2395 = vmatpush1.msra.mxu0 0.0
    %2396 = vmatprep.mubr.f32.mxu0 0.0
    %2397 = vmatmul.mubr.f32.gmra.mrb[0].mxu0 %v2294
    %v2398 = vpop.f32.mrb[0].mxu0
    %v2399 = vadd.f32 %v2321, %v2398
    %v2400 = vpop.f32.mrb[0].mxu0
    %2401 = vmatprep.mubr.f32.mxu0 0.0
    %2402 = vmatmul.mubr.f32.gmra.mrb[0].mxu0 %v2302
    %v2403 = vpop.f32.mrb[0].mxu0
    %v2404 = vadd.f32 %v2329, %v2403
    %v2405 = vpop.f32.mrb[0].mxu0
    %2406 = vdwg.mxu0
    %v2409 = vcombine.high %v2399, %v2399
    %v2411 = vunpack.c.l.s4 1983009808
    %v2412 = vunpack.c.0.s8 %v2411
    %v2413 = vlaneseq
    %v2414 = vshrl.u32 %v2413, 7
    %v2415 = vsub.s32 %v2412, %v2414
    %v2416 = vrot.slane %v2399, %v2415
    %v2418 = vunpack.c.l.s4 1983009808
    %v2419 = vunpack.c.0.s8 %v2418
    %v2420 = vlaneseq
    %v2421 = vshrl.u32 %v2420, 7
    %v2422 = vsub.s32 %v2419, %v2421
    %v2423 = vrot.slane %v2409, %v2422
    %v2424 = vcombine.high %v2416, %v2416
    %v2425 = vcombine.high %v2423, %v2423
    %v2427 = vunpack.c.l.s4 1983009808
    %v2428 = vunpack.c.0.s8 %v2427
    %v2429 = vlaneseq
    %v2430 = vshrl.u32 %v2429, 7
    %v2431 = vsub.s32 %v2428, %v2430
    %v2432 = vrot.slane %v2404, %v2431
    %v2433 = vcombine.high %v2432, %v2432
    %v2440 = vtanh.pop %v2416
    %v2441 = vtanh.pop %v2424
    %v2442 = vtanh.pop %v2423
    %v2443 = vtanh.pop %v2425
    %v2444 = vtanh.pop %v2432
    %v2445 = vtanh.pop %v2433
    %v2446 = vld [vmem:[%s6] sm:$0x3f]
    %v2447 = vld [vmem:[%s7] sm:$0x1]
    %v2449 = vlaneseq
    %v2450 = vshrl.u32 %v2449, 7
    %v2451 = vsub.s32 0, %v2450
    %v2452 = vrot.slane %v2447, %v2451
    %v2453 = vcombine.high %v2452, %v2452
    %v2455 = vunpack.c.l.s4 1983009808
    %v2456 = vunpack.c.0.s8 %v2455
    %v2457 = vlaneseq
    %v2458 = vshrl.u32 %v2457, 7
    %v2459 = vsub.s32 %v2456, %v2458
    %v2460 = vrot.slane %v2452, %v2459
    %v2462 = vunpack.c.l.s4 1983009808
    %v2463 = vunpack.c.0.s8 %v2462
    %v2464 = vlaneseq
    %v2465 = vshrl.u32 %v2464, 7
    %v2466 = vsub.s32 %v2463, %v2465
    %v2467 = vrot.slane %v2453, %v2466
    %v2468 = vcombine.high %v2460, %v2460
    %v2475 = vcombine.low %v2440, %v2441
    %v2476 = vcombine.low %v2442, %v2443
    %v2478 = vunpack.c.l.s4 1983009808
    %v2479 = vunpack.c.0.s8 %v2478
    %v2480 = vlaneseq
    %v2481 = vshrl.u32 %v2480, 7
    %v2482 = vsub.s32 %v2479, %v2481
    %v2483 = vrot.slane %v2475, %v2482
    %v2485 = vunpack.c.l.s4 1983009808
    %v2486 = vunpack.c.0.s8 %v2485
    %v2487 = vlaneseq
    %v2488 = vshrl.u32 %v2487, 7
    %v2489 = vsub.s32 %v2486, %v2488
    %v2490 = vrot.slane %v2476, %v2489
    %v2491 = vcombine.low %v2483, %v2490
    %v2492 = vcombine.low %v2444, %v2445
    %v2494 = vunpack.c.l.s4 1983009808
    %v2495 = vunpack.c.0.s8 %v2494
    %v2496 = vlaneseq
    %v2497 = vshrl.u32 %v2496, 7
    %v2498 = vsub.s32 %v2495, %v2497
    %v2499 = vrot.slane %v2492, %v2498
    %v2500 = vcombine.low %v2460, %v2468
    %v2501 = vcombine.low %v2467, %v2460
    %v2503 = vunpack.c.l.s4 1983009808
    %v2504 = vunpack.c.0.s8 %v2503
    %v2505 = vlaneseq
    %v2506 = vshrl.u32 %v2505, 7
    %v2507 = vsub.s32 %v2504, %v2506
    %v2508 = vrot.slane %v2500, %v2507
    %v2510 = vunpack.c.l.s4 1983009808
    %v2511 = vunpack.c.0.s8 %v2510
    %v2512 = vlaneseq
    %v2513 = vshrl.u32 %v2512, 7
    %v2514 = vsub.s32 %v2511, %v2513
    %v2515 = vrot.slane %v2501, %v2514
    %v2516 = vcombine.low %v2508, %v2515
    %v2517 = vcombine.low %v2468, %v2467
    %v2519 = vunpack.c.l.s4 1983009808
    %v2520 = vunpack.c.0.s8 %v2519
    %v2521 = vlaneseq
    %v2522 = vshrl.u32 %v2521, 7
    %v2523 = vsub.s32 %v2520, %v2522
    %v2524 = vrot.slane %v2517, %v2523
    %vm2527 = vcmask 48128
    %v2528 = vsel %vm2527, %v2491, 0
    %v2530 = vsel %vm2527, %v2499, 0
    %vm2532 = vcmask 1045504
    %v2534 = vsel %vm2532, %v2446, 0
    %2536 = vmatprep.subr.mxu0 0.0
    %2537 = vmatpush1.msra.mxu0 %v2534
    %2538 = vmatprep.subr.mxu0 0.0
    %2539 = vmatpush1.msra.mxu0 0.0
    %2540 = vmatprep.subr.mxu0 0.0
    %2541 = vmatpush1.msra.mxu0 0.0
    %2542 = vmatprep.subr.mxu0 0.0
    %2543 = vmatpush1.msra.mxu0 0.0
    %2544 = vmatprep.subr.mxu0 0.0
    %2545 = vmatpush1.msra.mxu0 0.0
    %2546 = vmatprep.subr.mxu0 0.0
    %2547 = vmatpush1.msra.mxu0 0.0
    %2548 = vmatprep.subr.mxu0 0.0
    %2549 = vmatpush1.msra.mxu0 0.0
    %2550 = vmatprep.subr.mxu0 0.0
    %2551 = vmatpush1.msra.mxu0 0.0
    %2552 = vmatprep.subr.mxu0 0.0
    %2553 = vmatpush1.msra.mxu0 0.0
    %2554 = vmatprep.subr.mxu0 0.0
    %2555 = vmatpush1.msra.mxu0 0.0
    %2556 = vmatprep.subr.mxu0 0.0
    %2557 = vmatpush1.msra.mxu0 0.0
    %2558 = vmatprep.subr.mxu0 0.0
    %2559 = vmatpush1.msra.mxu0 0.0
    %2560 = vmatprep.subr.mxu0 0.0
    %2561 = vmatpush1.msra.mxu0 0.0
    %2562 = vmatprep.subr.mxu0 0.0
    %2563 = vmatpush1.msra.mxu0 0.0
    %2564 = vmatprep.subr.mxu0 0.0
    %2565 = vmatpush1.msra.mxu0 0.0
    %2566 = vmatprep.subr.mxu0 0.0
    %2567 = vmatpush1.msra.mxu0 0.0
    %2568 = vmatprep.subr.mxu0 0.0
    %2569 = vmatpush1.msra.mxu0 0.0
    %2570 = vmatprep.subr.mxu0 0.0
    %2571 = vmatpush1.msra.mxu0 0.0
    %2572 = vmatprep.subr.mxu0 0.0
    %2573 = vmatpush1.msra.mxu0 0.0
    %2574 = vmatprep.subr.mxu0 0.0
    %2575 = vmatpush1.msra.mxu0 0.0
    %2576 = vmatprep.subr.mxu0 0.0
    %2577 = vmatpush1.msra.mxu0 0.0
    %2578 = vmatprep.subr.mxu0 0.0
    %2579 = vmatpush1.msra.mxu0 0.0
    %2580 = vmatprep.subr.mxu0 0.0
    %2581 = vmatpush1.msra.mxu0 0.0
    %2582 = vmatprep.subr.mxu0 0.0
    %2583 = vmatpush1.msra.mxu0 0.0
    %2584 = vmatprep.subr.mxu0 0.0
    %2585 = vmatpush1.msra.mxu0 0.0
    %2586 = vmatprep.subr.mxu0 0.0
    %2587 = vmatpush1.msra.mxu0 0.0
    %2588 = vmatprep.subr.mxu0 0.0
    %2589 = vmatpush1.msra.mxu0 0.0
    %2590 = vmatprep.subr.mxu0 0.0
    %2591 = vmatpush1.msra.mxu0 0.0
    %2592 = vmatprep.subr.mxu0 0.0
    %2593 = vmatpush1.msra.mxu0 0.0
    %2594 = vmatprep.subr.mxu0 0.0
    %2595 = vmatpush1.msra.mxu0 0.0
    %2596 = vmatprep.subr.mxu0 0.0
    %2597 = vmatpush1.msra.mxu0 0.0
    %2598 = vmatprep.subr.mxu0 0.0
    %2599 = vmatpush1.msra.mxu0 0.0
    %2600 = vmatprep.mubr.f32.mxu0 0.0
    %2601 = vmatmul.mubr.f32.gmra.mrb[0].mxu0 %v2528
    %v2602 = vpop.f32.mrb[0].mxu0
    %v2603 = vadd.f32 %v2516, %v2602
    %v2604 = vpop.f32.mrb[0].mxu0
    %2605 = vmatprep.mubr.f32.mxu0 0.0
    %2606 = vmatmul.mubr.f32.gmra.mrb[0].mxu0 %v2530
    %v2607 = vpop.f32.mrb[0].mxu0
    %v2608 = vadd.f32 %v2524, %v2607
    %v2609 = vpop.f32.mrb[0].mxu0
    %2610 = vdwg.mxu0
    %v2613 = vcombine.high %v2603, %v2603
    %v2615 = vunpack.c.l.s4 1983009808
    %v2616 = vunpack.c.0.s8 %v2615
    %v2617 = vlaneseq
    %v2618 = vshrl.u32 %v2617, 7
    %v2619 = vsub.s32 %v2616, %v2618
    %v2620 = vrot.slane %v2603, %v2619
    %v2622 = vunpack.c.l.s4 1983009808
    %v2623 = vunpack.c.0.s8 %v2622
    %v2624 = vlaneseq
    %v2625 = vshrl.u32 %v2624, 7
    %v2626 = vsub.s32 %v2623, %v2625
    %v2627 = vrot.slane %v2613, %v2626
    %v2628 = vcombine.high %v2620, %v2620
    %v2629 = vcombine.high %v2627, %v2627
    %v2631 = vunpack.c.l.s4 1983009808
    %v2632 = vunpack.c.0.s8 %v2631
    %v2633 = vlaneseq
    %v2634 = vshrl.u32 %v2633, 7
    %v2635 = vsub.s32 %v2632, %v2634
    %v2636 = vrot.slane %v2608, %v2635
    %v2637 = vcombine.high %v2636, %v2636
    %v2644 = vxor.u32 %v2620, 2147483648
    %v2645 = vxor.u32 %v2628, 2147483648
    %v2646 = vxor.u32 %v2627, 2147483648
    %v2647 = vxor.u32 %v2629, 2147483648
    %v2648 = vxor.u32 %v2636, 2147483648
    %v2649 = vxor.u32 %v2637, 2147483648
    %v2650 = vmul.f32 %v2644, 1.442695
    %v2651 = vpow.pop %v2650
    %v2652 = vmul.f32 %v2645, 1.442695
    %v2653 = vpow.pop %v2652
    %v2654 = vmul.f32 %v2646, 1.442695
    %v2655 = vpow.pop %v2654
    %v2656 = vmul.f32 %v2647, 1.442695
    %v2657 = vpow.pop %v2656
    %v2658 = vmul.f32 %v2648, 1.442695
    %v2659 = vpow.pop %v2658
    %v2660 = vmul.f32 %v2649, 1.442695
    %v2661 = vpow.pop %v2660
    %v2662 = vadd.f32 %v2651, 1.0
    %v2663 = vadd.f32 %v2653, 1.0
    %v2664 = vadd.f32 %v2655, 1.0
    %v2665 = vadd.f32 %v2657, 1.0
    %v2666 = vadd.f32 %v2659, 1.0
    %v2667 = vadd.f32 %v2661, 1.0
    %v2668 = vrcp.pop %v2662
    %v2669 = vmul.f32 1.0, %v2668
    %v2670 = vrcp.pop %v2663
    %v2671 = vmul.f32 1.0, %v2670
    %v2672 = vrcp.pop %v2664
    %v2673 = vmul.f32 1.0, %v2672
    %v2674 = vrcp.pop %v2665
    %v2675 = vmul.f32 1.0, %v2674
    %v2676 = vrcp.pop %v2666
    %v2677 = vmul.f32 1.0, %v2676
    %v2678 = vrcp.pop %v2667
    %v2679 = vmul.f32 1.0, %v2678
    %v2683 = vcombine.low %v2669, %v2671
    %v2685 = vunpack.c.l.s4 1983009808
    %v2686 = vunpack.c.0.s8 %v2685
    %v2687 = vlaneseq
    %v2688 = vshrl.u32 %v2687, 7
    %v2689 = vsub.s32 %v2686, %v2688
    %v2690 = vrot.slane %v2683, %v2689
    %v2692 = vunpack.c.l.s4 1983009808
    %v2693 = vunpack.c.0.s8 %v2692
    %v2694 = vlaneseq
    %v2695 = vshrl.u32 %v2694, 7
    %v2696 = vsub.s32 %v2693, %v2695
    %v2697 = vrot.slane %v2673, %v2696
    %v2698 = vcombine.low %v2690, %v2697
    %2700 = vxpose.xlu0.b32.start [1/16] %v2698, 128
    %2701 = vxpose.xlu0.b32.cont [2/16] 0.0, 128
    %2702 = vxpose.xlu0.b32.cont [3/16] 0.0, 128
    %2703 = vxpose.xlu0.b32.cont [4/16] 0.0, 128
    %2704 = vxpose.xlu0.b32.cont [5/16] 0.0, 128
    %2705 = vxpose.xlu0.b32.cont [6/16] 0.0, 128
    %2706 = vxpose.xlu0.b32.cont [7/16] 0.0, 128
    %2707 = vxpose.xlu0.b32.cont [8/16] 0.0, 128
    %2708 = vxpose.xlu0.b32.cont [9/16] 0.0, 128
    %2709 = vxpose.xlu0.b32.cont [10/16] 0.0, 128
    %2710 = vxpose.xlu0.b32.cont [11/16] 0.0, 128
    %2711 = vxpose.xlu0.b32.cont [12/16] 0.0, 128
    %2712 = vxpose.xlu0.b32.cont [13/16] 0.0, 128
    %2713 = vxpose.xlu0.b32.cont [14/16] 0.0, 128
    %2714 = vxpose.xlu0.b32.cont [15/16] 0.0, 128
    %2715 = vxpose.xlu0.b32.end [16/16] 0.0, 128
    %v2716 = vpop.trf.xlu0
    %v2717 = vpop.trf.xlu0
    %v2718 = vpop.trf.xlu0
    %v2719 = vpop.trf.xlu0
    %v2720 = vpop.trf.xlu0
    %v2721 = vpop.trf.xlu0
    %v2722 = vpop.trf.xlu0
    %v2723 = vpop.trf.xlu0
    %v2724 = vpop.trf.xlu0
    %v2725 = vpop.trf.xlu0
    %v2726 = vpop.trf.xlu0
    %v2727 = vpop.trf.xlu0
    %v2728 = vpop.trf.xlu0
    %v2729 = vpop.trf.xlu0
    %v2730 = vpop.trf.xlu0
    %v2731 = vpop.trf.xlu0
    %v2733 = vsel %vm2527, %v2716, 0
    %v2735 = vsel %vm2532, %v2204, 0
    %2737 = vmatprep.subr.mxu0 0.0
    %2738 = vmatpush1.msra.mxu0 %v2735
    %2739 = vmatprep.subr.mxu0 0.0
    %2740 = vmatpush1.msra.mxu0 0.0
    %2741 = vmatprep.subr.mxu0 0.0
    %2742 = vmatpush1.msra.mxu0 0.0
    %2743 = vmatprep.subr.mxu0 0.0
    %2744 = vmatpush1.msra.mxu0 0.0
    %2745 = vmatprep.subr.mxu0 0.0
    %2746 = vmatpush1.msra.mxu0 0.0
    %2747 = vmatprep.subr.mxu0 0.0
    %2748 = vmatpush1.msra.mxu0 0.0
    %2749 = vmatprep.subr.mxu0 0.0
    %2750 = vmatpush1.msra.mxu0 0.0
    %2751 = vmatprep.subr.mxu0 0.0
    %2752 = vmatpush1.msra.mxu0 0.0
    %2753 = vmatprep.subr.mxu0 0.0
    %2754 = vmatpush1.msra.mxu0 0.0
    %2755 = vmatprep.subr.mxu0 0.0
    %2756 = vmatpush1.msra.mxu0 0.0
    %2757 = vmatprep.subr.mxu0 0.0
    %2758 = vmatpush1.msra.mxu0 0.0
    %2759 = vmatprep.subr.mxu0 0.0
    %2760 = vmatpush1.msra.mxu0 0.0
    %2761 = vmatprep.subr.mxu0 0.0
    %2762 = vmatpush1.msra.mxu0 0.0
    %2763 = vmatprep.subr.mxu0 0.0
    %2764 = vmatpush1.msra.mxu0 0.0
    %2765 = vmatprep.subr.mxu0 0.0
    %2766 = vmatpush1.msra.mxu0 0.0
    %2767 = vmatprep.subr.mxu0 0.0
    %2768 = vmatpush1.msra.mxu0 0.0
    %2769 = vmatprep.subr.mxu0 0.0
    %2770 = vmatpush1.msra.mxu0 0.0
    %2771 = vmatprep.subr.mxu0 0.0
    %2772 = vmatpush1.msra.mxu0 0.0
    %2773 = vmatprep.subr.mxu0 0.0
    %2774 = vmatpush1.msra.mxu0 0.0
    %2775 = vmatprep.subr.mxu0 0.0
    %2776 = vmatpush1.msra.mxu0 0.0
    %2777 = vmatprep.subr.mxu0 0.0
    %2778 = vmatpush1.msra.mxu0 0.0
    %2779 = vmatprep.subr.mxu0 0.0
    %2780 = vmatpush1.msra.mxu0 0.0
    %2781 = vmatprep.subr.mxu0 0.0
    %2782 = vmatpush1.msra.mxu0 0.0
    %2783 = vmatprep.subr.mxu0 0.0
    %2784 = vmatpush1.msra.mxu0 0.0
    %2785 = vmatprep.subr.mxu0 0.0
    %2786 = vmatpush1.msra.mxu0 0.0
    %2787 = vmatprep.subr.mxu0 0.0
    %2788 = vmatpush1.msra.mxu0 0.0
    %2789 = vmatprep.subr.mxu0 0.0
    %2790 = vmatpush1.msra.mxu0 0.0
    %2791 = vmatprep.subr.mxu0 0.0
    %2792 = vmatpush1.msra.mxu0 0.0
    %2793 = vmatprep.subr.mxu0 0.0
    %2794 = vmatpush1.msra.mxu0 0.0
    %2795 = vmatprep.subr.mxu0 0.0
    %2796 = vmatpush1.msra.mxu0 0.0
    %2797 = vmatprep.subr.mxu0 0.0
    %2798 = vmatpush1.msra.mxu0 0.0
    %2799 = vmatprep.subr.mxu0 0.0
    %2800 = vmatpush1.msra.mxu0 0.0
    %2801 = vmatprep.mubr.f32.mxu0 0.0
    %2802 = vmatmul.mubr.f32.gmra.mrb[0].mxu0 %v2733
    %v2803 = vpop.f32.mrb[0].mxu0
    %v2804 = vadd.f32 0.0, %v2803
    %v2805 = vpop.f32.mrb[0].mxu0
    %2806 = vdwg.mxu0
    %v2810 = vcombine.low %v2675, %v2677
    %v2812 = vunpack.c.l.s4 1983009808
    %v2813 = vunpack.c.0.s8 %v2812
    %v2814 = vlaneseq
    %v2815 = vshrl.u32 %v2814, 7
    %v2816 = vsub.s32 %v2813, %v2815
    %v2817 = vrot.slane %v2810, %v2816
    %v2819 = vunpack.c.l.s4 1983009808
    %v2820 = vunpack.c.0.s8 %v2819
    %v2821 = vlaneseq
    %v2822 = vshrl.u32 %v2821, 7
    %v2823 = vsub.s32 %v2820, %v2822
    %v2824 = vrot.slane %v2679, %v2823
    %v2825 = vcombine.low %v2817, %v2824
    %2827 = vxpose.xlu0.b32.start [1/16] %v2825, 128
    %2828 = vxpose.xlu0.b32.cont [2/16] 0.0, 128
    %2829 = vxpose.xlu0.b32.cont [3/16] 0.0, 128
    %2830 = vxpose.xlu0.b32.cont [4/16] 0.0, 128
    %2831 = vxpose.xlu0.b32.cont [5/16] 0.0, 128
    %2832 = vxpose.xlu0.b32.cont [6/16] 0.0, 128
    %2833 = vxpose.xlu0.b32.cont [7/16] 0.0, 128
    %2834 = vxpose.xlu0.b32.cont [8/16] 0.0, 128
    %2835 = vxpose.xlu0.b32.cont [9/16] 0.0, 128
    %2836 = vxpose.xlu0.b32.cont [10/16] 0.0, 128
    %2837 = vxpose.xlu0.b32.cont [11/16] 0.0, 128
    %2838 = vxpose.xlu0.b32.cont [12/16] 0.0, 128
    %2839 = vxpose.xlu0.b32.cont [13/16] 0.0, 128
    %2840 = vxpose.xlu0.b32.cont [14/16] 0.0, 128
    %2841 = vxpose.xlu0.b32.cont [15/16] 0.0, 128
    %2842 = vxpose.xlu0.b32.end [16/16] 0.0, 128
    %v2843 = vpop.trf.xlu0
    %v2844 = vpop.trf.xlu0
    %v2845 = vpop.trf.xlu0
    %v2846 = vpop.trf.xlu0
    %v2847 = vpop.trf.xlu0
    %v2848 = vpop.trf.xlu0
    %v2849 = vpop.trf.xlu0
    %v2850 = vpop.trf.xlu0
    %v2851 = vpop.trf.xlu0
    %v2852 = vpop.trf.xlu0
    %v2853 = vpop.trf.xlu0
    %v2854 = vpop.trf.xlu0
    %v2855 = vpop.trf.xlu0
    %v2856 = vpop.trf.xlu0
    %v2857 = vpop.trf.xlu0
    %v2858 = vpop.trf.xlu0
    %v2860 = vsel %vm2527, %v2843, 0
    %v2862 = vsel %vm2532, %v2205, 0
    %2864 = vmatprep.subr.mxu0 0.0
    %2865 = vmatpush1.msra.mxu0 %v2862
    %2866 = vmatprep.subr.mxu0 0.0
    %2867 = vmatpush1.msra.mxu0 0.0
    %2868 = vmatprep.subr.mxu0 0.0
    %2869 = vmatpush1.msra.mxu0 0.0
    %2870 = vmatprep.subr.mxu0 0.0
    %2871 = vmatpush1.msra.mxu0 0.0
    %2872 = vmatprep.subr.mxu0 0.0
    %2873 = vmatpush1.msra.mxu0 0.0
    %2874 = vmatprep.subr.mxu0 0.0
    %2875 = vmatpush1.msra.mxu0 0.0
    %2876 = vmatprep.subr.mxu0 0.0
    %2877 = vmatpush1.msra.mxu0 0.0
    %2878 = vmatprep.subr.mxu0 0.0
    %2879 = vmatpush1.msra.mxu0 0.0
    %2880 = vmatprep.subr.mxu0 0.0
    %2881 = vmatpush1.msra.mxu0 0.0
    %2882 = vmatprep.subr.mxu0 0.0
    %2883 = vmatpush1.msra.mxu0 0.0
    %2884 = vmatprep.subr.mxu0 0.0
    %2885 = vmatpush1.msra.mxu0 0.0
    %2886 = vmatprep.subr.mxu0 0.0
    %2887 = vmatpush1.msra.mxu0 0.0
    %2888 = vmatprep.subr.mxu0 0.0
    %2889 = vmatpush1.msra.mxu0 0.0
    %2890 = vmatprep.subr.mxu0 0.0
    %2891 = vmatpush1.msra.mxu0 0.0
    %2892 = vmatprep.subr.mxu0 0.0
    %2893 = vmatpush1.msra.mxu0 0.0
    %2894 = vmatprep.subr.mxu0 0.0
    %2895 = vmatpush1.msra.mxu0 0.0
    %2896 = vmatprep.subr.mxu0 0.0
    %2897 = vmatpush1.msra.mxu0 0.0
    %2898 = vmatprep.subr.mxu0 0.0
    %2899 = vmatpush1.msra.mxu0 0.0
    %2900 = vmatprep.subr.mxu0 0.0
    %2901 = vmatpush1.msra.mxu0 0.0
    %2902 = vmatprep.subr.mxu0 0.0
    %2903 = vmatpush1.msra.mxu0 0.0
    %2904 = vmatprep.subr.mxu0 0.0
    %2905 = vmatpush1.msra.mxu0 0.0
    %2906 = vmatprep.subr.mxu0 0.0
    %2907 = vmatpush1.msra.mxu0 0.0
    %2908 = vmatprep.subr.mxu0 0.0
    %2909 = vmatpush1.msra.mxu0 0.0
    %2910 = vmatprep.subr.mxu0 0.0
    %2911 = vmatpush1.msra.mxu0 0.0
    %2912 = vmatprep.subr.mxu0 0.0
    %2913 = vmatpush1.msra.mxu0 0.0
    %2914 = vmatprep.subr.mxu0 0.0
    %2915 = vmatpush1.msra.mxu0 0.0
    %2916 = vmatprep.subr.mxu0 0.0
    %2917 = vmatpush1.msra.mxu0 0.0
    %2918 = vmatprep.subr.mxu0 0.0
    %2919 = vmatpush1.msra.mxu0 0.0
    %2920 = vmatprep.subr.mxu0 0.0
    %2921 = vmatpush1.msra.mxu0 0.0
    %2922 = vmatprep.subr.mxu0 0.0
    %2923 = vmatpush1.msra.mxu0 0.0
    %2924 = vmatprep.subr.mxu0 0.0
    %2925 = vmatpush1.msra.mxu0 0.0
    %2926 = vmatprep.subr.mxu0 0.0
    %2927 = vmatpush1.msra.mxu0 0.0
    %2928 = vmatprep.mubr.f32.mxu0 0.0
    %2929 = vmatmul.mubr.f32.gmra.mrb[0].mxu0 %v2860
    %v2930 = vpop.f32.mrb[0].mxu0
    %v2931 = vadd.f32 0.0, %v2930
    %v2932 = vpop.f32.mrb[0].mxu0
    %2933 = vdwg.mxu0
    %v2934 = vmax.f32 %v2804, 0.0
    %v2935 = vmax.f32 %v2931, 0.0
    %v2936 = vld [vmem:[%s8] sm:$0xff]
    %v2937 = vld [vmem:[%s8 + $0x8] sm:$0xff]
    %v2938 = vld [vmem:[%s8 + $0x10] sm:$0xff]
    %v2939 = vld [vmem:[%s8 + $0x18] sm:$0xff]
    %v2940 = vld [vmem:[%s8 + $0x20] sm:$0xff]
    %v2941 = vld [vmem:[%s8 + $0x28] sm:$0xff]
    %v2942 = vld [vmem:[%s8 + $0x30] sm:$0xff]
    %v2943 = vld [vmem:[%s8 + $0x38] sm:$0xff]
    %v2944 = vld [vmem:[%s8 + $0x40] sm:$0xff]
    %v2945 = vld [vmem:[%s8 + $0x48] sm:$0xff]
    %v2946 = vld [vmem:[%s8 + $0x50] sm:$0xff]
    %v2947 = vld [vmem:[%s8 + $0x58] sm:$0xff]
    %v2948 = vld [vmem:[%s8 + $0x60] sm:$0xff]
    %v2949 = vld [vmem:[%s8 + $0x68] sm:$0xff]
    %v2950 = vld [vmem:[%s8 + $0x70] sm:$0xff]
    %v2951 = vld [vmem:[%s8 + $0x78] sm:$0xff]
    %v2952 = vld [vmem:[%s9] sm:$0x1]
    %v2954 = vlaneseq
    %v2955 = vshrl.u32 %v2954, 7
    %v2956 = vsub.s32 0, %v2955
    %v2957 = vrot.slane %v2952, %v2956
    %v2960 = vcombine.high %v2934, %v2934
    %v2962 = vunpack.c.l.s4 1983009808
    %v2963 = vunpack.c.0.s8 %v2962
    %v2964 = vlaneseq
    %v2965 = vshrl.u32 %v2964, 7
    %v2966 = vsub.s32 %v2963, %v2965
    %v2967 = vrot.slane %v2934, %v2966
    %v2969 = vunpack.c.l.s4 1983009808
    %v2970 = vunpack.c.0.s8 %v2969
    %v2971 = vlaneseq
    %v2972 = vshrl.u32 %v2971, 7
    %v2973 = vsub.s32 %v2970, %v2972
    %v2974 = vrot.slane %v2960, %v2973
    %v2975 = vcombine.high %v2967, %v2967
    %v2976 = vcombine.high %v2935, %v2935
    %v2978 = vunpack.c.l.s4 1983009808
    %v2979 = vunpack.c.0.s8 %v2978
    %v2980 = vlaneseq
    %v2981 = vshrl.u32 %v2980, 7
    %v2982 = vsub.s32 %v2979, %v2981
    %v2983 = vrot.slane %v2935, %v2982
    %v2985 = vunpack.c.l.s4 1983009808
    %v2986 = vunpack.c.0.s8 %v2985
    %v2987 = vlaneseq
    %v2988 = vshrl.u32 %v2987, 7
    %v2989 = vsub.s32 %v2986, %v2988
    %v2990 = vrot.slane %v2976, %v2989
    %v2991 = vcombine.high %v2983, %v2983
    %v2992 = vcombine.high %v2957, %v2957
    %v2994 = vunpack.c.l.s4 1983009808
    %v2995 = vunpack.c.0.s8 %v2994
    %v2996 = vlaneseq
    %v2997 = vshrl.u32 %v2996, 7
    %v2998 = vsub.s32 %v2995, %v2997
    %v2999 = vrot.slane %v2957, %v2998
    %v3001 = vunpack.c.l.s4 1983009808
    %v3002 = vunpack.c.0.s8 %v3001
    %v3003 = vlaneseq
    %v3004 = vshrl.u32 %v3003, 7
    %v3005 = vsub.s32 %v3002, %v3004
    %v3006 = vrot.slane %v2992, %v3005
    %v3007 = vcombine.high %v2999, %v2999
    %v3008 = vcombine.low %v2967, %v2975
    %v3009 = vcombine.low %v2974, %v2983
    %v3011 = vunpack.c.l.s4 1983009808
    %v3012 = vunpack.c.0.s8 %v3011
    %v3013 = vlaneseq
    %v3014 = vshrl.u32 %v3013, 7
    %v3015 = vsub.s32 %v3012, %v3014
    %v3016 = vrot.slane %v3008, %v3015
    %v3018 = vunpack.c.l.s4 1983009808
    %v3019 = vunpack.c.0.s8 %v3018
    %v3020 = vlaneseq
    %v3021 = vshrl.u32 %v3020, 7
    %v3022 = vsub.s32 %v3019, %v3021
    %v3023 = vrot.slane %v3009, %v3022
    %v3024 = vcombine.low %v3016, %v3023
    %v3025 = vcombine.low %v2991, %v2990
    %v3027 = vunpack.c.l.s4 1983009808
    %v3028 = vunpack.c.0.s8 %v3027
    %v3029 = vlaneseq
    %v3030 = vshrl.u32 %v3029, 7
    %v3031 = vsub.s32 %v3028, %v3030
    %v3032 = vrot.slane %v3025, %v3031
    %v3035 = vcombine.low %v2999, %v3007
    %v3036 = vcombine.low %v3006, %v2999
    %v3038 = vunpack.c.l.s4 1983009808
    %v3039 = vunpack.c.0.s8 %v3038
    %v3040 = vlaneseq
    %v3041 = vshrl.u32 %v3040, 7
    %v3042 = vsub.s32 %v3039, %v3041
    %v3043 = vrot.slane %v3035, %v3042
    %v3045 = vunpack.c.l.s4 1983009808
    %v3046 = vunpack.c.0.s8 %v3045
    %v3047 = vlaneseq
    %v3048 = vshrl.u32 %v3047, 7
    %v3049 = vsub.s32 %v3046, %v3048
    %v3050 = vrot.slane %v3036, %v3049
    %v3051 = vcombine.low %v3043, %v3050
    %v3052 = vcombine.low %v3007, %v3006
    %v3054 = vunpack.c.l.s4 1983009808
    %v3055 = vunpack.c.0.s8 %v3054
    %v3056 = vlaneseq
    %v3057 = vshrl.u32 %v3056, 7
    %v3058 = vsub.s32 %v3055, %v3057
    %v3059 = vrot.slane %v3052, %v3058
    %3062 = vmatprep.subr.mxu0 0.0
    %3063 = vmatpush1.msra.mxu0 %v2936
    %3064 = vmatprep.subr.mxu0 0.0
    %3065 = vmatpush1.msra.mxu0 %v2937
    %3066 = vmatprep.subr.mxu0 0.0
    %3067 = vmatpush1.msra.mxu0 %v2938
    %3068 = vmatprep.subr.mxu0 0.0
    %3069 = vmatpush1.msra.mxu0 %v2939
    %3070 = vmatprep.subr.mxu0 0.0
    %3071 = vmatpush1.msra.mxu0 %v2940
    %3072 = vmatprep.subr.mxu0 0.0
    %3073 = vmatpush1.msra.mxu0 %v2941
    %3074 = vmatprep.subr.mxu0 0.0
    %3075 = vmatpush1.msra.mxu0 %v2942
    %3076 = vmatprep.subr.mxu0 0.0
    %3077 = vmatpush1.msra.mxu0 %v2943
    %3078 = vmatprep.subr.mxu0 0.0
    %3079 = vmatpush1.msra.mxu0 %v2944
    %3080 = vmatprep.subr.mxu0 0.0
    %3081 = vmatpush1.msra.mxu0 %v2945
    %3082 = vmatprep.subr.mxu0 0.0
    %3083 = vmatpush1.msra.mxu0 %v2946
    %3084 = vmatprep.subr.mxu0 0.0
    %3085 = vmatpush1.msra.mxu0 %v2947
    %3086 = vmatprep.subr.mxu0 0.0
    %3087 = vmatpush1.msra.mxu0 %v2948
    %3088 = vmatprep.subr.mxu0 0.0
    %3089 = vmatpush1.msra.mxu0 %v2949
    %3090 = vmatprep.subr.mxu0 0.0
    %3091 = vmatpush1.msra.mxu0 %v2950
    %3092 = vmatprep.subr.mxu0 0.0
    %3093 = vmatpush1.msra.mxu0 %v2951
    %3094 = vmatprep.subr.mxu0 0.0
    %3095 = vmatpush1.msra.mxu0 0.0
    %3096 = vmatprep.subr.mxu0 0.0
    %3097 = vmatpush1.msra.mxu0 0.0
    %3098 = vmatprep.subr.mxu0 0.0
    %3099 = vmatpush1.msra.mxu0 0.0
    %3100 = vmatprep.subr.mxu0 0.0
    %3101 = vmatpush1.msra.mxu0 0.0
    %3102 = vmatprep.subr.mxu0 0.0
    %3103 = vmatpush1.msra.mxu0 0.0
    %3104 = vmatprep.subr.mxu0 0.0
    %3105 = vmatpush1.msra.mxu0 0.0
    %3106 = vmatprep.subr.mxu0 0.0
    %3107 = vmatpush1.msra.mxu0 0.0
    %3108 = vmatprep.subr.mxu0 0.0
    %3109 = vmatpush1.msra.mxu0 0.0
    %3110 = vmatprep.subr.mxu0 0.0
    %3111 = vmatpush1.msra.mxu0 0.0
    %3112 = vmatprep.subr.mxu0 0.0
    %3113 = vmatpush1.msra.mxu0 0.0
    %3114 = vmatprep.subr.mxu0 0.0
    %3115 = vmatpush1.msra.mxu0 0.0
    %3116 = vmatprep.subr.mxu0 0.0
    %3117 = vmatpush1.msra.mxu0 0.0
    %3118 = vmatprep.subr.mxu0 0.0
    %3119 = vmatpush1.msra.mxu0 0.0
    %3120 = vmatprep.subr.mxu0 0.0
    %3121 = vmatpush1.msra.mxu0 0.0
    %3122 = vmatprep.subr.mxu0 0.0
    %3123 = vmatpush1.msra.mxu0 0.0
    %3124 = vmatprep.subr.mxu0 0.0
    %3125 = vmatpush1.msra.mxu0 0.0
    %3126 = vmatprep.mubr.f32.mxu0 0.0
    %3127 = vmatmul.mubr.f32.gmra.mrb[0].mxu0 %v3024
    %v3128 = vpop.f32.mrb[0].mxu0
    %v3129 = vadd.f32 %v3051, %v3128
    %v3130 = vpop.f32.mrb[0].mxu0
    %3131 = vmatprep.mubr.f32.mxu0 0.0
    %3132 = vmatmul.mubr.f32.gmra.mrb[0].mxu0 %v3032
    %v3133 = vpop.f32.mrb[0].mxu0
    %v3134 = vadd.f32 %v3059, %v3133
    %v3135 = vpop.f32.mrb[0].mxu0
    %3136 = vdwg.mxu0
    %v3139 = vcombine.high %v3129, %v3129
    %v3141 = vunpack.c.l.s4 1983009808
    %v3142 = vunpack.c.0.s8 %v3141
    %v3143 = vlaneseq
    %v3144 = vshrl.u32 %v3143, 7
    %v3145 = vsub.s32 %v3142, %v3144
    %v3146 = vrot.slane %v3129, %v3145
    %v3148 = vunpack.c.l.s4 1983009808
    %v3149 = vunpack.c.0.s8 %v3148
    %v3150 = vlaneseq
    %v3151 = vshrl.u32 %v3150, 7
    %v3152 = vsub.s32 %v3149, %v3151
    %v3153 = vrot.slane %v3139, %v3152
    %v3154 = vcombine.high %v3146, %v3146
    %v3155 = vcombine.high %v3153, %v3153
    %v3157 = vunpack.c.l.s4 1983009808
    %v3158 = vunpack.c.0.s8 %v3157
    %v3159 = vlaneseq
    %v3160 = vshrl.u32 %v3159, 7
    %v3161 = vsub.s32 %v3158, %v3160
    %v3162 = vrot.slane %v3134, %v3161
    %v3163 = vcombine.high %v3162, %v3162
    %v3170 = vcombine.low %v3146, %v3154
    %v3172 = vunpack.c.l.s4 1983009808
    %v3173 = vunpack.c.0.s8 %v3172
    %v3174 = vlaneseq
    %v3175 = vshrl.u32 %v3174, 7
    %v3176 = vsub.s32 %v3173, %v3175
    %v3177 = vrot.slane %v3170, %v3176
    %v3179 = vunpack.c.l.s4 1983009808
    %v3180 = vunpack.c.0.s8 %v3179
    %v3181 = vlaneseq
    %v3182 = vshrl.u32 %v3181, 7
    %v3183 = vsub.s32 %v3180, %v3182
    %v3184 = vrot.slane %v3153, %v3183
    %v3185 = vcombine.low %v3177, %v3184
    %v3186 = vcombine.low %v3155, %v3162
    %v3188 = vunpack.c.l.s4 1983009808
    %v3189 = vunpack.c.0.s8 %v3188
    %v3190 = vlaneseq
    %v3191 = vshrl.u32 %v3190, 7
    %v3192 = vsub.s32 %v3189, %v3191
    %v3193 = vrot.slane %v3186, %v3192
    %v3195 = vunpack.c.l.s4 1983009808
    %v3196 = vunpack.c.0.s8 %v3195
    %v3197 = vlaneseq
    %v3198 = vshrl.u32 %v3197, 7
    %v3199 = vsub.s32 %v3196, %v3198
    %v3200 = vrot.slane %v3163, %v3199
    %v3201 = vcombine.low %v3193, %v3200
    %vm3204 = vcmask 21504
    %v3205 = vsel %vm3204, %v3185, -inf
    %3206 = vmax.xlane.f32.xlu0 %v3205
    %v3207 = vpop.xlane.xlu0 %3206
    %v3208 = vsel %vm3204, %v3201, -inf
    %3209 = vmax.xlane.f32.xlu0 %v3208
    %v3210 = vpop.xlane.xlu0 %3209
    %v3214 = vunpack.c.l.s4 269488144
    %v3215 = vunpack.c.0.s8 %v3214
    %v3216 = vlaneseq
    %v3217 = vshrl.u32 %v3216, 7
    %v3218 = vsub.s32 %v3215, %v3217
    %v3219 = vrot.slane %v3207, %v3218
    %v3221 = vunpack.c.l.s4 842150450
    %v3222 = vunpack.c.0.s8 %v3221
    %v3223 = vlaneseq
    %v3224 = vshrl.u32 %v3223, 7
    %v3225 = vsub.s32 %v3222, %v3224
    %v3226 = vrot.slane %v3207, %v3225
    %v3228 = vunpack.c.l.s4 1414812756
    %v3229 = vunpack.c.0.s8 %v3228
    %v3230 = vlaneseq
    %v3231 = vshrl.u32 %v3230, 7
    %v3232 = vsub.s32 %v3229, %v3231
    %v3233 = vrot.slane %v3207, %v3232
    %v3235 = vunpack.c.l.s4 269488144
    %v3236 = vunpack.c.0.s8 %v3235
    %v3237 = vlaneseq
    %v3238 = vshrl.u32 %v3237, 7
    %v3239 = vsub.s32 %v3236, %v3238
    %v3240 = vrot.slane %v3210, %v3239
    %v3242 = vunpack.c.l.s4 842150450
    %v3243 = vunpack.c.0.s8 %v3242
    %v3244 = vlaneseq
    %v3245 = vshrl.u32 %v3244, 7
    %v3246 = vsub.s32 %v3243, %v3245
    %v3247 = vrot.slane %v3210, %v3246
    %v3249 = vunpack.c.l.s4 1414812756
    %v3250 = vunpack.c.0.s8 %v3249
    %v3251 = vlaneseq
    %v3252 = vshrl.u32 %v3251, 7
    %v3253 = vsub.s32 %v3250, %v3252
    %v3254 = vrot.slane %v3210, %v3253
    %v3261 = vsub.f32 %v3146, %v3219
    %v3262 = vsub.f32 %v3154, %v3226
    %v3263 = vsub.f32 %v3153, %v3233
    %v3264 = vsub.f32 %v3155, %v3240
    %v3265 = vsub.f32 %v3162, %v3247
    %v3266 = vsub.f32 %v3163, %v3254
    %v3267 = vmul.f32 %v3261, 1.442695
    %v3268 = vpow.pop %v3267
    %v3269 = vmul.f32 %v3262, 1.442695
    %v3270 = vpow.pop %v3269
    %v3271 = vmul.f32 %v3263, 1.442695
    %v3272 = vpow.pop %v3271
    %v3273 = vmul.f32 %v3264, 1.442695
    %v3274 = vpow.pop %v3273
    %v3275 = vmul.f32 %v3265, 1.442695
    %v3276 = vpow.pop %v3275
    %v3277 = vmul.f32 %v3266, 1.442695
    %v3278 = vpow.pop %v3277
    %v3285 = vcombine.low %v3268, %v3270
    %v3287 = vunpack.c.l.s4 1983009808
    %v3288 = vunpack.c.0.s8 %v3287
    %v3289 = vlaneseq
    %v3290 = vshrl.u32 %v3289, 7
    %v3291 = vsub.s32 %v3288, %v3290
    %v3292 = vrot.slane %v3285, %v3291
    %v3294 = vunpack.c.l.s4 1983009808
    %v3295 = vunpack.c.0.s8 %v3294
    %v3296 = vlaneseq
    %v3297 = vshrl.u32 %v3296, 7
    %v3298 = vsub.s32 %v3295, %v3297
    %v3299 = vrot.slane %v3272, %v3298
    %v3300 = vcombine.low %v3292, %v3299
    %v3301 = vcombine.low %v3274, %v3276
    %v3303 = vunpack.c.l.s4 1983009808
    %v3304 = vunpack.c.0.s8 %v3303
    %v3305 = vlaneseq
    %v3306 = vshrl.u32 %v3305, 7
    %v3307 = vsub.s32 %v3304, %v3306
    %v3308 = vrot.slane %v3301, %v3307
    %v3310 = vunpack.c.l.s4 1983009808
    %v3311 = vunpack.c.0.s8 %v3310
    %v3312 = vlaneseq
    %v3313 = vshrl.u32 %v3312, 7
    %v3314 = vsub.s32 %v3311, %v3313
    %v3315 = vrot.slane %v3278, %v3314
    %v3316 = vcombine.low %v3308, %v3315
    %v3319 = vsel %vm3204, %v3300, 0.0
    %3320 = vadd.xlane.f32.xlu0 %v3319
    %v3321 = vpop.xlane.xlu0 %3320
    %v3322 = vsel %vm3204, %v3316, 0.0
    %3323 = vadd.xlane.f32.xlu0 %v3322
    %v3324 = vpop.xlane.xlu0 %3323
    %v3325 = vlog2.pop %v3321
    %v3326 = vmul.f32 %v3325, 0.6931472
    %v3327 = vlog2.pop %v3324
    %v3328 = vmul.f32 %v3327, 0.6931472
    %v3332 = vunpack.c.l.s4 269488144
    %v3333 = vunpack.c.0.s8 %v3332
    %v3334 = vlaneseq
    %v3335 = vshrl.u32 %v3334, 7
    %v3336 = vsub.s32 %v3333, %v3335
    %v3337 = vrot.slane %v3326, %v3336
    %v3339 = vunpack.c.l.s4 842150450
    %v3340 = vunpack.c.0.s8 %v3339
    %v3341 = vlaneseq
    %v3342 = vshrl.u32 %v3341, 7
    %v3343 = vsub.s32 %v3340, %v3342
    %v3344 = vrot.slane %v3326, %v3343
    %v3346 = vunpack.c.l.s4 1414812756
    %v3347 = vunpack.c.0.s8 %v3346
    %v3348 = vlaneseq
    %v3349 = vshrl.u32 %v3348, 7
    %v3350 = vsub.s32 %v3347, %v3349
    %v3351 = vrot.slane %v3326, %v3350
    %v3353 = vunpack.c.l.s4 269488144
    %v3354 = vunpack.c.0.s8 %v3353
    %v3355 = vlaneseq
    %v3356 = vshrl.u32 %v3355, 7
    %v3357 = vsub.s32 %v3354, %v3356
    %v3358 = vrot.slane %v3328, %v3357
    %v3360 = vunpack.c.l.s4 842150450
    %v3361 = vunpack.c.0.s8 %v3360
    %v3362 = vlaneseq
    %v3363 = vshrl.u32 %v3362, 7
    %v3364 = vsub.s32 %v3361, %v3363
    %v3365 = vrot.slane %v3328, %v3364
    %v3367 = vunpack.c.l.s4 1414812756
    %v3368 = vunpack.c.0.s8 %v3367
    %v3369 = vlaneseq
    %v3370 = vshrl.u32 %v3369, 7
    %v3371 = vsub.s32 %v3368, %v3370
    %v3372 = vrot.slane %v3328, %v3371
    %v3379 = vsub.f32 %v3261, %v3337
    %v3380 = vsub.f32 %v3262, %v3344
    %v3381 = vsub.f32 %v3263, %v3351
    %v3382 = vsub.f32 %v3264, %v3358
    %v3383 = vsub.f32 %v3265, %v3365
    %v3384 = vsub.f32 %v3266, %v3372
    %v3391 = vcombine.low %v3379, %v3380
    %v3393 = vunpack.c.l.s4 1983009808
    %v3394 = vunpack.c.0.s8 %v3393
    %v3395 = vlaneseq
    %v3396 = vshrl.u32 %v3395, 7
    %v3397 = vsub.s32 %v3394, %v3396
    %v3398 = vrot.slane %v3391, %v3397
    %v3400 = vunpack.c.l.s4 1983009808
    %v3401 = vunpack.c.0.s8 %v3400
    %v3402 = vlaneseq
    %v3403 = vshrl.u32 %v3402, 7
    %v3404 = vsub.s32 %v3401, %v3403
    %v3405 = vrot.slane %v3381, %v3404
    %v3406 = vcombine.low %v3398, %v3405
    %v3407 = vcombine.low %v3382, %v3383
    %v3409 = vunpack.c.l.s4 1983009808
    %v3410 = vunpack.c.0.s8 %v3409
    %v3411 = vlaneseq
    %v3412 = vshrl.u32 %v3411, 7
    %v3413 = vsub.s32 %v3410, %v3412
    %v3414 = vrot.slane %v3407, %v3413
    %v3416 = vunpack.c.l.s4 1983009808
    %v3417 = vunpack.c.0.s8 %v3416
    %v3418 = vlaneseq
    %v3419 = vshrl.u32 %v3418, 7
    %v3420 = vsub.s32 %v3417, %v3419
    %v3421 = vrot.slane %v3384, %v3420
    %v3422 = vcombine.low %v3414, %v3421
    %3425 = vst.msk [vmem:[%s10] sm:$0x3f] %vm3204, %v3406
    %3426 = vst.msk [vmem:[%s10 + $0x8] sm:$0x3f] %vm3204, %v3422
    // Predicated region
    $region50: #{tpu_custom_call.1} parent=1 // pred_check
      _
    $region51: #{tpu_custom_call.1} parent=1 // pred_check_branch
      %3428 = sbr.rel (0) target = $region53
    $region52: #{tpu_custom_call.1} parent=1 // pred_region
      _
    $region53: #{tpu_custom_call.1} parent=1 // pred_fallthru
      _
    // Predicated region
    $region54: #{tpu_custom_call.1} parent=1 // pred_check
      _
    $region55: #{tpu_custom_call.1} parent=1 // pred_check_branch
      %3430 = sbr.rel (0) target = $region57
    $region56: #{tpu_custom_call.1} parent=1 // pred_region
      _
    $region57: #{tpu_custom_call.1} parent=1 // pred_fallthru
      _
    %3431 = vsyncpa [#allocation3], 1
    %3432 = vsyncpa [#allocation5], 1

</llo_original>
